<compile_context>
chip_gen: v6e
topology: v6e:2x2x1
jax: 0.10.0
libtpu: 0.0.40
codegen_flags: <defaults>
</compile_context>

<pallas_src>
import functools

import jax
import jax.numpy as jnp
import numpy as np
from jax.experimental import pallas as pl
from jax.experimental.pallas import tpu as pltpu


def _round_up(x, m):
    return (x + m - 1) // m * m


def _pad_gate_cols(w, h_orig, h_pad):
    """Pad the trailing (4*H) gate axis to 4*h_pad, keeping torch's i,f,g,o gate
    blocks aligned at lane-multiples of h_pad (zeros elsewhere)."""
    if h_pad == h_orig:
        return w
    pad_width = [(0, 0)] * (w.ndim - 1) + [(0, h_pad - h_orig)]
    parts = [jnp.pad(w[..., k * h_orig:(k + 1) * h_orig], pad_width)
             for k in range(4)]
    return jnp.concatenate(parts, axis=-1)


def encoder_lstm_kernel(blk_max_ref,                       # scalar prefetch (SMEM)
                        embeds_ref, lengths_ref, w_ih_ref, w_hh_ref, b_ref,
                        w_e2d_ref, b_e2d_ref,
                        ctx_ref, dec_ref, ct_ref,
                        h_scratch, c_scratch, gx_scratch):
    """One (batch_block, time_chunk) grid step of the packed-LSTM recurrence."""
    Tt, Bt, E = embeds_ref.shape           # time chunk, batch block, embedding size
    Hp = ct_ref.shape[-1]                  # padded hidden size (lane-aligned)
    bi = pl.program_id(0)                  # batch-block index (parallel axis)
    tc = pl.program_id(1)                  # time-chunk index (serial axis)

    @pl.when(tc == 0)
    def _init():
        h_scratch[...] = jnp.zeros_like(h_scratch)
        c_scratch[...] = jnp.zeros_like(c_scratch)

    chunk_start = tc * Tt
    # Skip chunks that lie entirely past every sequence in this batch block.
    active = chunk_start < blk_max_ref[bi]

    @pl.when(jnp.logical_not(active))
    def _dead_chunk():
        # pad_packed_sequence pads with zeros; h/c stay frozen in scratch.
        ctx_ref[...] = jnp.zeros_like(ctx_ref)

    @pl.when(active)
    def _compute():
        # Hoisted input projection: one big bf16 MXU matmul for the whole chunk
        # (no recurrent dependence), f32 accumulation, bias folded in once.
        # Staged in VMEM so the unrolled loop only keeps one step's gates live.
        x2d = embeds_ref[...].reshape(Tt * Bt, E)                     # bf16
        gx_scratch[...] = (
            jnp.dot(x2d, w_ih_ref[...], preferred_element_type=jnp.float32)
            + b_ref[...])                                             # (Tt*Bt, 4Hp) f32

        w_hh = w_hh_ref[...]                                          # (Hp, 4Hp) bf16
        lens = lengths_ref[...]                                       # (Bt, 1) int32
        h = h_scratch[...]                                            # f32 state
        c = c_scratch[...]

        # Unrolled recurrence over the chunk: only h @ W_hh (bf16 in, f32 acc)
        # per step; all gate math stays in f32.
        for j in range(Tt):
            t = chunk_start + j
            gates = gx_scratch[pl.ds(j * Bt, Bt), :] + jnp.dot(
                h.astype(jnp.bfloat16), w_hh,
                preferred_element_type=jnp.float32)                   # (Bt, 4Hp) f32
            i_g = jax.nn.sigmoid(gates[:, 0 * Hp:1 * Hp])
            f_g = jax.nn.sigmoid(gates[:, 1 * Hp:2 * Hp])
            g_g = jnp.tanh(gates[:, 2 * Hp:3 * Hp])
            o_g = jax.nn.sigmoid(gates[:, 3 * Hp:4 * Hp])
            c_new = f_g * c + i_g * g_g
            h_new = o_g * jnp.tanh(c_new)

            valid = t < lens                                          # (Bt, 1) bool
            # Batch-major ctx store: sublane-strided, lane-dense (Hp = 128k).
            ctx_ref[:, j, :] = jnp.where(valid, h_new, 0.0)
            # packed LSTM: states freeze once a sequence is exhausted.
            h = jnp.where(valid, h_new, h)
            c = jnp.where(valid, c_new, c)

        h_scratch[...] = h
        c_scratch[...] = c

    # dec/ct revisit the same output block across the serial time axis; only
    # the final write is flushed to HBM.
    @pl.when(tc == pl.num_programs(1) - 1)
    def _finalize():
        h = h_scratch[...]
        dec_ref[...] = jnp.tanh(
            jnp.dot(h.astype(jnp.bfloat16), w_e2d_ref[...],
                    preferred_element_type=jnp.float32) + b_e2d_ref[...])
        ct_ref[...] = c_scratch[...]


def encoder_lstm_forward(inputs, lengths, params, *, t_chunk=32, b_block=None):
    """inputs: (B, T) int32 token ids. lengths: (B,) int32 (sorted descending,
    as pack_padded_sequence requires). Returns (ctx, decoder_init, c_t)."""
    emb_table = params["embedding"]                       # (V, E)
    B, T = inputs.shape
    E = emb_table.shape[1]
    H = params["w_hh"].shape[0]

    # Lane / sublane aligned padded sizes (Bt multiple of 16 for bf16 packing).
    Hp = _round_up(H, 128)
    G4 = 4 * Hp
    if b_block is None:
        # Big M for the recurrent matmul; on v7x pick b_block so nb >= 2 when
        # the batch allows, to shard the parallel axis over both TensorCores.
        Bt = min(_round_up(B, 16), 128)
    else:
        Bt = _round_up(b_block, 16)
    Bp = _round_up(B, Bt)
    nb = Bp // Bt

    # Balance chunk length against T (avoid over-padding the time axis).
    Tt_max = max(8, _round_up(int(t_chunk), 8))
    n_chunks = -(-T // Tt_max)
    Tt = _round_up(-(-T // n_chunks), 8)
    Tp = Tt * n_chunks
    nt = n_chunks

    # ---- glue done in XLA: embedding gather (time-major, bf16, unpadded E) ----
    ids = jnp.pad(inputs.astype(jnp.int32), ((0, Bp - B), (0, Tp - T)))
    # TODO(synk): in-kernel DMA gather from an HBM-resident table would remove
    # this activation's HBM round trip entirely; left in XLA (bf16) for now.
    embeds_tm = jnp.take(emb_table.astype(jnp.bfloat16), ids.T, axis=0)  # (Tp,Bp,E)
    # TODO(synk): training-mode dropout (p > 0) not implemented; eval-mode identity.

    lens_p = jnp.pad(lengths.astype(jnp.int32), (0, Bp - B))
    lens_col = lens_p.reshape(Bp, 1)
    blk_max = lens_p.reshape(nb, Bt).max(axis=1)          # (nb,) per-block max length

    # Gate-aligned, lane-padded weights (zero padding keeps the math exact).
    bf16 = jnp.bfloat16
    w_ih = _pad_gate_cols(params["w_ih"], H, Hp).astype(bf16)                  # (E, 4Hp)
    w_hh = jnp.pad(_pad_gate_cols(params["w_hh"], H, Hp),
                   ((0, Hp - H), (0, 0))).astype(bf16)                         # (Hp, 4Hp)
    bias = _pad_gate_cols((params["b_ih"] + params["b_hh"]).reshape(1, 4 * H),
                          H, Hp)                                               # f32
    w_e2d = jnp.pad(params["w_e2d"], ((0, Hp - H), (0, Hp - H))).astype(bf16)  # (Hp, Hp)
    b_e2d = jnp.pad(params["b_e2d"].reshape(1, H), ((0, 0), (0, Hp - H)))      # f32

    out_shapes = (
        jax.ShapeDtypeStruct((Bp, Tp, Hp), jnp.float32),  # ctx (batch-major)
        jax.ShapeDtypeStruct((Bp, Hp), jnp.float32),      # decoder_init
        jax.ShapeDtypeStruct((Bp, Hp), jnp.float32),      # c_t
    )

    # Explicit VMEM budget (bytes): chunks double-buffered, weights, scratch.
    est_vmem = (
        2 * Tt * Bt * E * 2            # embeds chunk (bf16, double buffered)
        + 2 * Bt * Tt * Hp * 4         # ctx chunk (f32, double buffered)
        + 4 * Bt * Hp * 4              # dec + ct output buffers
        + 2 * (E + Hp) * G4 * 2        # W_ih + W_hh (bf16)
        + 2 * Hp * Hp * 2              # W_e2d (bf16)
        + 2 * (G4 + Hp) * 4            # biases (f32)
        + Tt * Bt * G4 * 4             # gx scratch
        + 2 * Bt * Hp * 4              # h, c scratch
    )
    vmem_limit = int(min(64 * 1024 * 1024, max(32 * 1024 * 1024, 2 * est_vmem)))

    grid_spec = pltpu.PrefetchScalarGridSpec(
        num_scalar_prefetch=1,                            # blk_max -> SMEM
        grid=(nb, nt),
        in_specs=[
            pl.BlockSpec((Tt, Bt, E), lambda bi, tc, bm: (tc, bi, 0)),   # embeds chunk
            pl.BlockSpec((Bt, 1), lambda bi, tc, bm: (bi, 0)),           # lengths
            pl.BlockSpec((E, G4), lambda bi, tc, bm: (0, 0)),            # W_ih (resident)
            pl.BlockSpec((Hp, G4), lambda bi, tc, bm: (0, 0)),           # W_hh (resident)
            pl.BlockSpec((1, G4), lambda bi, tc, bm: (0, 0)),            # bias
            pl.BlockSpec((Hp, Hp), lambda bi, tc, bm: (0, 0)),           # encoder2decoder W
            pl.BlockSpec((1, Hp), lambda bi, tc, bm: (0, 0)),            # encoder2decoder b
        ],
        out_specs=[
            pl.BlockSpec((Bt, Tt, Hp), lambda bi, tc, bm: (bi, tc, 0)),  # ctx chunk
            pl.BlockSpec((Bt, Hp), lambda bi, tc, bm: (bi, 0)),          # decoder_init
            pl.BlockSpec((Bt, Hp), lambda bi, tc, bm: (bi, 0)),          # c_t
        ],
        scratch_shapes=[
            pltpu.VMEM((Bt, Hp), jnp.float32),                           # h (persists)
            pltpu.VMEM((Bt, Hp), jnp.float32),                           # c (persists)
            pltpu.VMEM((Tt * Bt, G4), jnp.float32),                      # staged gx
        ],
    )

    ctx_p, dec_p, ct_p = pl.pallas_call(
        encoder_lstm_kernel,
        out_shape=out_shapes,
        grid_spec=grid_spec,
        compiler_params=pltpu.CompilerParams(
            dimension_semantics=("parallel", "arbitrary"),
            vmem_limit_bytes=vmem_limit),
    )(blk_max, embeds_tm, lens_col, w_ih, w_hh, bias, w_e2d, b_e2d)

    # Slice off padding; ctx is already batch-major (no activation transpose).
    return ctx_p[:B, :T, :H], dec_p[:B, :H], ct_p[:B, :H]


def reference_forward(inputs, lengths, params, *, operand_dtype=jnp.float32):
    """Pure-JAX reference. operand_dtype=bfloat16 mirrors the kernel's matmul
    precision (bf16 operands, f32 accumulation, f32 gate/state math);
    operand_dtype=float32 is the original module's arithmetic."""
    B, T = inputs.shape
    H = params["w_hh"].shape[0]
    dt = operand_dtype
    embeds = jnp.take(params["embedding"], inputs, axis=0).astype(dt)  # (B, T, E)
    w_ih = params["w_ih"].astype(dt)
    w_hh = params["w_hh"].astype(dt)
    w_e2d = params["w_e2d"].astype(dt)
    b = (params["b_ih"] + params["b_hh"]).reshape(1, 4 * H)
    b_e2d = params["b_e2d"].reshape(1, H)

    def step(carry, xt_t):
        h, c = carry
        x, t = xt_t
        gates = (jnp.dot(x, w_ih, preferred_element_type=jnp.float32)
                 + jnp.dot(h.astype(dt), w_hh, preferred_element_type=jnp.float32)
                 + b)
        i = jax.nn.sigmoid(gates[:, 0 * H:1 * H])
        f = jax.nn.sigmoid(gates[:, 1 * H:2 * H])
        g = jnp.tanh(gates[:, 2 * H:3 * H])
        o = jax.nn.sigmoid(gates[:, 3 * H:4 * H])
        c_new = f * c + i * g
        h_new = o * jnp.tanh(c_new)
        valid = (t < lengths)[:, None]
        ctx_t = jnp.where(valid, h_new, 0.0)
        h = jnp.where(valid, h_new, h)
        c = jnp.where(valid, c_new, c)
        return (h, c), ctx_t

    xs = (jnp.transpose(embeds, (1, 0, 2)), jnp.arange(T))
    (h_t, c_t), ctx_tbe = jax.lax.scan(
        step,
        (jnp.zeros((B, H), jnp.float32), jnp.zeros((B, H), jnp.float32)),
        xs)
    dec = jnp.tanh(jnp.dot(h_t.astype(dt), w_e2d,
                           preferred_element_type=jnp.float32) + b_e2d)
    return jnp.transpose(ctx_tbe, (1, 0, 2)), dec, c_t


def make_params(key, vocab_size, embedding_size, hidden_size, padding_idx):
    E, H = embedding_size, hidden_size
    k = 1.0 / np.sqrt(H)
    keys = jax.random.split(key, 8)
    emb = jax.random.normal(keys[0], (vocab_size, E), jnp.float32)
    emb = emb.at[padding_idx].set(0.0)                    # nn.Embedding padding_idx
    u = lambda kk, shape: jax.random.uniform(kk, shape, jnp.float32, -k, k)
    return {
        "embedding": emb,
        "w_ih": u(keys[1], (E, 4 * H)),
        "w_hh": u(keys[2], (H, 4 * H)),
        "b_ih": u(keys[3], (4 * H,)),
        "b_hh": u(keys[4], (4 * H,)),
        "w_e2d": u(keys[5], (H, H)),
        "b_e2d": u(keys[6], (H,)),
    }


if __name__ == "__main__":
    VOCAB, E, H, PAD = 100, 32, 32, 0

    key = jax.random.PRNGKey(0)
    pkey, k1, k2, k3 = jax.random.split(key, 4)
    params = make_params(pkey, VOCAB, E, H, PAD)

    def run_case(ikey, B, T, lengths, **kw):
        lengths = jnp.asarray(lengths, dtype=jnp.int32)
        inputs = jax.random.randint(ikey, (B, T), 1, VOCAB, dtype=jnp.int32)
        pad_mask = jnp.arange(T)[None, :] < lengths[:, None]
        inputs = jnp.where(pad_mask, inputs, PAD)         # zero-pad past each length

        fwd = jax.jit(functools.partial(encoder_lstm_forward, params=params, **kw))
        ctx, dec, c_t = fwd(inputs, lengths)
        jax.block_until_ready((ctx, dec, c_t))

        # Kernel-math check: reference with the same bf16 matmul operands.
        ctx_b, dec_b, c_b = reference_forward(inputs, lengths, params,
                                              operand_dtype=jnp.bfloat16)
        for got, want in ((ctx, ctx_b), (dec, dec_b), (c_t, c_b)):
            np.testing.assert_allclose(np.asarray(got), np.asarray(want),
                                       rtol=1e-2, atol=1e-2)
        # Module-fidelity check: pure f32 reference, bf16-rounding tolerance.
        ctx_f, dec_f, c_f = reference_forward(inputs, lengths, params,
                                              operand_dtype=jnp.float32)
        for got, want in ((ctx, ctx_f), (dec, dec_f), (c_t, c_f)):
            np.testing.assert_allclose(np.asarray(got), np.asarray(want),
                                       rtol=5e-2, atol=5e-2)

    # Case 1: serial multi-chunk time axis (T=20 -> 3 chunks of 8).
    run_case(k1, B=2, T=20, lengths=[20, 13], t_chunk=8)
    # Case 2: two batch blocks (B=20, Bt=16) and a fully dead time chunk for the
    # second block (its max length 3 < the second chunk's start t=8).
    run_case(k2, B=20, T=13,
             lengths=[13, 13, 12, 11, 10, 9, 8, 7, 7, 6,
                      6, 5, 5, 4, 4, 3, 3, 2, 2, 2],
             b_block=16, t_chunk=8)
    # Case 3: default tiling (t_chunk=32 -> two balanced chunks of 24 for T=40).
    run_case(k3, B=3, T=40, lengths=[40, 25, 9])

    print("KERNEL_OK")
</pallas_src>

<mosaic_0001>
module attributes {stable_mosaic.version = 11 : i64} {
  func.func @encoder_lstm_kernel(%arg0: i32, %arg1: i32, %arg2: memref<1xi32, #tpu.memory_space<smem>>, %arg3: memref<8x16x32xbf16, #tpu.memory_space<vmem>>, %arg4: memref<16x1xi32, #tpu.memory_space<vmem>>, %arg5: memref<32x512xbf16, #tpu.memory_space<vmem>>, %arg6: memref<128x512xbf16, #tpu.memory_space<vmem>>, %arg7: memref<1x512xf32, #tpu.memory_space<vmem>>, %arg8: memref<128x128xbf16, #tpu.memory_space<vmem>>, %arg9: memref<1x128xf32, #tpu.memory_space<vmem>>, %arg10: memref<16x8x128xf32, #tpu.memory_space<vmem>>, %arg11: memref<16x128xf32, #tpu.memory_space<vmem>>, %arg12: memref<16x128xf32, #tpu.memory_space<vmem>>, %arg13: memref<16x128xf32, #tpu.memory_space<vmem>>, %arg14: memref<16x128xf32, #tpu.memory_space<vmem>>, %arg15: memref<128x512xf32, #tpu.memory_space<vmem>>) attributes {dimension_semantics = [#tpu.dimension_semantics<parallel>, #tpu.dimension_semantics<arbitrary>], iteration_bounds = array<i64: 1, 3>, scalar_prefetch = 1 : i64, scratch_operands = 3 : i64, tpu.core_type = #tpu.core_type<tc>, window_params = [{transform_indices = @transform_0, window_bounds = array<i64: 8, 16, 32>}, {transform_indices = @transform_1, window_bounds = array<i64: 16, 1>}, {pipeline_mode = #tpu.pipeline_mode<synchronous>, transform_indices = @transform_2, window_bounds = array<i64: 32, 512>}, {pipeline_mode = #tpu.pipeline_mode<synchronous>, transform_indices = @transform_3, window_bounds = array<i64: 128, 512>}, {pipeline_mode = #tpu.pipeline_mode<synchronous>, transform_indices = @transform_4, window_bounds = array<i64: 1, 512>}, {pipeline_mode = #tpu.pipeline_mode<synchronous>, transform_indices = @transform_5, window_bounds = array<i64: 128, 128>}, {pipeline_mode = #tpu.pipeline_mode<synchronous>, transform_indices = @transform_6, window_bounds = array<i64: 1, 128>}, {transform_indices = @transform_7, window_bounds = array<i64: 16, 8, 128>}, {transform_indices = @transform_8, window_bounds = array<i64: 16, 128>}, {transform_indices = @transform_9, window_bounds = array<i64: 16, 128>}]} {
    %c0_i32 = arith.constant 0 : i32
    %0 = arith.cmpi eq, %arg1, %c0_i32 : i32
    %1 = arith.extui %0 : i1 to i32
    %c0_i32_0 = arith.constant 0 : i32
    %2 = arith.cmpi ne, %1, %c0_i32_0 : i32
    scf.if %2 {
      %cst = arith.constant 0.000000e+00 : f32
      %15 = vector.broadcast %cst : f32 to vector<16x128xf32>
      %c0 = arith.constant 0 : index
      %c0_4 = arith.constant 0 : index
      %16 = vector.load %arg13[%c0, %c0_4] : memref<16x128xf32, #tpu.memory_space<vmem>>, vector<16x128xf32>
      tpu.vector_store %arg13[%c0, %c0_4], %15 {strides = array<i32>} : memref<16x128xf32, #tpu.memory_space<vmem>>, vector<16x128xf32>,
      %cst_5 = arith.constant 0.000000e+00 : f32
      %17 = vector.broadcast %cst_5 : f32 to vector<16x128xf32>
      %c0_6 = arith.constant 0 : index
      %c0_7 = arith.constant 0 : index
      %18 = vector.load %arg14[%c0_6, %c0_7] : memref<16x128xf32, #tpu.memory_space<vmem>>, vector<16x128xf32>
      tpu.vector_store %arg14[%c0_6, %c0_7], %17 {strides = array<i32>} : memref<16x128xf32, #tpu.memory_space<vmem>>, vector<16x128xf32>,
    } else {
    }
    %c8_i32 = arith.constant 8 : i32
    %3 = arith.muli %arg1, %c8_i32 : i32
    %4 = arith.index_cast %arg0 : i32 to index
    %5 = memref.load %arg2[%4] : memref<1xi32, #tpu.memory_space<smem>>
    %6 = arith.cmpi slt, %3, %5 : i32
    %true = arith.constant true
    %7 = arith.xori %6, %true : i1
    %8 = arith.extui %7 : i1 to i32
    %c0_i32_1 = arith.constant 0 : i32
    %9 = arith.cmpi ne, %8, %c0_i32_1 : i32
    scf.if %9 {
      %cst = arith.constant 0.000000e+00 : f32
      %15 = vector.broadcast %cst : f32 to vector<16x8x128xf32>
      %c0 = arith.constant 0 : index
      %c0_4 = arith.constant 0 : index
      %c0_5 = arith.constant 0 : index
      %16 = vector.load %arg10[%c0, %c0_4, %c0_5] : memref<16x8x128xf32, #tpu.memory_space<vmem>>, vector<16x8x128xf32>
      tpu.vector_store %arg10[%c0, %c0_4, %c0_5], %15 {strides = array<i32>} : memref<16x8x128xf32, #tpu.memory_space<vmem>>, vector<16x8x128xf32>,
    } else {
    }
    %10 = arith.extui %6 : i1 to i32
    %c0_i32_2 = arith.constant 0 : i32
    %11 = arith.cmpi ne, %10, %c0_i32_2 : i32
    scf.if %11 {
      %c0 = arith.constant 0 : index
      %c0_4 = arith.constant 0 : index
      %c0_5 = arith.constant 0 : index
      %15 = vector.load %arg3[%c0, %c0_4, %c0_5] : memref<8x16x32xbf16, #tpu.memory_space<vmem>>, vector<8x16x32xbf16>
      %16 = vector.shape_cast %15 : vector<8x16x32xbf16> to vector<128x32xbf16>
      %c0_6 = arith.constant 0 : index
      %c0_7 = arith.constant 0 : index
      %17 = vector.load %arg5[%c0_6, %c0_7] : memref<32x512xbf16, #tpu.memory_space<vmem>>, vector<32x512xbf16>
      %cst = arith.constant dense<0.000000e+00> : vector<128x512xf32>
      %18 = tpu.matmul %16, %17, %cst {dimension_numbers = #tpu.dot_dimension_numbers<[1], [0], [0], [1], [0, 0, 1, 1], [], []>} : vector<128x32xbf16>, vector<32x512xbf16>, vector<128x512xf32> -> vector<128x512xf32>
      %c0_8 = arith.constant 0 : index
      %c0_9 = arith.constant 0 : index
      %19 = vector.load %arg7[%c0_8, %c0_9] : memref<1x512xf32, #tpu.memory_space<vmem>>, vector<1x512xf32>
      %20 = vector.broadcast %19 : vector<1x512xf32> to vector<128x512xf32>
      %21 = arith.addf %18, %20 : vector<128x512xf32>
      %c0_10 = arith.constant 0 : index
      %c0_11 = arith.constant 0 : index
      %22 = vector.load %arg15[%c0_10, %c0_11] : memref<128x512xf32, #tpu.memory_space<vmem>>, vector<128x512xf32>
      tpu.vector_store %arg15[%c0_10, %c0_11], %21 {strides = array<i32>} : memref<128x512xf32, #tpu.memory_space<vmem>>, vector<128x512xf32>,
      %c0_12 = arith.constant 0 : index
      %c0_13 = arith.constant 0 : index
      %23 = vector.load %arg6[%c0_12, %c0_13] : memref<128x512xbf16, #tpu.memory_space<vmem>>, vector<128x512xbf16>
      %c0_14 = arith.constant 0 : index
      %c0_15 = arith.constant 0 : index
      %24 = vector.load %arg4[%c0_14, %c0_15] : memref<16x1xi32, #tpu.memory_space<vmem>>, vector<16x1xi32>
      %c0_16 = arith.constant 0 : index
      %c0_17 = arith.constant 0 : index
      %25 = vector.load %arg13[%c0_16, %c0_17] : memref<16x128xf32, #tpu.memory_space<vmem>>, vector<16x128xf32>
      %c0_18 = arith.constant 0 : index
      %c0_19 = arith.constant 0 : index
      %26 = vector.load %arg14[%c0_18, %c0_19] : memref<16x128xf32, #tpu.memory_space<vmem>>, vector<16x128xf32>
      %c0_i32_20 = arith.constant 0 : i32
      %27 = arith.addi %3, %c0_i32_20 : i32
      %c0_21 = arith.constant 0 : index
      %c0_22 = arith.constant 0 : index
      %28 = vector.load %arg15[%c0_21, %c0_22] : memref<128x512xf32, #tpu.memory_space<vmem>>, vector<16x512xf32>
      %29 = arith.truncf %25 : vector<16x128xf32> to vector<16x128xbf16>
      %cst_23 = arith.constant dense<0.000000e+00> : vector<16x512xf32>
      %30 = tpu.matmul %29, %23, %cst_23 {dimension_numbers = #tpu.dot_dimension_numbers<[1], [0], [0], [1], [0, 0, 1, 1], [], []>} : vector<16x128xbf16>, vector<128x512xbf16>, vector<16x512xf32> -> vector<16x512xf32>
      %31 = arith.addf %28, %30 : vector<16x512xf32>
      %32 = vector.extract_strided_slice %31 {offsets = [0, 0], sizes = [16, 128], strides = [1, 1]} : vector<16x512xf32> to vector<16x128xf32>
      %33 = arith.negf %32 : vector<16x128xf32>
      %34 = math.exp %33 : vector<16x128xf32>
      %cst_24 = arith.constant 1.000000e+00 : f32
      %35 = vector.broadcast %cst_24 : f32 to vector<16x128xf32>
      %36 = arith.addf %35, %34 : vector<16x128xf32>
      %37 = arith.divf %35, %36 : vector<16x128xf32>
      %38 = vector.extract_strided_slice %31 {offsets = [0, 128], sizes = [16, 128], strides = [1, 1]} : vector<16x512xf32> to vector<16x128xf32>
      %39 = arith.negf %38 : vector<16x128xf32>
      %40 = math.exp %39 : vector<16x128xf32>
      %cst_25 = arith.constant 1.000000e+00 : f32
      %41 = vector.broadcast %cst_25 : f32 to vector<16x128xf32>
      %42 = arith.addf %41, %40 : vector<16x128xf32>
      %43 = arith.divf %41, %42 : vector<16x128xf32>
      %44 = vector.extract_strided_slice %31 {offsets = [0, 256], sizes = [16, 128], strides = [1, 1]} : vector<16x512xf32> to vector<16x128xf32>
      %45 = math.tanh %44 : vector<16x128xf32>
      %46 = vector.extract_strided_slice %31 {offsets = [0, 384], sizes = [16, 128], strides = [1, 1]} : vector<16x512xf32> to vector<16x128xf32>
      %47 = arith.negf %46 : vector<16x128xf32>
      %48 = math.exp %47 : vector<16x128xf32>
      %cst_26 = arith.constant 1.000000e+00 : f32
      %49 = vector.broadcast %cst_26 : f32 to vector<16x128xf32>
      %50 = arith.addf %49, %48 : vector<16x128xf32>
      %51 = arith.divf %49, %50 : vector<16x128xf32>
      %52 = arith.mulf %43, %26 : vector<16x128xf32>
      %53 = arith.mulf %37, %45 : vector<16x128xf32>
      %54 = arith.addf %52, %53 : vector<16x128xf32>
      %55 = math.tanh %54 : vector<16x128xf32>
      %56 = arith.mulf %51, %55 : vector<16x128xf32>
      %57 = vector.broadcast %27 : i32 to vector<16x1xi32>
      %58 = arith.cmpi slt, %57, %24 : vector<16x1xi32>
      %cst_27 = arith.constant 0.000000e+00 : f32
      %59 = vector.shape_cast %58 : vector<16x1xi1> to vector<16x1xi1>
      %60 = vector.broadcast %59 : vector<16x1xi1> to vector<16x128xi1>
      %61 = vector.broadcast %cst_27 : f32 to vector<16x128xf32>
      %62 = arith.select %60, %56, %61 : vector<16x128xi1>, vector<16x128xf32>
      %c0_28 = arith.constant 0 : index
      %c0_29 = arith.constant 0 : index
      %c0_30 = arith.constant 0 : index
      %63 = vector.load %arg10[%c0_28, %c0_29, %c0_30] : memref<16x8x128xf32, #tpu.memory_space<vmem>>, vector<16x1x128xf32>
      %64 = vector.shape_cast %63 : vector<16x1x128xf32> to vector<16x128xf32>
      %65 = vector.shape_cast %62 : vector<16x128xf32> to vector<16x1x128xf32>
      tpu.vector_store %arg10[%c0_28, %c0_29, %c0_30], %65 {strides = array<i32>} : memref<16x8x128xf32, #tpu.memory_space<vmem>>, vector<16x1x128xf32>,
      %66 = vector.shape_cast %58 : vector<16x1xi1> to vector<16x1xi1>
      %67 = vector.broadcast %66 : vector<16x1xi1> to vector<16x128xi1>
      %68 = arith.select %67, %56, %25 : vector<16x128xi1>, vector<16x128xf32>
      %69 = vector.shape_cast %58 : vector<16x1xi1> to vector<16x1xi1>
      %70 = vector.broadcast %69 : vector<16x1xi1> to vector<16x128xi1>
      %71 = arith.select %70, %54, %26 : vector<16x128xi1>, vector<16x128xf32>
      %c1_i32 = arith.constant 1 : i32
      %72 = arith.addi %3, %c1_i32 : i32
      %c16 = arith.constant 16 : index
      %c0_31 = arith.constant 0 : index
      %73 = vector.load %arg15[%c16, %c0_31] : memref<128x512xf32, #tpu.memory_space<vmem>>, vector<16x512xf32>
      %74 = arith.truncf %68 : vector<16x128xf32> to vector<16x128xbf16>
      %cst_32 = arith.constant dense<0.000000e+00> : vector<16x512xf32>
      %75 = tpu.matmul %74, %23, %cst_32 {dimension_numbers = #tpu.dot_dimension_numbers<[1], [0], [0], [1], [0, 0, 1, 1], [], []>} : vector<16x128xbf16>, vector<128x512xbf16>, vector<16x512xf32> -> vector<16x512xf32>
      %76 = arith.addf %73, %75 : vector<16x512xf32>
      %77 = vector.extract_strided_slice %76 {offsets = [0, 0], sizes = [16, 128], strides = [1, 1]} : vector<16x512xf32> to vector<16x128xf32>
      %78 = arith.negf %77 : vector<16x128xf32>
      %79 = math.exp %78 : vector<16x128xf32>
      %cst_33 = arith.constant 1.000000e+00 : f32
      %80 = vector.broadcast %cst_33 : f32 to vector<16x128xf32>
      %81 = arith.addf %80, %79 : vector<16x128xf32>
      %82 = arith.divf %80, %81 : vector<16x128xf32>
      %83 = vector.extract_strided_slice %76 {offsets = [0, 128], sizes = [16, 128], strides = [1, 1]} : vector<16x512xf32> to vector<16x128xf32>
      %84 = arith.negf %83 : vector<16x128xf32>
      %85 = math.exp %84 : vector<16x128xf32>
      %cst_34 = arith.constant 1.000000e+00 : f32
      %86 = vector.broadcast %cst_34 : f32 to vector<16x128xf32>
      %87 = arith.addf %86, %85 : vector<16x128xf32>
      %88 = arith.divf %86, %87 : vector<16x128xf32>
      %89 = vector.extract_strided_slice %76 {offsets = [0, 256], sizes = [16, 128], strides = [1, 1]} : vector<16x512xf32> to vector<16x128xf32>
      %90 = math.tanh %89 : vector<16x128xf32>
      %91 = vector.extract_strided_slice %76 {offsets = [0, 384], sizes = [16, 128], strides = [1, 1]} : vector<16x512xf32> to vector<16x128xf32>
      %92 = arith.negf %91 : vector<16x128xf32>
      %93 = math.exp %92 : vector<16x128xf32>
      %cst_35 = arith.constant 1.000000e+00 : f32
      %94 = vector.broadcast %cst_35 : f32 to vector<16x128xf32>
      %95 = arith.addf %94, %93 : vector<16x128xf32>
      %96 = arith.divf %94, %95 : vector<16x128xf32>
      %97 = arith.mulf %88, %71 : vector<16x128xf32>
      %98 = arith.mulf %82, %90 : vector<16x128xf32>
      %99 = arith.addf %97, %98 : vector<16x128xf32>
      %100 = math.tanh %99 : vector<16x128xf32>
      %101 = arith.mulf %96, %100 : vector<16x128xf32>
      %102 = vector.broadcast %72 : i32 to vector<16x1xi32>
      %103 = arith.cmpi slt, %102, %24 : vector<16x1xi32>
      %cst_36 = arith.constant 0.000000e+00 : f32
      %104 = vector.shape_cast %103 : vector<16x1xi1> to vector<16x1xi1>
      %105 = vector.broadcast %104 : vector<16x1xi1> to vector<16x128xi1>
      %106 = vector.broadcast %cst_36 : f32 to vector<16x128xf32>
      %107 = arith.select %105, %101, %106 : vector<16x128xi1>, vector<16x128xf32>
      %c0_37 = arith.constant 0 : index
      %c1 = arith.constant 1 : index
      %c0_38 = arith.constant 0 : index
      %108 = vector.load %arg10[%c0_37, %c1, %c0_38] : memref<16x8x128xf32, #tpu.memory_space<vmem>>, vector<16x1x128xf32>
      %109 = vector.shape_cast %108 : vector<16x1x128xf32> to vector<16x128xf32>
      %110 = vector.shape_cast %107 : vector<16x128xf32> to vector<16x1x128xf32>
      tpu.vector_store %arg10[%c0_37, %c1, %c0_38], %110 {strides = array<i32>} : memref<16x8x128xf32, #tpu.memory_space<vmem>>, vector<16x1x128xf32>,
      %111 = vector.shape_cast %103 : vector<16x1xi1> to vector<16x1xi1>
      %112 = vector.broadcast %111 : vector<16x1xi1> to vector<16x128xi1>
      %113 = arith.select %112, %101, %68 : vector<16x128xi1>, vector<16x128xf32>
      %114 = vector.shape_cast %103 : vector<16x1xi1> to vector<16x1xi1>
      %115 = vector.broadcast %114 : vector<16x1xi1> to vector<16x128xi1>
      %116 = arith.select %115, %99, %71 : vector<16x128xi1>, vector<16x128xf32>
      %c2_i32_39 = arith.constant 2 : i32
      %117 = arith.addi %3, %c2_i32_39 : i32
      %c32 = arith.constant 32 : index
      %c0_40 = arith.constant 0 : index
      %118 = vector.load %arg15[%c32, %c0_40] : memref<128x512xf32, #tpu.memory_space<vmem>>, vector<16x512xf32>
      %119 = arith.truncf %113 : vector<16x128xf32> to vector<16x128xbf16>
      %cst_41 = arith.constant dense<0.000000e+00> : vector<16x512xf32>
      %120 = tpu.matmul %119, %23, %cst_41 {dimension_numbers = #tpu.dot_dimension_numbers<[1], [0], [0], [1], [0, 0, 1, 1], [], []>} : vector<16x128xbf16>, vector<128x512xbf16>, vector<16x512xf32> -> vector<16x512xf32>
      %121 = arith.addf %118, %120 : vector<16x512xf32>
      %122 = vector.extract_strided_slice %121 {offsets = [0, 0], sizes = [16, 128], strides = [1, 1]} : vector<16x512xf32> to vector<16x128xf32>
      %123 = arith.negf %122 : vector<16x128xf32>
      %124 = math.exp %123 : vector<16x128xf32>
      %cst_42 = arith.constant 1.000000e+00 : f32
      %125 = vector.broadcast %cst_42 : f32 to vector<16x128xf32>
      %126 = arith.addf %125, %124 : vector<16x128xf32>
      %127 = arith.divf %125, %126 : vector<16x128xf32>
      %128 = vector.extract_strided_slice %121 {offsets = [0, 128], sizes = [16, 128], strides = [1, 1]} : vector<16x512xf32> to vector<16x128xf32>
      %129 = arith.negf %128 : vector<16x128xf32>
      %130 = math.exp %129 : vector<16x128xf32>
      %cst_43 = arith.constant 1.000000e+00 : f32
      %131 = vector.broadcast %cst_43 : f32 to vector<16x128xf32>
      %132 = arith.addf %131, %130 : vector<16x128xf32>
      %133 = arith.divf %131, %132 : vector<16x128xf32>
      %134 = vector.extract_strided_slice %121 {offsets = [0, 256], sizes = [16, 128], strides = [1, 1]} : vector<16x512xf32> to vector<16x128xf32>
      %135 = math.tanh %134 : vector<16x128xf32>
      %136 = vector.extract_strided_slice %121 {offsets = [0, 384], sizes = [16, 128], strides = [1, 1]} : vector<16x512xf32> to vector<16x128xf32>
      %137 = arith.negf %136 : vector<16x128xf32>
      %138 = math.exp %137 : vector<16x128xf32>
      %cst_44 = arith.constant 1.000000e+00 : f32
      %139 = vector.broadcast %cst_44 : f32 to vector<16x128xf32>
      %140 = arith.addf %139, %138 : vector<16x128xf32>
      %141 = arith.divf %139, %140 : vector<16x128xf32>
      %142 = arith.mulf %133, %116 : vector<16x128xf32>
      %143 = arith.mulf %127, %135 : vector<16x128xf32>
      %144 = arith.addf %142, %143 : vector<16x128xf32>
      %145 = math.tanh %144 : vector<16x128xf32>
      %146 = arith.mulf %141, %145 : vector<16x128xf32>
      %147 = vector.broadcast %117 : i32 to vector<16x1xi32>
      %148 = arith.cmpi slt, %147, %24 : vector<16x1xi32>
      %cst_45 = arith.constant 0.000000e+00 : f32
      %149 = vector.shape_cast %148 : vector<16x1xi1> to vector<16x1xi1>
      %150 = vector.broadcast %149 : vector<16x1xi1> to vector<16x128xi1>
      %151 = vector.broadcast %cst_45 : f32 to vector<16x128xf32>
      %152 = arith.select %150, %146, %151 : vector<16x128xi1>, vector<16x128xf32>
      %c0_46 = arith.constant 0 : index
      %c2 = arith.constant 2 : index
      %c0_47 = arith.constant 0 : index
      %153 = vector.load %arg10[%c0_46, %c2, %c0_47] : memref<16x8x128xf32, #tpu.memory_space<vmem>>, vector<16x1x128xf32>
      %154 = vector.shape_cast %153 : vector<16x1x128xf32> to vector<16x128xf32>
      %155 = vector.shape_cast %152 : vector<16x128xf32> to vector<16x1x128xf32>
      tpu.vector_store %arg10[%c0_46, %c2, %c0_47], %155 {strides = array<i32>} : memref<16x8x128xf32, #tpu.memory_space<vmem>>, vector<16x1x128xf32>,
      %156 = vector.shape_cast %148 : vector<16x1xi1> to vector<16x1xi1>
      %157 = vector.broadcast %156 : vector<16x1xi1> to vector<16x128xi1>
      %158 = arith.select %157, %146, %113 : vector<16x128xi1>, vector<16x128xf32>
      %159 = vector.shape_cast %148 : vector<16x1xi1> to vector<16x1xi1>
      %160 = vector.broadcast %159 : vector<16x1xi1> to vector<16x128xi1>
      %161 = arith.select %160, %144, %116 : vector<16x128xi1>, vector<16x128xf32>
      %c3_i32 = arith.constant 3 : i32
      %162 = arith.addi %3, %c3_i32 : i32
      %c48 = arith.constant 48 : index
      %c0_48 = arith.constant 0 : index
      %163 = vector.load %arg15[%c48, %c0_48] : memref<128x512xf32, #tpu.memory_space<vmem>>, vector<16x512xf32>
      %164 = arith.truncf %158 : vector<16x128xf32> to vector<16x128xbf16>
      %cst_49 = arith.constant dense<0.000000e+00> : vector<16x512xf32>
      %165 = tpu.matmul %164, %23, %cst_49 {dimension_numbers = #tpu.dot_dimension_numbers<[1], [0], [0], [1], [0, 0, 1, 1], [], []>} : vector<16x128xbf16>, vector<128x512xbf16>, vector<16x512xf32> -> vector<16x512xf32>
      %166 = arith.addf %163, %165 : vector<16x512xf32>
      %167 = vector.extract_strided_slice %166 {offsets = [0, 0], sizes = [16, 128], strides = [1, 1]} : vector<16x512xf32> to vector<16x128xf32>
      %168 = arith.negf %167 : vector<16x128xf32>
      %169 = math.exp %168 : vector<16x128xf32>
      %cst_50 = arith.constant 1.000000e+00 : f32
      %170 = vector.broadcast %cst_50 : f32 to vector<16x128xf32>
      %171 = arith.addf %170, %169 : vector<16x128xf32>
      %172 = arith.divf %170, %171 : vector<16x128xf32>
      %173 = vector.extract_strided_slice %166 {offsets = [0, 128], sizes = [16, 128], strides = [1, 1]} : vector<16x512xf32> to vector<16x128xf32>
      %174 = arith.negf %173 : vector<16x128xf32>
      %175 = math.exp %174 : vector<16x128xf32>
      %cst_51 = arith.constant 1.000000e+00 : f32
      %176 = vector.broadcast %cst_51 : f32 to vector<16x128xf32>
      %177 = arith.addf %176, %175 : vector<16x128xf32>
      %178 = arith.divf %176, %177 : vector<16x128xf32>
      %179 = vector.extract_strided_slice %166 {offsets = [0, 256], sizes = [16, 128], strides = [1, 1]} : vector<16x512xf32> to vector<16x128xf32>
      %180 = math.tanh %179 : vector<16x128xf32>
      %181 = vector.extract_strided_slice %166 {offsets = [0, 384], sizes = [16, 128], strides = [1, 1]} : vector<16x512xf32> to vector<16x128xf32>
      %182 = arith.negf %181 : vector<16x128xf32>
      %183 = math.exp %182 : vector<16x128xf32>
      %cst_52 = arith.constant 1.000000e+00 : f32
      %184 = vector.broadcast %cst_52 : f32 to vector<16x128xf32>
      %185 = arith.addf %184, %183 : vector<16x128xf32>
      %186 = arith.divf %184, %185 : vector<16x128xf32>
      %187 = arith.mulf %178, %161 : vector<16x128xf32>
      %188 = arith.mulf %172, %180 : vector<16x128xf32>
      %189 = arith.addf %187, %188 : vector<16x128xf32>
      %190 = math.tanh %189 : vector<16x128xf32>
      %191 = arith.mulf %186, %190 : vector<16x128xf32>
      %192 = vector.broadcast %162 : i32 to vector<16x1xi32>
      %193 = arith.cmpi slt, %192, %24 : vector<16x1xi32>
      %cst_53 = arith.constant 0.000000e+00 : f32
      %194 = vector.shape_cast %193 : vector<16x1xi1> to vector<16x1xi1>
      %195 = vector.broadcast %194 : vector<16x1xi1> to vector<16x128xi1>
      %196 = vector.broadcast %cst_53 : f32 to vector<16x128xf32>
      %197 = arith.select %195, %191, %196 : vector<16x128xi1>, vector<16x128xf32>
      %c0_54 = arith.constant 0 : index
      %c3 = arith.constant 3 : index
      %c0_55 = arith.constant 0 : index
      %198 = vector.load %arg10[%c0_54, %c3, %c0_55] : memref<16x8x128xf32, #tpu.memory_space<vmem>>, vector<16x1x128xf32>
      %199 = vector.shape_cast %198 : vector<16x1x128xf32> to vector<16x128xf32>
      %200 = vector.shape_cast %197 : vector<16x128xf32> to vector<16x1x128xf32>
      tpu.vector_store %arg10[%c0_54, %c3, %c0_55], %200 {strides = array<i32>} : memref<16x8x128xf32, #tpu.memory_space<vmem>>, vector<16x1x128xf32>,
      %201 = vector.shape_cast %193 : vector<16x1xi1> to vector<16x1xi1>
      %202 = vector.broadcast %201 : vector<16x1xi1> to vector<16x128xi1>
      %203 = arith.select %202, %191, %158 : vector<16x128xi1>, vector<16x128xf32>
      %204 = vector.shape_cast %193 : vector<16x1xi1> to vector<16x1xi1>
      %205 = vector.broadcast %204 : vector<16x1xi1> to vector<16x128xi1>
      %206 = arith.select %205, %189, %161 : vector<16x128xi1>, vector<16x128xf32>
      %c4_i32 = arith.constant 4 : i32
      %207 = arith.addi %3, %c4_i32 : i32
      %c64 = arith.constant 64 : index
      %c0_56 = arith.constant 0 : index
      %208 = vector.load %arg15[%c64, %c0_56] : memref<128x512xf32, #tpu.memory_space<vmem>>, vector<16x512xf32>
      %209 = arith.truncf %203 : vector<16x128xf32> to vector<16x128xbf16>
      %cst_57 = arith.constant dense<0.000000e+00> : vector<16x512xf32>
      %210 = tpu.matmul %209, %23, %cst_57 {dimension_numbers = #tpu.dot_dimension_numbers<[1], [0], [0], [1], [0, 0, 1, 1], [], []>} : vector<16x128xbf16>, vector<128x512xbf16>, vector<16x512xf32> -> vector<16x512xf32>
      %211 = arith.addf %208, %210 : vector<16x512xf32>
      %212 = vector.extract_strided_slice %211 {offsets = [0, 0], sizes = [16, 128], strides = [1, 1]} : vector<16x512xf32> to vector<16x128xf32>
      %213 = arith.negf %212 : vector<16x128xf32>
      %214 = math.exp %213 : vector<16x128xf32>
      %cst_58 = arith.constant 1.000000e+00 : f32
      %215 = vector.broadcast %cst_58 : f32 to vector<16x128xf32>
      %216 = arith.addf %215, %214 : vector<16x128xf32>
      %217 = arith.divf %215, %216 : vector<16x128xf32>
      %218 = vector.extract_strided_slice %211 {offsets = [0, 128], sizes = [16, 128], strides = [1, 1]} : vector<16x512xf32> to vector<16x128xf32>
      %219 = arith.negf %218 : vector<16x128xf32>
      %220 = math.exp %219 : vector<16x128xf32>
      %cst_59 = arith.constant 1.000000e+00 : f32
      %221 = vector.broadcast %cst_59 : f32 to vector<16x128xf32>
      %222 = arith.addf %221, %220 : vector<16x128xf32>
      %223 = arith.divf %221, %222 : vector<16x128xf32>
      %224 = vector.extract_strided_slice %211 {offsets = [0, 256], sizes = [16, 128], strides = [1, 1]} : vector<16x512xf32> to vector<16x128xf32>
      %225 = math.tanh %224 : vector<16x128xf32>
      %226 = vector.extract_strided_slice %211 {offsets = [0, 384], sizes = [16, 128], strides = [1, 1]} : vector<16x512xf32> to vector<16x128xf32>
      %227 = arith.negf %226 : vector<16x128xf32>
      %228 = math.exp %227 : vector<16x128xf32>
      %cst_60 = arith.constant 1.000000e+00 : f32
      %229 = vector.broadcast %cst_60 : f32 to vector<16x128xf32>
      %230 = arith.addf %229, %228 : vector<16x128xf32>
      %231 = arith.divf %229, %230 : vector<16x128xf32>
      %232 = arith.mulf %223, %206 : vector<16x128xf32>
      %233 = arith.mulf %217, %225 : vector<16x128xf32>
      %234 = arith.addf %232, %233 : vector<16x128xf32>
      %235 = math.tanh %234 : vector<16x128xf32>
      %236 = arith.mulf %231, %235 : vector<16x128xf32>
      %237 = vector.broadcast %207 : i32 to vector<16x1xi32>
      %238 = arith.cmpi slt, %237, %24 : vector<16x1xi32>
      %cst_61 = arith.constant 0.000000e+00 : f32
      %239 = vector.shape_cast %238 : vector<16x1xi1> to vector<16x1xi1>
      %240 = vector.broadcast %239 : vector<16x1xi1> to vector<16x128xi1>
      %241 = vector.broadcast %cst_61 : f32 to vector<16x128xf32>
      %242 = arith.select %240, %236, %241 : vector<16x128xi1>, vector<16x128xf32>
      %c0_62 = arith.constant 0 : index
      %c4 = arith.constant 4 : index
      %c0_63 = arith.constant 0 : index
      %243 = vector.load %arg10[%c0_62, %c4, %c0_63] : memref<16x8x128xf32, #tpu.memory_space<vmem>>, vector<16x1x128xf32>
      %244 = vector.shape_cast %243 : vector<16x1x128xf32> to vector<16x128xf32>
      %245 = vector.shape_cast %242 : vector<16x128xf32> to vector<16x1x128xf32>
      tpu.vector_store %arg10[%c0_62, %c4, %c0_63], %245 {strides = array<i32>} : memref<16x8x128xf32, #tpu.memory_space<vmem>>, vector<16x1x128xf32>,
      %246 = vector.shape_cast %238 : vector<16x1xi1> to vector<16x1xi1>
      %247 = vector.broadcast %246 : vector<16x1xi1> to vector<16x128xi1>
      %248 = arith.select %247, %236, %203 : vector<16x128xi1>, vector<16x128xf32>
      %249 = vector.shape_cast %238 : vector<16x1xi1> to vector<16x1xi1>
      %250 = vector.broadcast %249 : vector<16x1xi1> to vector<16x128xi1>
      %251 = arith.select %250, %234, %206 : vector<16x128xi1>, vector<16x128xf32>
      %c5_i32 = arith.constant 5 : i32
      %252 = arith.addi %3, %c5_i32 : i32
      %c80 = arith.constant 80 : index
      %c0_64 = arith.constant 0 : index
      %253 = vector.load %arg15[%c80, %c0_64] : memref<128x512xf32, #tpu.memory_space<vmem>>, vector<16x512xf32>
      %254 = arith.truncf %248 : vector<16x128xf32> to vector<16x128xbf16>
      %cst_65 = arith.constant dense<0.000000e+00> : vector<16x512xf32>
      %255 = tpu.matmul %254, %23, %cst_65 {dimension_numbers = #tpu.dot_dimension_numbers<[1], [0], [0], [1], [0, 0, 1, 1], [], []>} : vector<16x128xbf16>, vector<128x512xbf16>, vector<16x512xf32> -> vector<16x512xf32>
      %256 = arith.addf %253, %255 : vector<16x512xf32>
      %257 = vector.extract_strided_slice %256 {offsets = [0, 0], sizes = [16, 128], strides = [1, 1]} : vector<16x512xf32> to vector<16x128xf32>
      %258 = arith.negf %257 : vector<16x128xf32>
      %259 = math.exp %258 : vector<16x128xf32>
      %cst_66 = arith.constant 1.000000e+00 : f32
      %260 = vector.broadcast %cst_66 : f32 to vector<16x128xf32>
      %261 = arith.addf %260, %259 : vector<16x128xf32>
      %262 = arith.divf %260, %261 : vector<16x128xf32>
      %263 = vector.extract_strided_slice %256 {offsets = [0, 128], sizes = [16, 128], strides = [1, 1]} : vector<16x512xf32> to vector<16x128xf32>
      %264 = arith.negf %263 : vector<16x128xf32>
      %265 = math.exp %264 : vector<16x128xf32>
      %cst_67 = arith.constant 1.000000e+00 : f32
      %266 = vector.broadcast %cst_67 : f32 to vector<16x128xf32>
      %267 = arith.addf %266, %265 : vector<16x128xf32>
      %268 = arith.divf %266, %267 : vector<16x128xf32>
      %269 = vector.extract_strided_slice %256 {offsets = [0, 256], sizes = [16, 128], strides = [1, 1]} : vector<16x512xf32> to vector<16x128xf32>
      %270 = math.tanh %269 : vector<16x128xf32>
      %271 = vector.extract_strided_slice %256 {offsets = [0, 384], sizes = [16, 128], strides = [1, 1]} : vector<16x512xf32> to vector<16x128xf32>
      %272 = arith.negf %271 : vector<16x128xf32>
      %273 = math.exp %272 : vector<16x128xf32>
      %cst_68 = arith.constant 1.000000e+00 : f32
      %274 = vector.broadcast %cst_68 : f32 to vector<16x128xf32>
      %275 = arith.addf %274, %273 : vector<16x128xf32>
      %276 = arith.divf %274, %275 : vector<16x128xf32>
      %277 = arith.mulf %268, %251 : vector<16x128xf32>
      %278 = arith.mulf %262, %270 : vector<16x128xf32>
      %279 = arith.addf %277, %278 : vector<16x128xf32>
      %280 = math.tanh %279 : vector<16x128xf32>
      %281 = arith.mulf %276, %280 : vector<16x128xf32>
      %282 = vector.broadcast %252 : i32 to vector<16x1xi32>
      %283 = arith.cmpi slt, %282, %24 : vector<16x1xi32>
      %cst_69 = arith.constant 0.000000e+00 : f32
      %284 = vector.shape_cast %283 : vector<16x1xi1> to vector<16x1xi1>
      %285 = vector.broadcast %284 : vector<16x1xi1> to vector<16x128xi1>
      %286 = vector.broadcast %cst_69 : f32 to vector<16x128xf32>
      %287 = arith.select %285, %281, %286 : vector<16x128xi1>, vector<16x128xf32>
      %c0_70 = arith.constant 0 : index
      %c5 = arith.constant 5 : index
      %c0_71 = arith.constant 0 : index
      %288 = vector.load %arg10[%c0_70, %c5, %c0_71] : memref<16x8x128xf32, #tpu.memory_space<vmem>>, vector<16x1x128xf32>
      %289 = vector.shape_cast %288 : vector<16x1x128xf32> to vector<16x128xf32>
      %290 = vector.shape_cast %287 : vector<16x128xf32> to vector<16x1x128xf32>
      tpu.vector_store %arg10[%c0_70, %c5, %c0_71], %290 {strides = array<i32>} : memref<16x8x128xf32, #tpu.memory_space<vmem>>, vector<16x1x128xf32>,
      %291 = vector.shape_cast %283 : vector<16x1xi1> to vector<16x1xi1>
      %292 = vector.broadcast %291 : vector<16x1xi1> to vector<16x128xi1>
      %293 = arith.select %292, %281, %248 : vector<16x128xi1>, vector<16x128xf32>
      %294 = vector.shape_cast %283 : vector<16x1xi1> to vector<16x1xi1>
      %295 = vector.broadcast %294 : vector<16x1xi1> to vector<16x128xi1>
      %296 = arith.select %295, %279, %251 : vector<16x128xi1>, vector<16x128xf32>
      %c6_i32 = arith.constant 6 : i32
      %297 = arith.addi %3, %c6_i32 : i32
      %c96 = arith.constant 96 : index
      %c0_72 = arith.constant 0 : index
      %298 = vector.load %arg15[%c96, %c0_72] : memref<128x512xf32, #tpu.memory_space<vmem>>, vector<16x512xf32>
      %299 = arith.truncf %293 : vector<16x128xf32> to vector<16x128xbf16>
      %cst_73 = arith.constant dense<0.000000e+00> : vector<16x512xf32>
      %300 = tpu.matmul %299, %23, %cst_73 {dimension_numbers = #tpu.dot_dimension_numbers<[1], [0], [0], [1], [0, 0, 1, 1], [], []>} : vector<16x128xbf16>, vector<128x512xbf16>, vector<16x512xf32> -> vector<16x512xf32>
      %301 = arith.addf %298, %300 : vector<16x512xf32>
      %302 = vector.extract_strided_slice %301 {offsets = [0, 0], sizes = [16, 128], strides = [1, 1]} : vector<16x512xf32> to vector<16x128xf32>
      %303 = arith.negf %302 : vector<16x128xf32>
      %304 = math.exp %303 : vector<16x128xf32>
      %cst_74 = arith.constant 1.000000e+00 : f32
      %305 = vector.broadcast %cst_74 : f32 to vector<16x128xf32>
      %306 = arith.addf %305, %304 : vector<16x128xf32>
      %307 = arith.divf %305, %306 : vector<16x128xf32>
      %308 = vector.extract_strided_slice %301 {offsets = [0, 128], sizes = [16, 128], strides = [1, 1]} : vector<16x512xf32> to vector<16x128xf32>
      %309 = arith.negf %308 : vector<16x128xf32>
      %310 = math.exp %309 : vector<16x128xf32>
      %cst_75 = arith.constant 1.000000e+00 : f32
      %311 = vector.broadcast %cst_75 : f32 to vector<16x128xf32>
      %312 = arith.addf %311, %310 : vector<16x128xf32>
      %313 = arith.divf %311, %312 : vector<16x128xf32>
      %314 = vector.extract_strided_slice %301 {offsets = [0, 256], sizes = [16, 128], strides = [1, 1]} : vector<16x512xf32> to vector<16x128xf32>
      %315 = math.tanh %314 : vector<16x128xf32>
      %316 = vector.extract_strided_slice %301 {offsets = [0, 384], sizes = [16, 128], strides = [1, 1]} : vector<16x512xf32> to vector<16x128xf32>
      %317 = arith.negf %316 : vector<16x128xf32>
      %318 = math.exp %317 : vector<16x128xf32>
      %cst_76 = arith.constant 1.000000e+00 : f32
      %319 = vector.broadcast %cst_76 : f32 to vector<16x128xf32>
      %320 = arith.addf %319, %318 : vector<16x128xf32>
      %321 = arith.divf %319, %320 : vector<16x128xf32>
      %322 = arith.mulf %313, %296 : vector<16x128xf32>
      %323 = arith.mulf %307, %315 : vector<16x128xf32>
      %324 = arith.addf %322, %323 : vector<16x128xf32>
      %325 = math.tanh %324 : vector<16x128xf32>
      %326 = arith.mulf %321, %325 : vector<16x128xf32>
      %327 = vector.broadcast %297 : i32 to vector<16x1xi32>
      %328 = arith.cmpi slt, %327, %24 : vector<16x1xi32>
      %cst_77 = arith.constant 0.000000e+00 : f32
      %329 = vector.shape_cast %328 : vector<16x1xi1> to vector<16x1xi1>
      %330 = vector.broadcast %329 : vector<16x1xi1> to vector<16x128xi1>
      %331 = vector.broadcast %cst_77 : f32 to vector<16x128xf32>
      %332 = arith.select %330, %326, %331 : vector<16x128xi1>, vector<16x128xf32>
      %c0_78 = arith.constant 0 : index
      %c6 = arith.constant 6 : index
      %c0_79 = arith.constant 0 : index
      %333 = vector.load %arg10[%c0_78, %c6, %c0_79] : memref<16x8x128xf32, #tpu.memory_space<vmem>>, vector<16x1x128xf32>
      %334 = vector.shape_cast %333 : vector<16x1x128xf32> to vector<16x128xf32>
      %335 = vector.shape_cast %332 : vector<16x128xf32> to vector<16x1x128xf32>
      tpu.vector_store %arg10[%c0_78, %c6, %c0_79], %335 {strides = array<i32>} : memref<16x8x128xf32, #tpu.memory_space<vmem>>, vector<16x1x128xf32>,
      %336 = vector.shape_cast %328 : vector<16x1xi1> to vector<16x1xi1>
      %337 = vector.broadcast %336 : vector<16x1xi1> to vector<16x128xi1>
      %338 = arith.select %337, %326, %293 : vector<16x128xi1>, vector<16x128xf32>
      %339 = vector.shape_cast %328 : vector<16x1xi1> to vector<16x1xi1>
      %340 = vector.broadcast %339 : vector<16x1xi1> to vector<16x128xi1>
      %341 = arith.select %340, %324, %296 : vector<16x128xi1>, vector<16x128xf32>
      %c7_i32 = arith.constant 7 : i32
      %342 = arith.addi %3, %c7_i32 : i32
      %c112 = arith.constant 112 : index
      %c0_80 = arith.constant 0 : index
      %343 = vector.load %arg15[%c112, %c0_80] : memref<128x512xf32, #tpu.memory_space<vmem>>, vector<16x512xf32>
      %344 = arith.truncf %338 : vector<16x128xf32> to vector<16x128xbf16>
      %cst_81 = arith.constant dense<0.000000e+00> : vector<16x512xf32>
      %345 = tpu.matmul %344, %23, %cst_81 {dimension_numbers = #tpu.dot_dimension_numbers<[1], [0], [0], [1], [0, 0, 1, 1], [], []>} : vector<16x128xbf16>, vector<128x512xbf16>, vector<16x512xf32> -> vector<16x512xf32>
      %346 = arith.addf %343, %345 : vector<16x512xf32>
      %347 = vector.extract_strided_slice %346 {offsets = [0, 0], sizes = [16, 128], strides = [1, 1]} : vector<16x512xf32> to vector<16x128xf32>
      %348 = arith.negf %347 : vector<16x128xf32>
      %349 = math.exp %348 : vector<16x128xf32>
      %cst_82 = arith.constant 1.000000e+00 : f32
      %350 = vector.broadcast %cst_82 : f32 to vector<16x128xf32>
      %351 = arith.addf %350, %349 : vector<16x128xf32>
      %352 = arith.divf %350, %351 : vector<16x128xf32>
      %353 = vector.extract_strided_slice %346 {offsets = [0, 128], sizes = [16, 128], strides = [1, 1]} : vector<16x512xf32> to vector<16x128xf32>
      %354 = arith.negf %353 : vector<16x128xf32>
      %355 = math.exp %354 : vector<16x128xf32>
      %cst_83 = arith.constant 1.000000e+00 : f32
      %356 = vector.broadcast %cst_83 : f32 to vector<16x128xf32>
      %357 = arith.addf %356, %355 : vector<16x128xf32>
      %358 = arith.divf %356, %357 : vector<16x128xf32>
      %359 = vector.extract_strided_slice %346 {offsets = [0, 256], sizes = [16, 128], strides = [1, 1]} : vector<16x512xf32> to vector<16x128xf32>
      %360 = math.tanh %359 : vector<16x128xf32>
      %361 = vector.extract_strided_slice %346 {offsets = [0, 384], sizes = [16, 128], strides = [1, 1]} : vector<16x512xf32> to vector<16x128xf32>
      %362 = arith.negf %361 : vector<16x128xf32>
      %363 = math.exp %362 : vector<16x128xf32>
      %cst_84 = arith.constant 1.000000e+00 : f32
      %364 = vector.broadcast %cst_84 : f32 to vector<16x128xf32>
      %365 = arith.addf %364, %363 : vector<16x128xf32>
      %366 = arith.divf %364, %365 : vector<16x128xf32>
      %367 = arith.mulf %358, %341 : vector<16x128xf32>
      %368 = arith.mulf %352, %360 : vector<16x128xf32>
      %369 = arith.addf %367, %368 : vector<16x128xf32>
      %370 = math.tanh %369 : vector<16x128xf32>
      %371 = arith.mulf %366, %370 : vector<16x128xf32>
      %372 = vector.broadcast %342 : i32 to vector<16x1xi32>
      %373 = arith.cmpi slt, %372, %24 : vector<16x1xi32>
      %cst_85 = arith.constant 0.000000e+00 : f32
      %374 = vector.shape_cast %373 : vector<16x1xi1> to vector<16x1xi1>
      %375 = vector.broadcast %374 : vector<16x1xi1> to vector<16x128xi1>
      %376 = vector.broadcast %cst_85 : f32 to vector<16x128xf32>
      %377 = arith.select %375, %371, %376 : vector<16x128xi1>, vector<16x128xf32>
      %c0_86 = arith.constant 0 : index
      %c7 = arith.constant 7 : index
      %c0_87 = arith.constant 0 : index
      %378 = vector.load %arg10[%c0_86, %c7, %c0_87] : memref<16x8x128xf32, #tpu.memory_space<vmem>>, vector<16x1x128xf32>
      %379 = vector.shape_cast %378 : vector<16x1x128xf32> to vector<16x128xf32>
      %380 = vector.shape_cast %377 : vector<16x128xf32> to vector<16x1x128xf32>
      tpu.vector_store %arg10[%c0_86, %c7, %c0_87], %380 {strides = array<i32>} : memref<16x8x128xf32, #tpu.memory_space<vmem>>, vector<16x1x128xf32>,
      %381 = vector.shape_cast %373 : vector<16x1xi1> to vector<16x1xi1>
      %382 = vector.broadcast %381 : vector<16x1xi1> to vector<16x128xi1>
      %383 = arith.select %382, %371, %338 : vector<16x128xi1>, vector<16x128xf32>
      %384 = vector.shape_cast %373 : vector<16x1xi1> to vector<16x1xi1>
      %385 = vector.broadcast %384 : vector<16x1xi1> to vector<16x128xi1>
      %386 = arith.select %385, %369, %341 : vector<16x128xi1>, vector<16x128xf32>
      %c0_88 = arith.constant 0 : index
      %c0_89 = arith.constant 0 : index
      %387 = vector.load %arg13[%c0_88, %c0_89] : memref<16x128xf32, #tpu.memory_space<vmem>>, vector<16x128xf32>
      tpu.vector_store %arg13[%c0_88, %c0_89], %383 {strides = array<i32>} : memref<16x128xf32, #tpu.memory_space<vmem>>, vector<16x128xf32>,
      %c0_90 = arith.constant 0 : index
      %c0_91 = arith.constant 0 : index
      %388 = vector.load %arg14[%c0_90, %c0_91] : memref<16x128xf32, #tpu.memory_space<vmem>>, vector<16x128xf32>
      tpu.vector_store %arg14[%c0_90, %c0_91], %386 {strides = array<i32>} : memref<16x128xf32, #tpu.memory_space<vmem>>, vector<16x128xf32>,
    } else {
    }
    %c2_i32 = arith.constant 2 : i32
    %12 = arith.cmpi eq, %arg1, %c2_i32 : i32
    %13 = arith.extui %12 : i1 to i32
    %c0_i32_3 = arith.constant 0 : i32
    %14 = arith.cmpi ne, %13, %c0_i32_3 : i32
    scf.if %14 {
      %c0 = arith.constant 0 : index
      %c0_4 = arith.constant 0 : index
      %15 = vector.load %arg13[%c0, %c0_4] : memref<16x128xf32, #tpu.memory_space<vmem>>, vector<16x128xf32>
      %16 = arith.truncf %15 : vector<16x128xf32> to vector<16x128xbf16>
      %c0_5 = arith.constant 0 : index
      %c0_6 = arith.constant 0 : index
      %17 = vector.load %arg8[%c0_5, %c0_6] : memref<128x128xbf16, #tpu.memory_space<vmem>>, vector<128x128xbf16>
      %cst = arith.constant dense<0.000000e+00> : vector<16x128xf32>
      %18 = tpu.matmul %16, %17, %cst {dimension_numbers = #tpu.dot_dimension_numbers<[1], [0], [0], [1], [0, 0, 1, 1], [], []>} : vector<16x128xbf16>, vector<128x128xbf16>, vector<16x128xf32> -> vector<16x128xf32>
      %c0_7 = arith.constant 0 : index
      %c0_8 = arith.constant 0 : index
      %19 = vector.load %arg9[%c0_7, %c0_8] : memref<1x128xf32, #tpu.memory_space<vmem>>, vector<1x128xf32>
      %20 = vector.broadcast %19 : vector<1x128xf32> to vector<16x128xf32>
      %21 = arith.addf %18, %20 : vector<16x128xf32>
      %22 = math.tanh %21 : vector<16x128xf32>
      %c0_9 = arith.constant 0 : index
      %c0_10 = arith.constant 0 : index
      %23 = vector.load %arg11[%c0_9, %c0_10] : memref<16x128xf32, #tpu.memory_space<vmem>>, vector<16x128xf32>
      tpu.vector_store %arg11[%c0_9, %c0_10], %22 {strides = array<i32>} : memref<16x128xf32, #tpu.memory_space<vmem>>, vector<16x128xf32>,
      %c0_11 = arith.constant 0 : index
      %c0_12 = arith.constant 0 : index
      %24 = vector.load %arg14[%c0_11, %c0_12] : memref<16x128xf32, #tpu.memory_space<vmem>>, vector<16x128xf32>
      %c0_13 = arith.constant 0 : index
      %c0_14 = arith.constant 0 : index
      %25 = vector.load %arg12[%c0_13, %c0_14] : memref<16x128xf32, #tpu.memory_space<vmem>>, vector<16x128xf32>
      tpu.vector_store %arg12[%c0_13, %c0_14], %24 {strides = array<i32>} : memref<16x128xf32, #tpu.memory_space<vmem>>, vector<16x128xf32>,
    } else {
    }
    return
  }
  func.func @transform_0(%arg0: i32, %arg1: i32, %arg2: memref<1xi32, #tpu.memory_space<smem>>) -> (i32, i32, i32) {
    %c0_i32 = arith.constant 0 : i32
    %c0_i32_0 = arith.constant 0 : i32
    return %arg1, %arg0, %c0_i32 : i32, i32, i32
  }
  func.func @transform_1(%arg0: i32, %arg1: i32, %arg2: memref<1xi32, #tpu.memory_space<smem>>) -> (i32, i32) {
    %c0_i32 = arith.constant 0 : i32
    %c0_i32_0 = arith.constant 0 : i32
    return %arg0, %c0_i32 : i32, i32
  }
  func.func @transform_2(%arg0: i32, %arg1: i32, %arg2: memref<1xi32, #tpu.memory_space<smem>>) -> (i32, i32) {
    %c0_i32 = arith.constant 0 : i32
    %c0_i32_0 = arith.constant 0 : i32
    %c0_i32_1 = arith.constant 0 : i32
    return %c0_i32, %c0_i32_0 : i32, i32
  }
  func.func @transform_3(%arg0: i32, %arg1: i32, %arg2: memref<1xi32, #tpu.memory_space<smem>>) -> (i32, i32) {
    %c0_i32 = arith.constant 0 : i32
    %c0_i32_0 = arith.constant 0 : i32
    %c0_i32_1 = arith.constant 0 : i32
    return %c0_i32, %c0_i32_0 : i32, i32
  }
  func.func @transform_4(%arg0: i32, %arg1: i32, %arg2: memref<1xi32, #tpu.memory_space<smem>>) -> (i32, i32) {
    %c0_i32 = arith.constant 0 : i32
    %c0_i32_0 = arith.constant 0 : i32
    %c0_i32_1 = arith.constant 0 : i32
    return %c0_i32, %c0_i32_0 : i32, i32
  }
  func.func @transform_5(%arg0: i32, %arg1: i32, %arg2: memref<1xi32, #tpu.memory_space<smem>>) -> (i32, i32) {
    %c0_i32 = arith.constant 0 : i32
    %c0_i32_0 = arith.constant 0 : i32
    %c0_i32_1 = arith.constant 0 : i32
    return %c0_i32, %c0_i32_0 : i32, i32
  }
  func.func @transform_6(%arg0: i32, %arg1: i32, %arg2: memref<1xi32, #tpu.memory_space<smem>>) -> (i32, i32) {
    %c0_i32 = arith.constant 0 : i32
    %c0_i32_0 = arith.constant 0 : i32
    %c0_i32_1 = arith.constant 0 : i32
    return %c0_i32, %c0_i32_0 : i32, i32
  }
  func.func @transform_7(%arg0: i32, %arg1: i32, %arg2: memref<1xi32, #tpu.memory_space<smem>>) -> (i32, i32, i32) {
    %c0_i32 = arith.constant 0 : i32
    %c0_i32_0 = arith.constant 0 : i32
    return %arg0, %arg1, %c0_i32 : i32, i32, i32
  }
  func.func @transform_8(%arg0: i32, %arg1: i32, %arg2: memref<1xi32, #tpu.memory_space<smem>>) -> (i32, i32) {
    %c0_i32 = arith.constant 0 : i32
    %c0_i32_0 = arith.constant 0 : i32
    return %arg0, %c0_i32 : i32, i32
  }
  func.func @transform_9(%arg0: i32, %arg1: i32, %arg2: memref<1xi32, #tpu.memory_space<smem>>) -> (i32, i32) {
    %c0_i32 = arith.constant 0 : i32
    %c0_i32_0 = arith.constant 0 : i32
    return %arg0, %c0_i32 : i32, i32
  }
}

</mosaic_0001>

<llo_original>
// kernel: encoder_lstm_forward.1
$region0: #{encoder_lstm_forward.1}
  #allocation0 [shape = 'u32[]', space=smem, size = 0x4, offset = 0x4, fixed_abs, tag = 'smem constant byte address 0x4 - core index']
  #allocation1 [shape = 'u32[144,128]{1,0:T(1,128)}', space=vmem, size = 0x12000, scoped, tag = 'internal scratch']
  #allocation2 [shape = 'f32[16,128]{1,0:T(8,128)}', space=vmem, size = 0x2000, scoped, tag = 'scratch operand']
  #allocation3 [shape = 'f32[16,128]{1,0:T(8,128)}', space=vmem, size = 0x2000, scoped, tag = 'scratch operand']
  #allocation4 [shape = 'f32[128,512]{1,0:T(8,128)}', space=vmem, size = 0x40000, scoped, tag = 'scratch operand']
  #allocation5 [shape = 's32[1]{0}', space=sflag, size = 0x4, scoped, tag = 'scoped memory for encoder_lstm_forward.1']
  #allocation6 [shape = 's32[1]{0:T(128)S(6)}', space=smem, size = 0x200, scoped, tag = 'prefetched SMEM operand 0']
  %s0 = inlined_call_operand.<no memory space> [shape: s32[1], index: 0, kind: input, shape index: {}]
  %s1 = inlined_call_operand.vmem [shape: bf16[24,16,32], index: 1, kind: input, shape index: {}]
  %s2 = inlined_call_operand.vmem [shape: s32[16,1], index: 2, kind: input, shape index: {}]
  %s3 = inlined_call_operand.vmem [shape: bf16[32,512], index: 3, kind: input, shape index: {}]
  %s4 = inlined_call_operand.vmem [shape: bf16[128,512], index: 4, kind: input, shape index: {}]
  %s5 = inlined_call_operand.vmem [shape: f32[1,512], index: 5, kind: input, shape index: {}]
  %s6 = inlined_call_operand.vmem [shape: bf16[128,128], index: 6, kind: input, shape index: {}]
  %s7 = inlined_call_operand.vmem [shape: f32[1,128], index: 7, kind: input, shape index: {}]
  %s8 = inlined_call_operand.vmem [shape: f32[16,24,128], index: 8, kind: output, shape index: {0}]
  %s9 = inlined_call_operand.vmem [shape: f32[16,128], index: 9, kind: output, shape index: {1}]
  %s10 = inlined_call_operand.vmem [shape: f32[16,128], index: 10, kind: output, shape index: {2}]
  %11 = xla_tuple %s8, %s9, %s10
  %s12 = sld [smem:[#allocation0]]
  $region127: #{encoder_lstm_forward.1} parent=0
    _
  %s14 = ssub.s32 1, %s12
  %s15 = scalar_select 0, %s14, %s12
  %16 = sst [smem:[#allocation6]] %s0
  $region1: #{encoder_lstm_forward.1} parent=0
    #allocation7 [shape = 'u8[131072]{0}', space=vmem, size = 0x20000, scoped, tag = 'output window, operand 0']
    loop: start=0, step=1, limit=5
    $region2: #{encoder_lstm_forward.1} parent=1 // loop_pre_header
      _
    $region3: #{encoder_lstm_forward.1} parent=1 // loop_header
      %s18 = sphi 0, %s22
      %p19 = scmp.ge.s32.totalorder %s18, 5
      %s25 = sphi 0, %s37
      %s26 = sphi 0, %s33
      %s27 = sphi 0, %s25
      %s28 = sphi 0, %s26
      %s29 = sphi 0, %s27
      %s30 = sphi 0, %s28
      %s42 = sphi 0, %s44
      %s45 = sphi 0, %s42
      %s46 = sphi 0, %s45
      %s62 = sphi 0, %s46
      %s68 = sphi 0, %s70
      %s71 = sphi 0, %s68
      %s72 = sphi 0, %s71
      %s88 = sphi 0, %s72
      %s92 = sphi 0, %s92
      %s94 = sphi 0, %s92
      %s95 = sphi 0, %s94
      %s109 = sphi 0, %s95
      %s113 = sphi 0, %s113
      %s115 = sphi 0, %s113
      %s116 = sphi 0, %s115
      %s130 = sphi 0, %s116
      %s134 = sphi 0, %s134
      %s136 = sphi 0, %s134
      %s137 = sphi 0, %s136
      %s151 = sphi 0, %s137
      %s155 = sphi 0, %s155
      %s157 = sphi 0, %s155
      %s158 = sphi 0, %s157
      %s172 = sphi 0, %s158
      %s176 = sphi 0, %s176
      %s178 = sphi 0, %s176
      %s179 = sphi 0, %s178
      %s193 = sphi 0, %s179
      %s201 = sphi 0, %s203
      %s204 = sphi 0, %s201
      %s205 = sphi 0, %s204
      %s221 = sphi 0, %s205
      %s227 = sphi 0, %s229
      %s230 = sphi 0, %s227
      %s231 = sphi 0, %s230
      %s247 = sphi 0, %s231
      %s253 = sphi 0, %s255
      %s256 = sphi 0, %s253
      %s257 = sphi 0, %s256
      %s273 = sphi 0, %s257
    $region4: #{encoder_lstm_forward.1} parent=1 // loop_header_branch
      %21 = sbr.rel (%p19) target = $region8
    $region5: #{encoder_lstm_forward.1} parent=1 // loop_body
      %s23 = ssub.s32 %s18, 1
      %s24 = ssub.s32 %s18, 2
      %s31 = sadd.s32 1, %s26
      %p32 = scmp.ge.s32.totalorder %s31, 3
      %s33 = scalar_select %p32, 0, %s31
      %s34 = sadd.s32 1, %s25
      %s35 = scalar_select %p32, %s34, %s25
      %p36 = scmp.ge.s32.totalorder %s35, 1
      %s37 = scalar_select %p36, 0, %s35
      %s38 = ssub.s32 %s26, %s33
      %s39 = ssub.s32 %s25, %s37
      %s40 = sor.u32 %s38, %s39
      %p41 = scmp.eq.s32.totalorder %s40, 0
      %s43 = sadd.s32 %s42, 1
      %s44 = scalar_select %p41, %s42, %s43
      %p47 = pneg %p41
      %p48 = scmp.eq.s32.totalorder %s18, 2
      %p49 = por %p47, %p48
      %p50 = scmp.ne.s32.totalorder %s42, %s45
      %p51 = scmp.eq.s32.totalorder %s18, 0
      %p52 = por %p50, %p51
      %p53 = scmp.ne.s32.totalorder %s42, %s45
      %p54 = scmp.eq.s32.totalorder %s23, 2
      %p55 = por %p53, %p54
      %p56 = scmp.ne.s32.totalorder %s45, %s46
      %p57 = scmp.eq.s32.totalorder %s23, 0
      %p58 = por %p56, %p57
      %p59 = scmp.ne.s32.totalorder %s45, %s46
      %p60 = scmp.eq.s32.totalorder %s24, 2
      %p61 = por %p59, %p60
      %p63 = scmp.ne.s32.totalorder %s46, %s62
      %p64 = scmp.eq.s32.totalorder %s24, 0
      %p65 = por %p63, %p64
      %s66 = ssub.s32 %s25, %s37
      %p67 = scmp.eq.s32.totalorder %s66, 0
      %s69 = sadd.s32 %s68, 1
      %s70 = scalar_select %p67, %s68, %s69
      %p73 = pneg %p67
      %p74 = scmp.eq.s32.totalorder %s18, 2
      %p75 = por %p73, %p74
      %p76 = scmp.ne.s32.totalorder %s68, %s71
      %p77 = scmp.eq.s32.totalorder %s18, 0
      %p78 = por %p76, %p77
      %p79 = scmp.ne.s32.totalorder %s68, %s71
      %p80 = scmp.eq.s32.totalorder %s23, 2
      %p81 = por %p79, %p80
      %p82 = scmp.ne.s32.totalorder %s71, %s72
      %p83 = scmp.eq.s32.totalorder %s23, 0
      %p84 = por %p82, %p83
      %p85 = scmp.ne.s32.totalorder %s71, %s72
      %p86 = scmp.eq.s32.totalorder %s24, 2
      %p87 = por %p85, %p86
      %p89 = scmp.ne.s32.totalorder %s72, %s88
      %p90 = scmp.eq.s32.totalorder %s24, 0
      %p91 = por %p89, %p90
      %s93 = sadd.s32 %s92, 1
      %p96 = scmp.eq.s32.totalorder %s18, 2
      %p97 = scmp.ne.s32.totalorder %s92, %s94
      %p98 = scmp.eq.s32.totalorder %s18, 0
      %p99 = por %p97, %p98
      %p100 = scmp.ne.s32.totalorder %s92, %s94
      %p101 = scmp.eq.s32.totalorder %s23, 2
      %p102 = por %p100, %p101
      %p103 = scmp.ne.s32.totalorder %s94, %s95
      %p104 = scmp.eq.s32.totalorder %s23, 0
      %p105 = por %p103, %p104
      %p106 = scmp.ne.s32.totalorder %s94, %s95
      %p107 = scmp.eq.s32.totalorder %s24, 2
      %p108 = por %p106, %p107
      %p110 = scmp.ne.s32.totalorder %s95, %s109
      %p111 = scmp.eq.s32.totalorder %s24, 0
      %p112 = por %p110, %p111
      %s114 = sadd.s32 %s113, 1
      %p117 = scmp.eq.s32.totalorder %s18, 2
      %p118 = scmp.ne.s32.totalorder %s113, %s115
      %p119 = scmp.eq.s32.totalorder %s18, 0
      %p120 = por %p118, %p119
      %p121 = scmp.ne.s32.totalorder %s113, %s115
      %p122 = scmp.eq.s32.totalorder %s23, 2
      %p123 = por %p121, %p122
      %p124 = scmp.ne.s32.totalorder %s115, %s116
      %p125 = scmp.eq.s32.totalorder %s23, 0
      %p126 = por %p124, %p125
      %p127 = scmp.ne.s32.totalorder %s115, %s116
      %p128 = scmp.eq.s32.totalorder %s24, 2
      %p129 = por %p127, %p128
      %p131 = scmp.ne.s32.totalorder %s116, %s130
      %p132 = scmp.eq.s32.totalorder %s24, 0
      %p133 = por %p131, %p132
      %s135 = sadd.s32 %s134, 1
      %p138 = scmp.eq.s32.totalorder %s18, 2
      %p139 = scmp.ne.s32.totalorder %s134, %s136
      %p140 = scmp.eq.s32.totalorder %s18, 0
      %p141 = por %p139, %p140
      %p142 = scmp.ne.s32.totalorder %s134, %s136
      %p143 = scmp.eq.s32.totalorder %s23, 2
      %p144 = por %p142, %p143
      %p145 = scmp.ne.s32.totalorder %s136, %s137
      %p146 = scmp.eq.s32.totalorder %s23, 0
      %p147 = por %p145, %p146
      %p148 = scmp.ne.s32.totalorder %s136, %s137
      %p149 = scmp.eq.s32.totalorder %s24, 2
      %p150 = por %p148, %p149
      %p152 = scmp.ne.s32.totalorder %s137, %s151
      %p153 = scmp.eq.s32.totalorder %s24, 0
      %p154 = por %p152, %p153
      %s156 = sadd.s32 %s155, 1
      %p159 = scmp.eq.s32.totalorder %s18, 2
      %p160 = scmp.ne.s32.totalorder %s155, %s157
      %p161 = scmp.eq.s32.totalorder %s18, 0
      %p162 = por %p160, %p161
      %p163 = scmp.ne.s32.totalorder %s155, %s157
      %p164 = scmp.eq.s32.totalorder %s23, 2
      %p165 = por %p163, %p164
      %p166 = scmp.ne.s32.totalorder %s157, %s158
      %p167 = scmp.eq.s32.totalorder %s23, 0
      %p168 = por %p166, %p167
      %p169 = scmp.ne.s32.totalorder %s157, %s158
      %p170 = scmp.eq.s32.totalorder %s24, 2
      %p171 = por %p169, %p170
      %p173 = scmp.ne.s32.totalorder %s158, %s172
      %p174 = scmp.eq.s32.totalorder %s24, 0
      %p175 = por %p173, %p174
      %s177 = sadd.s32 %s176, 1
      %p180 = scmp.eq.s32.totalorder %s18, 2
      %p181 = scmp.ne.s32.totalorder %s176, %s178
      %p182 = scmp.eq.s32.totalorder %s18, 0
      %p183 = por %p181, %p182
      %p184 = scmp.ne.s32.totalorder %s176, %s178
      %p185 = scmp.eq.s32.totalorder %s23, 2
      %p186 = por %p184, %p185
      %p187 = scmp.ne.s32.totalorder %s178, %s179
      %p188 = scmp.eq.s32.totalorder %s23, 0
      %p189 = por %p187, %p188
      %p190 = scmp.ne.s32.totalorder %s178, %s179
      %p191 = scmp.eq.s32.totalorder %s24, 2
      %p192 = por %p190, %p191
      %p194 = scmp.ne.s32.totalorder %s179, %s193
      %p195 = scmp.eq.s32.totalorder %s24, 0
      %p196 = por %p194, %p195
      %s197 = ssub.s32 %s25, %s37
      %s198 = ssub.s32 %s26, %s33
      %s199 = sor.u32 %s197, %s198
      %p200 = scmp.eq.s32.totalorder %s199, 0
      %s202 = sadd.s32 %s201, 1
      %s203 = scalar_select %p200, %s201, %s202
      %p206 = pneg %p200
      %p207 = scmp.eq.s32.totalorder %s18, 2
      %p208 = por %p206, %p207
      %p209 = scmp.ne.s32.totalorder %s201, %s204
      %p210 = scmp.eq.s32.totalorder %s18, 0
      %p211 = por %p209, %p210
      %p212 = scmp.ne.s32.totalorder %s201, %s204
      %p213 = scmp.eq.s32.totalorder %s23, 2
      %p214 = por %p212, %p213
      %p215 = scmp.ne.s32.totalorder %s204, %s205
      %p216 = scmp.eq.s32.totalorder %s23, 0
      %p217 = por %p215, %p216
      %p218 = scmp.ne.s32.totalorder %s204, %s205
      %p219 = scmp.eq.s32.totalorder %s24, 2
      %p220 = por %p218, %p219
      %p222 = scmp.ne.s32.totalorder %s205, %s221
      %p223 = scmp.eq.s32.totalorder %s24, 0
      %p224 = por %p222, %p223
      %s225 = ssub.s32 %s25, %s37
      %p226 = scmp.eq.s32.totalorder %s225, 0
      %s228 = sadd.s32 %s227, 1
      %s229 = scalar_select %p226, %s227, %s228
      %p232 = pneg %p226
      %p233 = scmp.eq.s32.totalorder %s18, 2
      %p234 = por %p232, %p233
      %p235 = scmp.ne.s32.totalorder %s227, %s230
      %p236 = scmp.eq.s32.totalorder %s18, 0
      %p237 = por %p235, %p236
      %p238 = scmp.ne.s32.totalorder %s227, %s230
      %p239 = scmp.eq.s32.totalorder %s23, 2
      %p240 = por %p238, %p239
      %p241 = scmp.ne.s32.totalorder %s230, %s231
      %p242 = scmp.eq.s32.totalorder %s23, 0
      %p243 = por %p241, %p242
      %p244 = scmp.ne.s32.totalorder %s230, %s231
      %p245 = scmp.eq.s32.totalorder %s24, 2
      %p246 = por %p244, %p245
      %p248 = scmp.ne.s32.totalorder %s231, %s247
      %p249 = scmp.eq.s32.totalorder %s24, 0
      %p250 = por %p248, %p249
      %s251 = ssub.s32 %s25, %s37
      %p252 = scmp.eq.s32.totalorder %s251, 0
      %s254 = sadd.s32 %s253, 1
      %s255 = scalar_select %p252, %s253, %s254
      %p258 = pneg %p252
      %p259 = scmp.eq.s32.totalorder %s18, 2
      %p260 = por %p258, %p259
      %p261 = scmp.ne.s32.totalorder %s253, %s256
      %p262 = scmp.eq.s32.totalorder %s18, 0
      %p263 = por %p261, %p262
      %p264 = scmp.ne.s32.totalorder %s253, %s256
      %p265 = scmp.eq.s32.totalorder %s23, 2
      %p266 = por %p264, %p265
      %p267 = scmp.ne.s32.totalorder %s256, %s257
      %p268 = scmp.eq.s32.totalorder %s23, 0
      %p269 = por %p267, %p268
      %p270 = scmp.ne.s32.totalorder %s256, %s257
      %p271 = scmp.eq.s32.totalorder %s24, 2
      %p272 = por %p270, %p271
      %p274 = scmp.ne.s32.totalorder %s257, %s273
      %p275 = scmp.eq.s32.totalorder %s24, 0
      %p276 = por %p274, %p275
      %p277 = scmp.le.s32.totalorder 1, %s18
      %p278 = scmp.lt.s32.totalorder %s18, 4
      %p279 = pnand %p277, %p278
      %p280 = pneg %p279
      // Predicated region
      $region9: #{encoder_lstm_forward.1} parent=5 // pred_check
        _
      $region10: #{encoder_lstm_forward.1} parent=5 // pred_check_branch
        %282 = sbr.rel (%p279) target = $region12
      $region11: #{encoder_lstm_forward.1} parent=5 // pred_region
        %s283 = ssub.s32 %s18, 1
        // Predicated region
        $region13: #{encoder_lstm_forward.1} parent=11 // pred_check
          %p284 = pneg %p84
        $region14: #{encoder_lstm_forward.1} parent=11 // pred_check_branch
          %286 = sbr.rel (%p284) target = $region16
        $region15: #{encoder_lstm_forward.1} parent=11 // pred_region
          %s287 = smul.u32 2, %s27
          %p288 = scmp.lt.s32.totalorder %s287, 1
          %s289 = scalar_select %p288, %s287, 1
          %s290 = smul.addr %s289, 8
          %s291 = scalar_lea.vmem %s2, %s290
          %s292 = smul.u32 2, %s27
        $region16: #{encoder_lstm_forward.1} parent=11 // pred_fallthru
          _
        // Predicated region
        $region17: #{encoder_lstm_forward.1} parent=11 // pred_check
          %p293 = pneg %p105
        $region18: #{encoder_lstm_forward.1} parent=11 // pred_check_branch
          %295 = sbr.rel (%p293) target = $region20
        $region19: #{encoder_lstm_forward.1} parent=11 // pred_region
          _
        $region20: #{encoder_lstm_forward.1} parent=11 // pred_fallthru
          _
        // Predicated region
        $region21: #{encoder_lstm_forward.1} parent=11 // pred_check
          %p296 = pneg %p126
        $region22: #{encoder_lstm_forward.1} parent=11 // pred_check_branch
          %298 = sbr.rel (%p296) target = $region24
        $region23: #{encoder_lstm_forward.1} parent=11 // pred_region
          _
        $region24: #{encoder_lstm_forward.1} parent=11 // pred_fallthru
          _
        // Predicated region
        $region25: #{encoder_lstm_forward.1} parent=11 // pred_check
          %p299 = pneg %p147
        $region26: #{encoder_lstm_forward.1} parent=11 // pred_check_branch
          %301 = sbr.rel (%p299) target = $region28
        $region27: #{encoder_lstm_forward.1} parent=11 // pred_region
          _
        $region28: #{encoder_lstm_forward.1} parent=11 // pred_fallthru
          _
        // Predicated region
        $region29: #{encoder_lstm_forward.1} parent=11 // pred_check
          %p302 = pneg %p168
        $region30: #{encoder_lstm_forward.1} parent=11 // pred_check_branch
          %304 = sbr.rel (%p302) target = $region32
        $region31: #{encoder_lstm_forward.1} parent=11 // pred_region
          _
        $region32: #{encoder_lstm_forward.1} parent=11 // pred_fallthru
          _
        // Predicated region
        $region33: #{encoder_lstm_forward.1} parent=11 // pred_check
          %p305 = pneg %p189
        $region34: #{encoder_lstm_forward.1} parent=11 // pred_check_branch
          %307 = sbr.rel (%p305) target = $region36
        $region35: #{encoder_lstm_forward.1} parent=11 // pred_region
          _
        $region36: #{encoder_lstm_forward.1} parent=11 // pred_fallthru
          _
      $region12: #{encoder_lstm_forward.1} parent=5 // pred_fallthru
        _
      %p308 = scmp.lt.s32.totalorder %s18, 3
      // Predicated region
      $region37: #{encoder_lstm_forward.1} parent=5 // pred_check
        %p309 = pneg %p308
      $region38: #{encoder_lstm_forward.1} parent=5 // pred_check_branch
        %311 = sbr.rel (%p309) target = $region40
      $region39: #{encoder_lstm_forward.1} parent=5 // pred_region
        // Predicated region
        $region41: #{encoder_lstm_forward.1} parent=39 // pred_check
          %p312 = pneg %p52
        $region42: #{encoder_lstm_forward.1} parent=39 // pred_check_branch
          %314 = sbr.rel (%p312) target = $region44
        $region43: #{encoder_lstm_forward.1} parent=39 // pred_region
          %s315 = smul.u32 8, %s26
          %s316 = smul.u32 2, %s25
          %p317 = scmp.lt.s32.totalorder %s315, 23
          %s318 = scalar_select %p317, %s315, 23
          %p319 = scmp.lt.s32.totalorder %s316, 1
          %s320 = scalar_select %p319, %s316, 1
          %s321 = smul.addr %s318, 2
          %s322 = sadd.s32 %s320, %s321
          %s323 = smul.addr %s322, 4
          %s324 = scalar_lea.vmem %s1, %s323
          %s325 = smul.u32 8, %s26
          %s326 = smul.u32 2, %s25
        $region44: #{encoder_lstm_forward.1} parent=39 // pred_fallthru
          _
      $region40: #{encoder_lstm_forward.1} parent=5 // pred_fallthru
        _
      %p327 = scmp.le.s32.totalorder 1, %s18
      %p328 = scmp.lt.s32.totalorder %s18, 4
      %p329 = pnand %p327, %p328
      %p330 = pneg %p329
      // Predicated region
      $region45: #{encoder_lstm_forward.1} parent=5 // pred_check
        _
      $region46: #{encoder_lstm_forward.1} parent=5 // pred_check_branch
        %332 = sbr.rel (%p329) target = $region48
      $region47: #{encoder_lstm_forward.1} parent=5 // pred_region
        %s333 = ssub.s32 %s18, 1
        %s334 = smul.u32 8, %s28
        %s335 = smul.u32 2, %s27
        %p336 = scmp.lt.s32.totalorder %s334, 23
        %s337 = scalar_select %p336, %s334, 23
        %p338 = scmp.lt.s32.totalorder %s335, 1
        %s339 = scalar_select %p338, %s335, 1
        %s340 = smul.addr %s337, 2
        %s341 = sadd.s32 %s339, %s340
        %s342 = smul.addr %s341, 4
        %s343 = scalar_lea.vmem %s1, %s342
        %p344 = pneg %p58
        %p345 = pneg %p55
        %s346 = smul.u32 2, %s27
        %p347 = scmp.lt.s32.totalorder %s346, 1
        %s348 = scalar_select %p347, %s346, 1
        %s349 = smul.addr %s348, 8
        %s350 = scalar_lea.vmem %s2, %s349
        %p351 = pneg %p84
        %p352 = pneg %p81
        %p353 = pneg %p105
        %p354 = pneg %p102
        %p355 = pneg %p126
        %p356 = pneg %p123
        %p357 = pneg %p147
        %p358 = pneg %p144
        %p359 = pneg %p168
        %p360 = pneg %p165
        %p361 = pneg %p189
        %p362 = pneg %p186
        %p363 = pneg %p217
        %p364 = pneg %p214
        %s365 = sand.u32 %s204, 1
        %s366 = sand.u32 %s204, 1
        %s367 = smul.addr %s366, 128
        %s368 = scalar_lea.vmem [#allocation7], %s367
        %p369 = pneg %p243
        %p370 = pneg %p240
        %s371 = smul.u32 2, %s27
        %p372 = scmp.lt.s32.totalorder %s371, 1
        %s373 = scalar_select %p372, %s371, 1
        %s374 = smul.addr %s373, 8
        %s375 = scalar_lea.vmem %s9, %s374
        %p376 = pneg %p269
        %p377 = pneg %p266
        %s378 = smul.u32 2, %s27
        %p379 = scmp.lt.s32.totalorder %s378, 1
        %s380 = scalar_select %p379, %s378, 1
        %s381 = smul.addr %s380, 8
        %s382 = scalar_lea.vmem %s10, %s381
        %s383 = smul.u32 8, %s28
        %s384 = smul.u32 2, %s27
        %p385 = scmp.lt.s32.totalorder %s383, 23
        %s386 = scalar_select %p385, %s383, 23
        %p387 = scmp.lt.s32.totalorder %s384, 1
        %s388 = scalar_select %p387, %s384, 1
        %s389 = smul.addr %s386, 2
        %s390 = sadd.s32 %s388, %s389
        %s391 = smul.addr %s390, 4
        %s392 = scalar_lea.vmem %s1, %s391
        %s393 = smul.u32 8, %s28
        %s394 = smul.u32 2, %s27
        %s395 = smul.u32 2, %s27
        %p396 = scmp.lt.s32.totalorder %s395, 1
        %s397 = scalar_select %p396, %s395, 1
        %s398 = smul.addr %s397, 8
        %s399 = scalar_lea.vmem %s2, %s398
        %s400 = smul.u32 2, %s27
        %s401 = smul.u32 16, %s27
        %s402 = smul.u32 2, %s27
        %p403 = scmp.lt.s32.totalorder %s402, 1
        %s404 = scalar_select %p403, %s402, 1
        %s405 = smul.addr %s404, 8
        %s406 = scalar_lea.vmem %s9, %s405
        %s407 = smul.u32 2, %s27
        %s408 = smul.u32 2, %s27
        %p409 = scmp.lt.s32.totalorder %s408, 1
        %s410 = scalar_select %p409, %s408, 1
        %s411 = smul.addr %s410, 8
        %s412 = scalar_lea.vmem %s10, %s411
        %s413 = smul.u32 2, %s27
        %p415 = scmp.eq.s32.totalorder %s28, 0
        // Predicated region
        $region49: #{encoder_lstm_forward.1} parent=47 // pred_check
          %p416 = pneg %p415
        $region50: #{encoder_lstm_forward.1} parent=47 // pred_check_branch
          %418 = sbr.rel (%p416) target = $region52
        $region51: #{encoder_lstm_forward.1} parent=47 // pred_region
          %419 = vst [vmem:[#allocation2] sm:$0xff] 0.0
          %420 = vst [vmem:[#allocation2 + $0x8] sm:$0xff] 0.0
          %421 = vst [vmem:[#allocation3] sm:$0xff] 0.0
          %422 = vst [vmem:[#allocation3 + $0x8] sm:$0xff] 0.0
        $region52: #{encoder_lstm_forward.1} parent=47 // pred_fallthru
          _
        %s423 = smul.u32 %s28, 8
        %s424 = sld [smem:[#allocation6 + %s27]]
        %p425 = scmp.lt.s32.totalorder %s423, %s424
        %p426 = scmp.ge.s32.totalorder %s423, %s424
        // Predicated region
        $region53: #{encoder_lstm_forward.1} parent=47 // pred_check
          %p427 = pneg %p426
        $region54: #{encoder_lstm_forward.1} parent=47 // pred_check_branch
          %429 = sbr.rel (%p427) target = $region56
        $region55: #{encoder_lstm_forward.1} parent=47 // pred_region
          %430 = vst [vmem:[%s368] sm:$0xff] 0.0
          %431 = vst [vmem:[%s368 + $0x8] sm:$0xff] 0.0
          %432 = vst [vmem:[%s368 + $0x10] sm:$0xff] 0.0
          %433 = vst [vmem:[%s368 + $0x18] sm:$0xff] 0.0
          %434 = vst [vmem:[%s368 + $0x20] sm:$0xff] 0.0
          %435 = vst [vmem:[%s368 + $0x28] sm:$0xff] 0.0
          %436 = vst [vmem:[%s368 + $0x30] sm:$0xff] 0.0
          %437 = vst [vmem:[%s368 + $0x38] sm:$0xff] 0.0
          %438 = vst [vmem:[%s368 + $0x40] sm:$0xff] 0.0
          %439 = vst [vmem:[%s368 + $0x48] sm:$0xff] 0.0
          %440 = vst [vmem:[%s368 + $0x50] sm:$0xff] 0.0
          %441 = vst [vmem:[%s368 + $0x58] sm:$0xff] 0.0
          %442 = vst [vmem:[%s368 + $0x60] sm:$0xff] 0.0
          %443 = vst [vmem:[%s368 + $0x68] sm:$0xff] 0.0
          %444 = vst [vmem:[%s368 + $0x70] sm:$0xff] 0.0
          %445 = vst [vmem:[%s368 + $0x78] sm:$0xff] 0.0
        $region56: #{encoder_lstm_forward.1} parent=47 // pred_fallthru
          _
        // Predicated region
        $region57: #{encoder_lstm_forward.1} parent=47 // pred_check
          %p446 = pneg %p425
        $region58: #{encoder_lstm_forward.1} parent=47 // pred_check_branch
          %448 = sbr.rel (%p446) target = $region60
        $region59: #{encoder_lstm_forward.1} parent=47 // pred_region
          %v449 = vld [vmem:[%s392] sm:$0xf]
          %v450 = vld [vmem:[%s392 + $0x4] sm:$0xf]
          %v451 = vld [vmem:[%s392 + $0x8] sm:$0xf]
          %v452 = vld [vmem:[%s392 + $0xc] sm:$0xf]
          %v453 = vld [vmem:[%s392 + $0x10] sm:$0xf]
          %v454 = vld [vmem:[%s392 + $0x14] sm:$0xf]
          %v455 = vld [vmem:[%s392 + $0x18] sm:$0xf]
          %v456 = vld [vmem:[%s392 + $0x1c] sm:$0xf]
          %v457 = vld [vmem:[%s392 + $0x20] sm:$0xf]
          %v458 = vld [vmem:[%s392 + $0x24] sm:$0xf]
          %v459 = vld [vmem:[%s392 + $0x28] sm:$0xf]
          %v460 = vld [vmem:[%s392 + $0x2c] sm:$0xf]
          %v461 = vld [vmem:[%s392 + $0x30] sm:$0xf]
          %v462 = vld [vmem:[%s392 + $0x34] sm:$0xf]
          %v463 = vld [vmem:[%s392 + $0x38] sm:$0xf]
          %v464 = vld [vmem:[%s392 + $0x3c] sm:$0xf]
          %v465 = vld [vmem:[%s3] sm:$0xff]
          %v466 = vld [vmem:[%s3 + $0x8] sm:$0xff]
          %v467 = vld [vmem:[%s3 + $0x10] sm:$0xff]
          %v468 = vld [vmem:[%s3 + $0x18] sm:$0xff]
          %v469 = vld [vmem:[%s3 + $0x20] sm:$0xff]
          %v470 = vld [vmem:[%s3 + $0x28] sm:$0xff]
          %v471 = vld [vmem:[%s3 + $0x30] sm:$0xff]
          %v472 = vld [vmem:[%s3 + $0x38] sm:$0xff]
          %v473 = vld [vmem:[%s5] sm:$0xf]
          %v475 = vlaneseq
          %v476 = vshrl.u32 %v475, 7
          %v477 = vsub.s32 0, %v476
          %v478 = vrot.slane %v473, %v477
          %v479 = vlaneseq
          %v480 = vshrl.u32 %v479, 7
          %v481 = vsub.s32 1, %v480
          %v482 = vrot.slane %v473, %v481
          %v483 = vlaneseq
          %v484 = vshrl.u32 %v483, 7
          %v485 = vsub.s32 2, %v484
          %v486 = vrot.slane %v473, %v485
          %v487 = vlaneseq
          %v488 = vshrl.u32 %v487, 7
          %v489 = vsub.s32 3, %v488
          %v490 = vrot.slane %v473, %v489
          %v511 = vunpack.c.l.b16 %v449
          %v512 = vunpack.c.l.b16 %v450
          %v513 = vunpack.c.l.b16 %v451
          %v514 = vunpack.c.l.b16 %v452
          %v515 = vunpack.c.l.b16 %v453
          %v516 = vunpack.c.l.b16 %v454
          %v517 = vunpack.c.l.b16 %v455
          %v518 = vunpack.c.l.b16 %v456
          %v519 = vunpack.c.l.b16 %v457
          %v520 = vunpack.c.l.b16 %v458
          %v521 = vunpack.c.l.b16 %v459
          %v522 = vunpack.c.l.b16 %v460
          %v523 = vunpack.c.l.b16 %v461
          %v524 = vunpack.c.l.b16 %v462
          %v525 = vunpack.c.l.b16 %v463
          %v526 = vunpack.c.l.b16 %v464
          %v527 = vpack.c.b16 %v512, %v511
          %v528 = vpack.c.b16 %v514, %v513
          %v529 = vpack.c.b16 %v516, %v515
          %v530 = vpack.c.b16 %v518, %v517
          %v531 = vpack.c.b16 %v520, %v519
          %v532 = vpack.c.b16 %v522, %v521
          %v533 = vpack.c.b16 %v524, %v523
          %v534 = vpack.c.b16 %v526, %v525
          %v543 = vunpack.c.l.b16 %v465
          %v544 = vunpack.c.h.b16 %v465
          %v545 = vunpack.c.l.b16 %v466
          %v546 = vunpack.c.h.b16 %v466
          %v547 = vunpack.c.l.b16 %v467
          %v548 = vunpack.c.h.b16 %v467
          %v549 = vunpack.c.l.b16 %v468
          %v550 = vunpack.c.h.b16 %v468
          %v551 = vunpack.c.l.b16 %v469
          %v552 = vunpack.c.h.b16 %v469
          %v553 = vunpack.c.l.b16 %v470
          %v554 = vunpack.c.h.b16 %v470
          %v555 = vunpack.c.l.b16 %v471
          %v556 = vunpack.c.h.b16 %v471
          %v557 = vunpack.c.l.b16 %v472
          %v558 = vunpack.c.h.b16 %v472
          %v559 = vpack.c.b16 %v547, %v543
          %v560 = vpack.c.b16 %v548, %v544
          %v561 = vpack.c.b16 %v549, %v545
          %v562 = vpack.c.b16 %v550, %v546
          %v563 = vpack.c.b16 %v555, %v551
          %v564 = vpack.c.b16 %v556, %v552
          %v565 = vpack.c.b16 %v557, %v553
          %v566 = vpack.c.b16 %v558, %v554
          %vm575 = vcmask 261120
          %v577 = vsel %vm575, %v527, 0
          %v580 = vsel %vm575, %v528, 0
          %v583 = vsel %vm575, %v529, 0
          %v586 = vsel %vm575, %v530, 0
          %v589 = vsel %vm575, %v531, 0
          %v592 = vsel %vm575, %v532, 0
          %v595 = vsel %vm575, %v533, 0
          %v598 = vsel %vm575, %v534, 0
          %600 = vmatprep.subr.bf16.mxu0 0
          %601 = vmatpush1.bf16.msra.mxu0 0
          %602 = vmatprep.subr.bf16.mxu0 0
          %603 = vmatpush1.bf16.msra.mxu0 0
          %604 = vmatprep.subr.bf16.mxu0 0
          %605 = vmatpush1.bf16.msra.mxu0 0
          %606 = vmatprep.subr.bf16.mxu0 0
          %607 = vmatpush1.bf16.msra.mxu0 0
          %608 = vmatprep.subr.bf16.mxu0 0
          %609 = vmatpush1.bf16.msra.mxu0 0
          %610 = vmatprep.subr.bf16.mxu0 0
          %611 = vmatpush1.bf16.msra.mxu0 0
          %612 = vmatprep.subr.bf16.mxu0 %v564
          %613 = vmatpush1.bf16.msra.mxu0 %v563
          %614 = vmatprep.subr.bf16.mxu0 %v560
          %615 = vmatpush1.bf16.msra.mxu0 %v559
          %616 = vmatprep.subr.bf16.mxu0 0
          %617 = vmatpush2.bf16.msra.mxu0 0
          %618 = vmatprep.subr.bf16.mxu0 0
          %619 = vmatpush2.bf16.msra.mxu0 0
          %620 = vmatprep.subr.bf16.mxu0 0
          %621 = vmatpush2.bf16.msra.mxu0 0
          %622 = vmatprep.subr.bf16.mxu0 0
          %623 = vmatpush2.bf16.msra.mxu0 0
          %624 = vmatprep.subr.bf16.mxu0 0
          %625 = vmatpush2.bf16.msra.mxu0 0
          %626 = vmatprep.subr.bf16.mxu0 0
          %627 = vmatpush2.bf16.msra.mxu0 0
          %628 = vmatprep.subr.bf16.mxu0 0
          %629 = vmatpush2.bf16.msra.mxu0 0
          %630 = vmatprep.subr.bf16.mxu0 0
          %631 = vmatpush2.bf16.msra.mxu0 0
          %632 = vmatprep.mubr.bf16.mxu0 0
          %633 = vmatmul.mubr.bf16.gmra.mxu0 %v577
          %v634 = vpop.f32.mrf.mxu0
          %v635 = vadd.f32 %v478, %v634
          %v636 = vpop.f32.mrf.mxu0
          %v637 = vadd.f32 %v482, %v636
          %v638 = vpop.f32.mrf.mxu0
          %v639 = vadd.f32 %v478, %v638
          %v640 = vpop.f32.mrf.mxu0
          %v641 = vadd.f32 %v482, %v640
          %642 = vmatprep.mubr.bf16.mxu0 0
          %643 = vmatmul.mubr.bf16.gmra.mxu0 %v580
          %v644 = vpop.f32.mrf.mxu0
          %v645 = vadd.f32 %v478, %v644
          %v646 = vpop.f32.mrf.mxu0
          %v647 = vadd.f32 %v482, %v646
          %v648 = vpop.f32.mrf.mxu0
          %v649 = vadd.f32 %v478, %v648
          %v650 = vpop.f32.mrf.mxu0
          %v651 = vadd.f32 %v482, %v650
          %652 = vmatprep.mubr.bf16.mxu0 0
          %653 = vmatmul.mubr.bf16.gmra.mxu0 %v583
          %v654 = vpop.f32.mrf.mxu0
          %v655 = vadd.f32 %v478, %v654
          %v656 = vpop.f32.mrf.mxu0
          %v657 = vadd.f32 %v482, %v656
          %v658 = vpop.f32.mrf.mxu0
          %v659 = vadd.f32 %v478, %v658
          %v660 = vpop.f32.mrf.mxu0
          %v661 = vadd.f32 %v482, %v660
          %662 = vmatprep.mubr.bf16.mxu0 0
          %663 = vmatmul.mubr.bf16.gmra.mxu0 %v586
          %v664 = vpop.f32.mrf.mxu0
          %v665 = vadd.f32 %v478, %v664
          %v666 = vpop.f32.mrf.mxu0
          %v667 = vadd.f32 %v482, %v666
          %v668 = vpop.f32.mrf.mxu0
          %v669 = vadd.f32 %v478, %v668
          %v670 = vpop.f32.mrf.mxu0
          %v671 = vadd.f32 %v482, %v670
          %672 = vmatprep.mubr.bf16.mxu0 0
          %673 = vmatmul.mubr.bf16.gmra.mxu0 %v589
          %v674 = vpop.f32.mrf.mxu0
          %v675 = vadd.f32 %v478, %v674
          %v676 = vpop.f32.mrf.mxu0
          %v677 = vadd.f32 %v482, %v676
          %v678 = vpop.f32.mrf.mxu0
          %v679 = vadd.f32 %v478, %v678
          %v680 = vpop.f32.mrf.mxu0
          %v681 = vadd.f32 %v482, %v680
          %682 = vmatprep.mubr.bf16.mxu0 0
          %683 = vmatmul.mubr.bf16.gmra.mxu0 %v592
          %v684 = vpop.f32.mrf.mxu0
          %v685 = vadd.f32 %v478, %v684
          %v686 = vpop.f32.mrf.mxu0
          %v687 = vadd.f32 %v482, %v686
          %v688 = vpop.f32.mrf.mxu0
          %v689 = vadd.f32 %v478, %v688
          %v690 = vpop.f32.mrf.mxu0
          %v691 = vadd.f32 %v482, %v690
          %692 = vmatprep.mubr.bf16.mxu0 0
          %693 = vmatmul.mubr.bf16.gmra.mxu0 %v595
          %v694 = vpop.f32.mrf.mxu0
          %v695 = vadd.f32 %v478, %v694
          %v696 = vpop.f32.mrf.mxu0
          %v697 = vadd.f32 %v482, %v696
          %v698 = vpop.f32.mrf.mxu0
          %v699 = vadd.f32 %v478, %v698
          %v700 = vpop.f32.mrf.mxu0
          %v701 = vadd.f32 %v482, %v700
          %702 = vmatprep.mubr.bf16.mxu0 0
          %703 = vmatmul.mubr.bf16.gmra.mxu0 %v598
          %v704 = vpop.f32.mrf.mxu0
          %v705 = vadd.f32 %v478, %v704
          %v706 = vpop.f32.mrf.mxu0
          %v707 = vadd.f32 %v482, %v706
          %v708 = vpop.f32.mrf.mxu0
          %v709 = vadd.f32 %v478, %v708
          %v710 = vpop.f32.mrf.mxu0
          %v711 = vadd.f32 %v482, %v710
          %712 = vdwg.mxu0
          %713 = vmatprep.subr.bf16.mxu0 0
          %714 = vmatpush1.bf16.msra.mxu0 0
          %715 = vmatprep.subr.bf16.mxu0 0
          %716 = vmatpush1.bf16.msra.mxu0 0
          %717 = vmatprep.subr.bf16.mxu0 0
          %718 = vmatpush1.bf16.msra.mxu0 0
          %719 = vmatprep.subr.bf16.mxu0 0
          %720 = vmatpush1.bf16.msra.mxu0 0
          %721 = vmatprep.subr.bf16.mxu0 0
          %722 = vmatpush1.bf16.msra.mxu0 0
          %723 = vmatprep.subr.bf16.mxu0 0
          %724 = vmatpush1.bf16.msra.mxu0 0
          %725 = vmatprep.subr.bf16.mxu0 %v566
          %726 = vmatpush1.bf16.msra.mxu0 %v565
          %727 = vmatprep.subr.bf16.mxu0 %v562
          %728 = vmatpush1.bf16.msra.mxu0 %v561
          %729 = vmatprep.subr.bf16.mxu0 0
          %730 = vmatpush2.bf16.msra.mxu0 0
          %731 = vmatprep.subr.bf16.mxu0 0
          %732 = vmatpush2.bf16.msra.mxu0 0
          %733 = vmatprep.subr.bf16.mxu0 0
          %734 = vmatpush2.bf16.msra.mxu0 0
          %735 = vmatprep.subr.bf16.mxu0 0
          %736 = vmatpush2.bf16.msra.mxu0 0
          %737 = vmatprep.subr.bf16.mxu0 0
          %738 = vmatpush2.bf16.msra.mxu0 0
          %739 = vmatprep.subr.bf16.mxu0 0
          %740 = vmatpush2.bf16.msra.mxu0 0
          %741 = vmatprep.subr.bf16.mxu0 0
          %742 = vmatpush2.bf16.msra.mxu0 0
          %743 = vmatprep.subr.bf16.mxu0 0
          %744 = vmatpush2.bf16.msra.mxu0 0
          %745 = vmatprep.mubr.bf16.mxu0 0
          %746 = vmatmul.mubr.bf16.gmra.mxu0 %v577
          %v747 = vpop.f32.mrf.mxu0
          %v748 = vadd.f32 %v486, %v747
          %v749 = vpop.f32.mrf.mxu0
          %v750 = vadd.f32 %v490, %v749
          %v751 = vpop.f32.mrf.mxu0
          %v752 = vadd.f32 %v486, %v751
          %v753 = vpop.f32.mrf.mxu0
          %v754 = vadd.f32 %v490, %v753
          %755 = vmatprep.mubr.bf16.mxu0 0
          %756 = vmatmul.mubr.bf16.gmra.mxu0 %v580
          %v757 = vpop.f32.mrf.mxu0
          %v758 = vadd.f32 %v486, %v757
          %v759 = vpop.f32.mrf.mxu0
          %v760 = vadd.f32 %v490, %v759
          %v761 = vpop.f32.mrf.mxu0
          %v762 = vadd.f32 %v486, %v761
          %v763 = vpop.f32.mrf.mxu0
          %v764 = vadd.f32 %v490, %v763
          %765 = vmatprep.mubr.bf16.mxu0 0
          %766 = vmatmul.mubr.bf16.gmra.mxu0 %v583
          %v767 = vpop.f32.mrf.mxu0
          %v768 = vadd.f32 %v486, %v767
          %v769 = vpop.f32.mrf.mxu0
          %v770 = vadd.f32 %v490, %v769
          %v771 = vpop.f32.mrf.mxu0
          %v772 = vadd.f32 %v486, %v771
          %v773 = vpop.f32.mrf.mxu0
          %v774 = vadd.f32 %v490, %v773
          %775 = vmatprep.mubr.bf16.mxu0 0
          %776 = vmatmul.mubr.bf16.gmra.mxu0 %v586
          %v777 = vpop.f32.mrf.mxu0
          %v778 = vadd.f32 %v486, %v777
          %v779 = vpop.f32.mrf.mxu0
          %v780 = vadd.f32 %v490, %v779
          %v781 = vpop.f32.mrf.mxu0
          %v782 = vadd.f32 %v486, %v781
          %v783 = vpop.f32.mrf.mxu0
          %v784 = vadd.f32 %v490, %v783
          %785 = vmatprep.mubr.bf16.mxu0 0
          %786 = vmatmul.mubr.bf16.gmra.mxu0 %v589
          %v787 = vpop.f32.mrf.mxu0
          %v788 = vadd.f32 %v486, %v787
          %v789 = vpop.f32.mrf.mxu0
          %v790 = vadd.f32 %v490, %v789
          %v791 = vpop.f32.mrf.mxu0
          %v792 = vadd.f32 %v486, %v791
          %v793 = vpop.f32.mrf.mxu0
          %v794 = vadd.f32 %v490, %v793
          %795 = vmatprep.mubr.bf16.mxu0 0
          %796 = vmatmul.mubr.bf16.gmra.mxu0 %v592
          %v797 = vpop.f32.mrf.mxu0
          %v798 = vadd.f32 %v486, %v797
          %v799 = vpop.f32.mrf.mxu0
          %v800 = vadd.f32 %v490, %v799
          %v801 = vpop.f32.mrf.mxu0
          %v802 = vadd.f32 %v486, %v801
          %v803 = vpop.f32.mrf.mxu0
          %v804 = vadd.f32 %v490, %v803
          %805 = vmatprep.mubr.bf16.mxu0 0
          %806 = vmatmul.mubr.bf16.gmra.mxu0 %v595
          %v807 = vpop.f32.mrf.mxu0
          %v808 = vadd.f32 %v486, %v807
          %v809 = vpop.f32.mrf.mxu0
          %v810 = vadd.f32 %v490, %v809
          %v811 = vpop.f32.mrf.mxu0
          %v812 = vadd.f32 %v486, %v811
          %v813 = vpop.f32.mrf.mxu0
          %v814 = vadd.f32 %v490, %v813
          %815 = vmatprep.mubr.bf16.mxu0 0
          %816 = vmatmul.mubr.bf16.gmra.mxu0 %v598
          %v817 = vpop.f32.mrf.mxu0
          %v818 = vadd.f32 %v486, %v817
          %v819 = vpop.f32.mrf.mxu0
          %v820 = vadd.f32 %v490, %v819
          %v821 = vpop.f32.mrf.mxu0
          %v822 = vadd.f32 %v486, %v821
          %v823 = vpop.f32.mrf.mxu0
          %v824 = vadd.f32 %v490, %v823
          %825 = vdwg.mxu0
          %826 = vst [vmem:[#allocation4] sm:$0xff] %v635
          %827 = vst [vmem:[#allocation4 + $0x8] sm:$0xff] %v637
          %828 = vst [vmem:[#allocation4 + $0x10] sm:$0xff] %v748
          %829 = vst [vmem:[#allocation4 + $0x18] sm:$0xff] %v750
          %830 = vst [vmem:[#allocation4 + $0x20] sm:$0xff] %v639
          %831 = vst [vmem:[#allocation4 + $0x28] sm:$0xff] %v641
          %832 = vst [vmem:[#allocation4 + $0x30] sm:$0xff] %v752
          %833 = vst [vmem:[#allocation4 + $0x38] sm:$0xff] %v754
          %834 = vst [vmem:[#allocation4 + $0x40] sm:$0xff] %v645
          %835 = vst [vmem:[#allocation4 + $0x48] sm:$0xff] %v647
          %836 = vst [vmem:[#allocation4 + $0x50] sm:$0xff] %v758
          %837 = vst [vmem:[#allocation4 + $0x58] sm:$0xff] %v760
          %838 = vst [vmem:[#allocation4 + $0x60] sm:$0xff] %v649
          %839 = vst [vmem:[#allocation4 + $0x68] sm:$0xff] %v651
          %840 = vst [vmem:[#allocation4 + $0x70] sm:$0xff] %v762
          %841 = vst [vmem:[#allocation4 + $0x78] sm:$0xff] %v764
          %842 = vst [vmem:[#allocation4 + $0x80] sm:$0xff] %v655
          %843 = vst [vmem:[#allocation4 + $0x88] sm:$0xff] %v657
          %844 = vst [vmem:[#allocation4 + $0x90] sm:$0xff] %v768
          %845 = vst [vmem:[#allocation4 + $0x98] sm:$0xff] %v770
          %846 = vst [vmem:[#allocation4 + $0xa0] sm:$0xff] %v659
          %847 = vst [vmem:[#allocation4 + $0xa8] sm:$0xff] %v661
          %848 = vst [vmem:[#allocation4 + $0xb0] sm:$0xff] %v772
          %849 = vst [vmem:[#allocation4 + $0xb8] sm:$0xff] %v774
          %850 = vst [vmem:[#allocation4 + $0xc0] sm:$0xff] %v665
          %851 = vst [vmem:[#allocation4 + $0xc8] sm:$0xff] %v667
          %852 = vst [vmem:[#allocation4 + $0xd0] sm:$0xff] %v778
          %853 = vst [vmem:[#allocation4 + $0xd8] sm:$0xff] %v780
          %854 = vst [vmem:[#allocation4 + $0xe0] sm:$0xff] %v669
          %855 = vst [vmem:[#allocation4 + $0xe8] sm:$0xff] %v671
          %856 = vst [vmem:[#allocation4 + $0xf0] sm:$0xff] %v782
          %857 = vst [vmem:[#allocation4 + $0xf8] sm:$0xff] %v784
          %858 = vst [vmem:[#allocation4 + $0x100] sm:$0xff] %v675
          %859 = vst [vmem:[#allocation4 + $0x108] sm:$0xff] %v677
          %860 = vst [vmem:[#allocation4 + $0x110] sm:$0xff] %v788
          %861 = vst [vmem:[#allocation4 + $0x118] sm:$0xff] %v790
          %862 = vst [vmem:[#allocation4 + $0x120] sm:$0xff] %v679
          %863 = vst [vmem:[#allocation4 + $0x128] sm:$0xff] %v681
          %864 = vst [vmem:[#allocation4 + $0x130] sm:$0xff] %v792
          %865 = vst [vmem:[#allocation4 + $0x138] sm:$0xff] %v794
          %866 = vst [vmem:[#allocation4 + $0x140] sm:$0xff] %v685
          %867 = vst [vmem:[#allocation4 + $0x148] sm:$0xff] %v687
          %868 = vst [vmem:[#allocation4 + $0x150] sm:$0xff] %v798
          %869 = vst [vmem:[#allocation4 + $0x158] sm:$0xff] %v800
          %870 = vst [vmem:[#allocation4 + $0x160] sm:$0xff] %v689
          %871 = vst [vmem:[#allocation4 + $0x168] sm:$0xff] %v691
          %872 = vst [vmem:[#allocation4 + $0x170] sm:$0xff] %v802
          %873 = vst [vmem:[#allocation4 + $0x178] sm:$0xff] %v804
          %874 = vst [vmem:[#allocation4 + $0x180] sm:$0xff] %v695
          %875 = vst [vmem:[#allocation4 + $0x188] sm:$0xff] %v697
          %876 = vst [vmem:[#allocation4 + $0x190] sm:$0xff] %v808
          %877 = vst [vmem:[#allocation4 + $0x198] sm:$0xff] %v810
          %878 = vst [vmem:[#allocation4 + $0x1a0] sm:$0xff] %v699
          %879 = vst [vmem:[#allocation4 + $0x1a8] sm:$0xff] %v701
          %880 = vst [vmem:[#allocation4 + $0x1b0] sm:$0xff] %v812
          %881 = vst [vmem:[#allocation4 + $0x1b8] sm:$0xff] %v814
          %882 = vst [vmem:[#allocation4 + $0x1c0] sm:$0xff] %v705
          %883 = vst [vmem:[#allocation4 + $0x1c8] sm:$0xff] %v707
          %884 = vst [vmem:[#allocation4 + $0x1d0] sm:$0xff] %v818
          %885 = vst [vmem:[#allocation4 + $0x1d8] sm:$0xff] %v820
          %886 = vst [vmem:[#allocation4 + $0x1e0] sm:$0xff] %v709
          %887 = vst [vmem:[#allocation4 + $0x1e8] sm:$0xff] %v711
          %888 = vst [vmem:[#allocation4 + $0x1f0] sm:$0xff] %v822
          %889 = vst [vmem:[#allocation4 + $0x1f8] sm:$0xff] %v824
          %v890 = vld [vmem:[%s4] sm:$0xff]
          %v891 = vld [vmem:[%s4 + $0x8] sm:$0xff]
          %v892 = vld [vmem:[%s4 + $0x10] sm:$0xff]
          %v893 = vld [vmem:[%s4 + $0x18] sm:$0xff]
          %v894 = vld [vmem:[%s4 + $0x20] sm:$0xff]
          %v895 = vld [vmem:[%s4 + $0x28] sm:$0xff]
          %v896 = vld [vmem:[%s4 + $0x30] sm:$0xff]
          %v897 = vld [vmem:[%s4 + $0x38] sm:$0xff]
          %v898 = vld [vmem:[%s4 + $0x40] sm:$0xff]
          %v899 = vld [vmem:[%s4 + $0x48] sm:$0xff]
          %v900 = vld [vmem:[%s4 + $0x50] sm:$0xff]
          %v901 = vld [vmem:[%s4 + $0x58] sm:$0xff]
          %v902 = vld [vmem:[%s4 + $0x60] sm:$0xff]
          %v903 = vld [vmem:[%s4 + $0x68] sm:$0xff]
          %v904 = vld [vmem:[%s4 + $0x70] sm:$0xff]
          %v905 = vld [vmem:[%s4 + $0x78] sm:$0xff]
          %v906 = vld [vmem:[%s4 + $0x80] sm:$0xff]
          %v907 = vld [vmem:[%s4 + $0x88] sm:$0xff]
          %v908 = vld [vmem:[%s4 + $0x90] sm:$0xff]
          %v909 = vld [vmem:[%s4 + $0x98] sm:$0xff]
          %v910 = vld [vmem:[%s4 + $0xa0] sm:$0xff]
          %v911 = vld [vmem:[%s4 + $0xa8] sm:$0xff]
          %v912 = vld [vmem:[%s4 + $0xb0] sm:$0xff]
          %v913 = vld [vmem:[%s4 + $0xb8] sm:$0xff]
          %v914 = vld [vmem:[%s4 + $0xc0] sm:$0xff]
          %v915 = vld [vmem:[%s4 + $0xc8] sm:$0xff]
          %v916 = vld [vmem:[%s4 + $0xd0] sm:$0xff]
          %v917 = vld [vmem:[%s4 + $0xd8] sm:$0xff]
          %v918 = vld [vmem:[%s4 + $0xe0] sm:$0xff]
          %v919 = vld [vmem:[%s4 + $0xe8] sm:$0xff]
          %v920 = vld [vmem:[%s4 + $0xf0] sm:$0xff]
          %v921 = vld [vmem:[%s4 + $0xf8] sm:$0xff]
          %v922 = vld [vmem:[%s399] sm:$0xff]
          %v923 = vld [vmem:[%s399 + $0x8] sm:$0xff]
          %v924 = vld [vmem:[#allocation2] sm:$0xff]
          %v925 = vld [vmem:[#allocation2 + $0x8] sm:$0xff]
          %v926 = vld [vmem:[#allocation3] sm:$0xff]
          %v927 = vld [vmem:[#allocation3 + $0x8] sm:$0xff]
          %v928 = vld [vmem:[#allocation4] sm:$0xff]
          %v929 = vld [vmem:[#allocation4 + $0x8] sm:$0xff]
          %v930 = vld [vmem:[#allocation4 + $0x10] sm:$0xff]
          %v931 = vld [vmem:[#allocation4 + $0x18] sm:$0xff]
          %v932 = vld [vmem:[#allocation4 + $0x20] sm:$0xff]
          %v933 = vld [vmem:[#allocation4 + $0x28] sm:$0xff]
          %v934 = vld [vmem:[#allocation4 + $0x30] sm:$0xff]
          %v935 = vld [vmem:[#allocation4 + $0x38] sm:$0xff]
          %v936 = vpack.c.bf16 %v925, %v924
          %v969 = vunpack.c.l.b16 %v890
          %v970 = vunpack.c.h.b16 %v890
          %v971 = vunpack.c.l.b16 %v891
          %v972 = vunpack.c.h.b16 %v891
          %v973 = vunpack.c.l.b16 %v892
          %v974 = vunpack.c.h.b16 %v892
          %v975 = vunpack.c.l.b16 %v893
          %v976 = vunpack.c.h.b16 %v893
          %v977 = vunpack.c.l.b16 %v894
          %v978 = vunpack.c.h.b16 %v894
          %v979 = vunpack.c.l.b16 %v895
          %v980 = vunpack.c.h.b16 %v895
          %v981 = vunpack.c.l.b16 %v896
          %v982 = vunpack.c.h.b16 %v896
          %v983 = vunpack.c.l.b16 %v897
          %v984 = vunpack.c.h.b16 %v897
          %v985 = vunpack.c.l.b16 %v898
          %v986 = vunpack.c.h.b16 %v898
          %v987 = vunpack.c.l.b16 %v899
          %v988 = vunpack.c.h.b16 %v899
          %v989 = vunpack.c.l.b16 %v900
          %v990 = vunpack.c.h.b16 %v900
          %v991 = vunpack.c.l.b16 %v901
          %v992 = vunpack.c.h.b16 %v901
          %v993 = vunpack.c.l.b16 %v902
          %v994 = vunpack.c.h.b16 %v902
          %v995 = vunpack.c.l.b16 %v903
          %v996 = vunpack.c.h.b16 %v903
          %v997 = vunpack.c.l.b16 %v904
          %v998 = vunpack.c.h.b16 %v904
          %v999 = vunpack.c.l.b16 %v905
          %v1000 = vunpack.c.h.b16 %v905
          %v1001 = vunpack.c.l.b16 %v906
          %v1002 = vunpack.c.h.b16 %v906
          %v1003 = vunpack.c.l.b16 %v907
          %v1004 = vunpack.c.h.b16 %v907
          %v1005 = vunpack.c.l.b16 %v908
          %v1006 = vunpack.c.h.b16 %v908
          %v1007 = vunpack.c.l.b16 %v909
          %v1008 = vunpack.c.h.b16 %v909
          %v1009 = vunpack.c.l.b16 %v910
          %v1010 = vunpack.c.h.b16 %v910
          %v1011 = vunpack.c.l.b16 %v911
          %v1012 = vunpack.c.h.b16 %v911
          %v1013 = vunpack.c.l.b16 %v912
          %v1014 = vunpack.c.h.b16 %v912
          %v1015 = vunpack.c.l.b16 %v913
          %v1016 = vunpack.c.h.b16 %v913
          %v1017 = vunpack.c.l.b16 %v914
          %v1018 = vunpack.c.h.b16 %v914
          %v1019 = vunpack.c.l.b16 %v915
          %v1020 = vunpack.c.h.b16 %v915
          %v1021 = vunpack.c.l.b16 %v916
          %v1022 = vunpack.c.h.b16 %v916
          %v1023 = vunpack.c.l.b16 %v917
          %v1024 = vunpack.c.h.b16 %v917
          %v1025 = vunpack.c.l.b16 %v918
          %v1026 = vunpack.c.h.b16 %v918
          %v1027 = vunpack.c.l.b16 %v919
          %v1028 = vunpack.c.h.b16 %v919
          %v1029 = vunpack.c.l.b16 %v920
          %v1030 = vunpack.c.h.b16 %v920
          %v1031 = vunpack.c.l.b16 %v921
          %v1032 = vunpack.c.h.b16 %v921
          %v1033 = vpack.c.b16 %v973, %v969
          %v1034 = vpack.c.b16 %v974, %v970
          %v1035 = vpack.c.b16 %v975, %v971
          %v1036 = vpack.c.b16 %v976, %v972
          %v1037 = vpack.c.b16 %v981, %v977
          %v1038 = vpack.c.b16 %v982, %v978
          %v1039 = vpack.c.b16 %v983, %v979
          %v1040 = vpack.c.b16 %v984, %v980
          %v1041 = vpack.c.b16 %v989, %v985
          %v1042 = vpack.c.b16 %v990, %v986
          %v1043 = vpack.c.b16 %v991, %v987
          %v1044 = vpack.c.b16 %v992, %v988
          %v1045 = vpack.c.b16 %v997, %v993
          %v1046 = vpack.c.b16 %v998, %v994
          %v1047 = vpack.c.b16 %v999, %v995
          %v1048 = vpack.c.b16 %v1000, %v996
          %v1049 = vpack.c.b16 %v1005, %v1001
          %v1050 = vpack.c.b16 %v1006, %v1002
          %v1051 = vpack.c.b16 %v1007, %v1003
          %v1052 = vpack.c.b16 %v1008, %v1004
          %v1053 = vpack.c.b16 %v1013, %v1009
          %v1054 = vpack.c.b16 %v1014, %v1010
          %v1055 = vpack.c.b16 %v1015, %v1011
          %v1056 = vpack.c.b16 %v1016, %v1012
          %v1057 = vpack.c.b16 %v1021, %v1017
          %v1058 = vpack.c.b16 %v1022, %v1018
          %v1059 = vpack.c.b16 %v1023, %v1019
          %v1060 = vpack.c.b16 %v1024, %v1020
          %v1061 = vpack.c.b16 %v1029, %v1025
          %v1062 = vpack.c.b16 %v1030, %v1026
          %v1063 = vpack.c.b16 %v1031, %v1027
          %v1064 = vpack.c.b16 %v1032, %v1028
          %1097 = vmatprep.subr.bf16.mxu0 %v1062
          %1098 = vmatpush1.bf16.msra.mxu0 %v1061
          %1099 = vmatprep.subr.bf16.mxu0 %v1058
          %1100 = vmatpush1.bf16.msra.mxu0 %v1057
          %1101 = vmatprep.subr.bf16.mxu0 %v1054
          %1102 = vmatpush1.bf16.msra.mxu0 %v1053
          %1103 = vmatprep.subr.bf16.mxu0 %v1050
          %1104 = vmatpush1.bf16.msra.mxu0 %v1049
          %1105 = vmatprep.subr.bf16.mxu0 %v1046
          %1106 = vmatpush1.bf16.msra.mxu0 %v1045
          %1107 = vmatprep.subr.bf16.mxu0 %v1042
          %1108 = vmatpush1.bf16.msra.mxu0 %v1041
          %1109 = vmatprep.subr.bf16.mxu0 %v1038
          %1110 = vmatpush1.bf16.msra.mxu0 %v1037
          %1111 = vmatprep.subr.bf16.mxu0 %v1034
          %1112 = vmatpush1.bf16.msra.mxu0 %v1033
          %1113 = vmatprep.subr.bf16.mxu0 0
          %1114 = vmatpush2.bf16.msra.mxu0 0
          %1115 = vmatprep.subr.bf16.mxu0 0
          %1116 = vmatpush2.bf16.msra.mxu0 0
          %1117 = vmatprep.subr.bf16.mxu0 0
          %1118 = vmatpush2.bf16.msra.mxu0 0
          %1119 = vmatprep.subr.bf16.mxu0 0
          %1120 = vmatpush2.bf16.msra.mxu0 0
          %1121 = vmatprep.subr.bf16.mxu0 0
          %1122 = vmatpush2.bf16.msra.mxu0 0
          %1123 = vmatprep.subr.bf16.mxu0 0
          %1124 = vmatpush2.bf16.msra.mxu0 0
          %1125 = vmatprep.subr.bf16.mxu0 0
          %1126 = vmatpush2.bf16.msra.mxu0 0
          %1127 = vmatprep.subr.bf16.mxu0 0
          %1128 = vmatpush2.bf16.msra.mxu0 0
          %1129 = vmatprep.mubr.bf16.mxu0 0
          %1130 = vmatmul.mubr.bf16.gmra.mxu0 %v936
          %v1131 = vpop.f32.mrf.mxu0
          %v1132 = vadd.f32 0.0, %v1131
          %v1133 = vpop.f32.mrf.mxu0
          %v1134 = vadd.f32 0.0, %v1133
          %v1135 = vpop.f32.mrf.mxu0
          %v1136 = vadd.f32 0.0, %v1135
          %v1137 = vpop.f32.mrf.mxu0
          %v1138 = vadd.f32 0.0, %v1137
          %1139 = vdwg.mxu0
          %1140 = vmatprep.subr.bf16.mxu0 %v1064
          %1141 = vmatpush1.bf16.msra.mxu0 %v1063
          %1142 = vmatprep.subr.bf16.mxu0 %v1060
          %1143 = vmatpush1.bf16.msra.mxu0 %v1059
          %1144 = vmatprep.subr.bf16.mxu0 %v1056
          %1145 = vmatpush1.bf16.msra.mxu0 %v1055
          %1146 = vmatprep.subr.bf16.mxu0 %v1052
          %1147 = vmatpush1.bf16.msra.mxu0 %v1051
          %1148 = vmatprep.subr.bf16.mxu0 %v1048
          %1149 = vmatpush1.bf16.msra.mxu0 %v1047
          %1150 = vmatprep.subr.bf16.mxu0 %v1044
          %1151 = vmatpush1.bf16.msra.mxu0 %v1043
          %1152 = vmatprep.subr.bf16.mxu0 %v1040
          %1153 = vmatpush1.bf16.msra.mxu0 %v1039
          %1154 = vmatprep.subr.bf16.mxu0 %v1036
          %1155 = vmatpush1.bf16.msra.mxu0 %v1035
          %1156 = vmatprep.subr.bf16.mxu0 0
          %1157 = vmatpush2.bf16.msra.mxu0 0
          %1158 = vmatprep.subr.bf16.mxu0 0
          %1159 = vmatpush2.bf16.msra.mxu0 0
          %1160 = vmatprep.subr.bf16.mxu0 0
          %1161 = vmatpush2.bf16.msra.mxu0 0
          %1162 = vmatprep.subr.bf16.mxu0 0
          %1163 = vmatpush2.bf16.msra.mxu0 0
          %1164 = vmatprep.subr.bf16.mxu0 0
          %1165 = vmatpush2.bf16.msra.mxu0 0
          %1166 = vmatprep.subr.bf16.mxu0 0
          %1167 = vmatpush2.bf16.msra.mxu0 0
          %1168 = vmatprep.subr.bf16.mxu0 0
          %1169 = vmatpush2.bf16.msra.mxu0 0
          %1170 = vmatprep.subr.bf16.mxu0 0
          %1171 = vmatpush2.bf16.msra.mxu0 0
          %1172 = vmatprep.mubr.bf16.mxu0 0
          %1173 = vmatmul.mubr.bf16.gmra.mxu0 %v936
          %v1174 = vpop.f32.mrf.mxu0
          %v1175 = vadd.f32 0.0, %v1174
          %v1176 = vpop.f32.mrf.mxu0
          %v1177 = vadd.f32 0.0, %v1176
          %v1178 = vpop.f32.mrf.mxu0
          %v1179 = vadd.f32 0.0, %v1178
          %v1180 = vpop.f32.mrf.mxu0
          %v1181 = vadd.f32 0.0, %v1180
          %1182 = vdwg.mxu0
          %v1183 = vadd.f32 %v928, %v1132
          %v1184 = vadd.f32 %v929, %v1134
          %v1185 = vadd.f32 %v930, %v1175
          %v1186 = vadd.f32 %v931, %v1177
          %v1187 = vadd.f32 %v932, %v1136
          %v1188 = vadd.f32 %v933, %v1138
          %v1189 = vadd.f32 %v934, %v1179
          %v1190 = vadd.f32 %v935, %v1181
          %v1191 = vxor.u32 %v1183, 2147483648
          %v1192 = vxor.u32 %v1187, 2147483648
          %v1193 = vmul.f32 %v1191, 1.442695
          %v1194 = vpow.pop %v1193
          %v1195 = vmul.f32 %v1192, 1.442695
          %v1196 = vpow.pop %v1195
          %v1197 = vadd.f32 %v1194, 1.0
          %v1198 = vadd.f32 %v1196, 1.0
          %v1199 = vrcp.pop %v1197
          %v1200 = vmul.f32 1.0, %v1199
          %v1201 = vrcp.pop %v1198
          %v1202 = vmul.f32 1.0, %v1201
          %v1203 = vxor.u32 %v1184, 2147483648
          %v1204 = vxor.u32 %v1188, 2147483648
          %v1205 = vmul.f32 %v1203, 1.442695
          %v1206 = vpow.pop %v1205
          %v1207 = vmul.f32 %v1204, 1.442695
          %v1208 = vpow.pop %v1207
          %v1209 = vadd.f32 %v1206, 1.0
          %v1210 = vadd.f32 %v1208, 1.0
          %v1211 = vrcp.pop %v1209
          %v1212 = vmul.f32 1.0, %v1211
          %v1213 = vrcp.pop %v1210
          %v1214 = vmul.f32 1.0, %v1213
          %v1215 = vtanh.pop %v1185
          %v1216 = vtanh.pop %v1189
          %v1217 = vxor.u32 %v1186, 2147483648
          %v1218 = vxor.u32 %v1190, 2147483648
          %v1219 = vmul.f32 %v1217, 1.442695
          %v1220 = vpow.pop %v1219
          %v1221 = vmul.f32 %v1218, 1.442695
          %v1222 = vpow.pop %v1221
          %v1223 = vadd.f32 %v1220, 1.0
          %v1224 = vadd.f32 %v1222, 1.0
          %v1225 = vrcp.pop %v1223
          %v1226 = vmul.f32 1.0, %v1225
          %v1227 = vrcp.pop %v1224
          %v1228 = vmul.f32 1.0, %v1227
          %v1229 = vmul.f32 %v1212, %v926
          %v1230 = vmul.f32 %v1214, %v927
          %v1231 = vmul.f32 %v1200, %v1215
          %v1232 = vmul.f32 %v1202, %v1216
          %v1233 = vadd.f32 %v1229, %v1231
          %v1234 = vadd.f32 %v1230, %v1232
          %v1235 = vtanh.pop %v1233
          %v1236 = vtanh.pop %v1234
          %v1237 = vmul.f32 %v1226, %v1235
          %v1238 = vmul.f32 %v1228, %v1236
          %v1239 = vstv %s423
          %vm1240 = vcmp.lt.s32.totalorder %v1239, %v922
          %vm1241 = vcmp.lt.s32.totalorder %v1239, %v923
          %v1242 = vsel %vm1240, 1, 0
          %v1243 = vsel %vm1241, 1, 0
          %1244 = vset.pattern.permute.xlu0 0
          %1245 = vperm.xlu0 %1244, %v1242
          %v1246 = vpop.permute.xlu0 %1245
          %1247 = vset.pattern.permute.xlu0 0
          %1248 = vperm.xlu0 %1247, %v1243
          %v1249 = vpop.permute.xlu0 %1248
          %vm1250 = vcmp.eq.s32.totalorder %v1246, 1
          %vm1251 = vcmp.eq.s32.totalorder %v1249, 1
          %v1252 = vsel %vm1250, %v1237, 0.0
          %v1253 = vsel %vm1251, %v1238, 0.0
          %v1256 = vcombine.high %v1252, %v1252
          %v1258 = vunpack.c.l.s4 1966171168
          %v1259 = vunpack.c.0.s8 %v1258
          %v1260 = vlaneseq
          %v1261 = vshrl.u32 %v1260, 7
          %v1262 = vsub.s32 %v1259, %v1261
          %v1263 = vrot.slane %v1252, %v1262
          %v1265 = vunpack.c.l.s4 1966171168
          %v1266 = vunpack.c.0.s8 %v1265
          %v1267 = vlaneseq
          %v1268 = vshrl.u32 %v1267, 7
          %v1269 = vsub.s32 %v1266, %v1268
          %v1270 = vrot.slane %v1256, %v1269
          %v1271 = vcombine.high %v1263, %v1263
          %v1272 = vcombine.high %v1270, %v1270
          %v1274 = vunpack.c.l.s4 1966171168
          %v1275 = vunpack.c.0.s8 %v1274
          %v1276 = vlaneseq
          %v1277 = vshrl.u32 %v1276, 7
          %v1278 = vsub.s32 %v1275, %v1277
          %v1279 = vrot.slane %v1263, %v1278
          %v1281 = vunpack.c.l.s4 1966171168
          %v1282 = vunpack.c.0.s8 %v1281
          %v1283 = vlaneseq
          %v1284 = vshrl.u32 %v1283, 7
          %v1285 = vsub.s32 %v1282, %v1284
          %v1286 = vrot.slane %v1270, %v1285
          %v1288 = vunpack.c.l.s4 1966171168
          %v1289 = vunpack.c.0.s8 %v1288
          %v1290 = vlaneseq
          %v1291 = vshrl.u32 %v1290, 7
          %v1292 = vsub.s32 %v1289, %v1291
          %v1293 = vrot.slane %v1271, %v1292
          %v1295 = vunpack.c.l.s4 1966171168
          %v1296 = vunpack.c.0.s8 %v1295
          %v1297 = vlaneseq
          %v1298 = vshrl.u32 %v1297, 7
          %v1299 = vsub.s32 %v1296, %v1298
          %v1300 = vrot.slane %v1272, %v1299
          %v1301 = vcombine.high %v1279, %v1279
          %v1302 = vcombine.high %v1286, %v1286
          %v1303 = vcombine.high %v1293, %v1293
          %v1304 = vcombine.high %v1300, %v1300
          %v1305 = vcombine.high %v1253, %v1253
          %v1307 = vunpack.c.l.s4 1966171168
          %v1308 = vunpack.c.0.s8 %v1307
          %v1309 = vlaneseq
          %v1310 = vshrl.u32 %v1309, 7
          %v1311 = vsub.s32 %v1308, %v1310
          %v1312 = vrot.slane %v1253, %v1311
          %v1314 = vunpack.c.l.s4 1966171168
          %v1315 = vunpack.c.0.s8 %v1314
          %v1316 = vlaneseq
          %v1317 = vshrl.u32 %v1316, 7
          %v1318 = vsub.s32 %v1315, %v1317
          %v1319 = vrot.slane %v1305, %v1318
          %v1320 = vcombine.high %v1312, %v1312
          %v1321 = vcombine.high %v1319, %v1319
          %v1323 = vunpack.c.l.s4 1966171168
          %v1324 = vunpack.c.0.s8 %v1323
          %v1325 = vlaneseq
          %v1326 = vshrl.u32 %v1325, 7
          %v1327 = vsub.s32 %v1324, %v1326
          %v1328 = vrot.slane %v1312, %v1327
          %v1330 = vunpack.c.l.s4 1966171168
          %v1331 = vunpack.c.0.s8 %v1330
          %v1332 = vlaneseq
          %v1333 = vshrl.u32 %v1332, 7
          %v1334 = vsub.s32 %v1331, %v1333
          %v1335 = vrot.slane %v1319, %v1334
          %v1337 = vunpack.c.l.s4 1966171168
          %v1338 = vunpack.c.0.s8 %v1337
          %v1339 = vlaneseq
          %v1340 = vshrl.u32 %v1339, 7
          %v1341 = vsub.s32 %v1338, %v1340
          %v1342 = vrot.slane %v1320, %v1341
          %v1344 = vunpack.c.l.s4 1966171168
          %v1345 = vunpack.c.0.s8 %v1344
          %v1346 = vlaneseq
          %v1347 = vshrl.u32 %v1346, 7
          %v1348 = vsub.s32 %v1345, %v1347
          %v1349 = vrot.slane %v1321, %v1348
          %v1350 = vcombine.high %v1328, %v1328
          %v1351 = vcombine.high %v1335, %v1335
          %v1352 = vcombine.high %v1342, %v1342
          %v1353 = vcombine.high %v1349, %v1349
          %1370 = vst [vmem:[%s368] sm:$0x1] %v1279
          %1371 = vst [vmem:[%s368 + $0x8] sm:$0x1] %v1293
          %1372 = vst [vmem:[%s368 + $0x10] sm:$0x1] %v1301
          %1373 = vst [vmem:[%s368 + $0x18] sm:$0x1] %v1303
          %1374 = vst [vmem:[%s368 + $0x20] sm:$0x1] %v1286
          %1375 = vst [vmem:[%s368 + $0x28] sm:$0x1] %v1300
          %1376 = vst [vmem:[%s368 + $0x30] sm:$0x1] %v1302
          %1377 = vst [vmem:[%s368 + $0x38] sm:$0x1] %v1304
          %1378 = vst [vmem:[%s368 + $0x40] sm:$0x1] %v1328
          %1379 = vst [vmem:[%s368 + $0x48] sm:$0x1] %v1342
          %1380 = vst [vmem:[%s368 + $0x50] sm:$0x1] %v1350
          %1381 = vst [vmem:[%s368 + $0x58] sm:$0x1] %v1352
          %1382 = vst [vmem:[%s368 + $0x60] sm:$0x1] %v1335
          %1383 = vst [vmem:[%s368 + $0x68] sm:$0x1] %v1349
          %1384 = vst [vmem:[%s368 + $0x70] sm:$0x1] %v1351
          %1385 = vst [vmem:[%s368 + $0x78] sm:$0x1] %v1353
          %v1386 = vsel %vm1250, %v1237, %v924
          %v1387 = vsel %vm1251, %v1238, %v925
          %v1388 = vsel %vm1250, %v1233, %v926
          %v1389 = vsel %vm1251, %v1234, %v927
          %s1390 = sadd.s32 %s423, 1
          %v1391 = vld [vmem:[#allocation4 + $0x40] sm:$0xff]
          %v1392 = vld [vmem:[#allocation4 + $0x48] sm:$0xff]
          %v1393 = vld [vmem:[#allocation4 + $0x50] sm:$0xff]
          %v1394 = vld [vmem:[#allocation4 + $0x58] sm:$0xff]
          %v1395 = vld [vmem:[#allocation4 + $0x60] sm:$0xff]
          %v1396 = vld [vmem:[#allocation4 + $0x68] sm:$0xff]
          %v1397 = vld [vmem:[#allocation4 + $0x70] sm:$0xff]
          %v1398 = vld [vmem:[#allocation4 + $0x78] sm:$0xff]
          %v1399 = vpack.c.bf16 %v1387, %v1386
          %1400 = vmatprep.subr.bf16.mxu0 %v1062
          %1401 = vmatpush1.bf16.msra.mxu0 %v1061
          %1402 = vmatprep.subr.bf16.mxu0 %v1058
          %1403 = vmatpush1.bf16.msra.mxu0 %v1057
          %1404 = vmatprep.subr.bf16.mxu0 %v1054
          %1405 = vmatpush1.bf16.msra.mxu0 %v1053
          %1406 = vmatprep.subr.bf16.mxu0 %v1050
          %1407 = vmatpush1.bf16.msra.mxu0 %v1049
          %1408 = vmatprep.subr.bf16.mxu0 %v1046
          %1409 = vmatpush1.bf16.msra.mxu0 %v1045
          %1410 = vmatprep.subr.bf16.mxu0 %v1042
          %1411 = vmatpush1.bf16.msra.mxu0 %v1041
          %1412 = vmatprep.subr.bf16.mxu0 %v1038
          %1413 = vmatpush1.bf16.msra.mxu0 %v1037
          %1414 = vmatprep.subr.bf16.mxu0 %v1034
          %1415 = vmatpush1.bf16.msra.mxu0 %v1033
          %1416 = vmatprep.subr.bf16.mxu0 0
          %1417 = vmatpush2.bf16.msra.mxu0 0
          %1418 = vmatprep.subr.bf16.mxu0 0
          %1419 = vmatpush2.bf16.msra.mxu0 0
          %1420 = vmatprep.subr.bf16.mxu0 0
          %1421 = vmatpush2.bf16.msra.mxu0 0
          %1422 = vmatprep.subr.bf16.mxu0 0
          %1423 = vmatpush2.bf16.msra.mxu0 0
          %1424 = vmatprep.subr.bf16.mxu0 0
          %1425 = vmatpush2.bf16.msra.mxu0 0
          %1426 = vmatprep.subr.bf16.mxu0 0
          %1427 = vmatpush2.bf16.msra.mxu0 0
          %1428 = vmatprep.subr.bf16.mxu0 0
          %1429 = vmatpush2.bf16.msra.mxu0 0
          %1430 = vmatprep.subr.bf16.mxu0 0
          %1431 = vmatpush2.bf16.msra.mxu0 0
          %1432 = vmatprep.mubr.bf16.mxu0 0
          %1433 = vmatmul.mubr.bf16.gmra.mxu0 %v1399
          %v1434 = vpop.f32.mrf.mxu0
          %v1435 = vadd.f32 0.0, %v1434
          %v1436 = vpop.f32.mrf.mxu0
          %v1437 = vadd.f32 0.0, %v1436
          %v1438 = vpop.f32.mrf.mxu0
          %v1439 = vadd.f32 0.0, %v1438
          %v1440 = vpop.f32.mrf.mxu0
          %v1441 = vadd.f32 0.0, %v1440
          %1442 = vdwg.mxu0
          %1443 = vmatprep.subr.bf16.mxu0 %v1064
          %1444 = vmatpush1.bf16.msra.mxu0 %v1063
          %1445 = vmatprep.subr.bf16.mxu0 %v1060
          %1446 = vmatpush1.bf16.msra.mxu0 %v1059
          %1447 = vmatprep.subr.bf16.mxu0 %v1056
          %1448 = vmatpush1.bf16.msra.mxu0 %v1055
          %1449 = vmatprep.subr.bf16.mxu0 %v1052
          %1450 = vmatpush1.bf16.msra.mxu0 %v1051
          %1451 = vmatprep.subr.bf16.mxu0 %v1048
          %1452 = vmatpush1.bf16.msra.mxu0 %v1047
          %1453 = vmatprep.subr.bf16.mxu0 %v1044
          %1454 = vmatpush1.bf16.msra.mxu0 %v1043
          %1455 = vmatprep.subr.bf16.mxu0 %v1040
          %1456 = vmatpush1.bf16.msra.mxu0 %v1039
          %1457 = vmatprep.subr.bf16.mxu0 %v1036
          %1458 = vmatpush1.bf16.msra.mxu0 %v1035
          %1459 = vmatprep.subr.bf16.mxu0 0
          %1460 = vmatpush2.bf16.msra.mxu0 0
          %1461 = vmatprep.subr.bf16.mxu0 0
          %1462 = vmatpush2.bf16.msra.mxu0 0
          %1463 = vmatprep.subr.bf16.mxu0 0
          %1464 = vmatpush2.bf16.msra.mxu0 0
          %1465 = vmatprep.subr.bf16.mxu0 0
          %1466 = vmatpush2.bf16.msra.mxu0 0
          %1467 = vmatprep.subr.bf16.mxu0 0
          %1468 = vmatpush2.bf16.msra.mxu0 0
          %1469 = vmatprep.subr.bf16.mxu0 0
          %1470 = vmatpush2.bf16.msra.mxu0 0
          %1471 = vmatprep.subr.bf16.mxu0 0
          %1472 = vmatpush2.bf16.msra.mxu0 0
          %1473 = vmatprep.subr.bf16.mxu0 0
          %1474 = vmatpush2.bf16.msra.mxu0 0
          %1475 = vmatprep.mubr.bf16.mxu0 0
          %1476 = vmatmul.mubr.bf16.gmra.mxu0 %v1399
          %v1477 = vpop.f32.mrf.mxu0
          %v1478 = vadd.f32 0.0, %v1477
          %v1479 = vpop.f32.mrf.mxu0
          %v1480 = vadd.f32 0.0, %v1479
          %v1481 = vpop.f32.mrf.mxu0
          %v1482 = vadd.f32 0.0, %v1481
          %v1483 = vpop.f32.mrf.mxu0
          %v1484 = vadd.f32 0.0, %v1483
          %1485 = vdwg.mxu0
          %v1486 = vadd.f32 %v1391, %v1435
          %v1487 = vadd.f32 %v1392, %v1437
          %v1488 = vadd.f32 %v1393, %v1478
          %v1489 = vadd.f32 %v1394, %v1480
          %v1490 = vadd.f32 %v1395, %v1439
          %v1491 = vadd.f32 %v1396, %v1441
          %v1492 = vadd.f32 %v1397, %v1482
          %v1493 = vadd.f32 %v1398, %v1484
          %v1494 = vxor.u32 %v1486, 2147483648
          %v1495 = vxor.u32 %v1490, 2147483648
          %v1496 = vmul.f32 %v1494, 1.442695
          %v1497 = vpow.pop %v1496
          %v1498 = vmul.f32 %v1495, 1.442695
          %v1499 = vpow.pop %v1498
          %v1500 = vadd.f32 %v1497, 1.0
          %v1501 = vadd.f32 %v1499, 1.0
          %v1502 = vrcp.pop %v1500
          %v1503 = vmul.f32 1.0, %v1502
          %v1504 = vrcp.pop %v1501
          %v1505 = vmul.f32 1.0, %v1504
          %v1506 = vxor.u32 %v1487, 2147483648
          %v1507 = vxor.u32 %v1491, 2147483648
          %v1508 = vmul.f32 %v1506, 1.442695
          %v1509 = vpow.pop %v1508
          %v1510 = vmul.f32 %v1507, 1.442695
          %v1511 = vpow.pop %v1510
          %v1512 = vadd.f32 %v1509, 1.0
          %v1513 = vadd.f32 %v1511, 1.0
          %v1514 = vrcp.pop %v1512
          %v1515 = vmul.f32 1.0, %v1514
          %v1516 = vrcp.pop %v1513
          %v1517 = vmul.f32 1.0, %v1516
          %v1518 = vtanh.pop %v1488
          %v1519 = vtanh.pop %v1492
          %v1520 = vxor.u32 %v1489, 2147483648
          %v1521 = vxor.u32 %v1493, 2147483648
          %v1522 = vmul.f32 %v1520, 1.442695
          %v1523 = vpow.pop %v1522
          %v1524 = vmul.f32 %v1521, 1.442695
          %v1525 = vpow.pop %v1524
          %v1526 = vadd.f32 %v1523, 1.0
          %v1527 = vadd.f32 %v1525, 1.0
          %v1528 = vrcp.pop %v1526
          %v1529 = vmul.f32 1.0, %v1528
          %v1530 = vrcp.pop %v1527
          %v1531 = vmul.f32 1.0, %v1530
          %v1532 = vmul.f32 %v1515, %v1388
          %v1533 = vmul.f32 %v1517, %v1389
          %v1534 = vmul.f32 %v1503, %v1518
          %v1535 = vmul.f32 %v1505, %v1519
          %v1536 = vadd.f32 %v1532, %v1534
          %v1537 = vadd.f32 %v1533, %v1535
          %v1538 = vtanh.pop %v1536
          %v1539 = vtanh.pop %v1537
          %v1540 = vmul.f32 %v1529, %v1538
          %v1541 = vmul.f32 %v1531, %v1539
          %v1542 = vstv %s1390
          %vm1543 = vcmp.lt.s32.totalorder %v1542, %v922
          %vm1544 = vcmp.lt.s32.totalorder %v1542, %v923
          %v1545 = vsel %vm1543, 1, 0
          %v1546 = vsel %vm1544, 1, 0
          %1547 = vset.pattern.permute.xlu0 0
          %1548 = vperm.xlu0 %1547, %v1545
          %v1549 = vpop.permute.xlu0 %1548
          %1550 = vset.pattern.permute.xlu0 0
          %1551 = vperm.xlu0 %1550, %v1546
          %v1552 = vpop.permute.xlu0 %1551
          %vm1553 = vcmp.eq.s32.totalorder %v1549, 1
          %vm1554 = vcmp.eq.s32.totalorder %v1552, 1
          %v1555 = vsel %vm1553, %v1540, 0.0
          %v1556 = vsel %vm1554, %v1541, 0.0
          %v1559 = vcombine.high %v1555, %v1555
          %v1561 = vunpack.c.l.s4 1966171168
          %v1562 = vunpack.c.0.s8 %v1561
          %v1563 = vlaneseq
          %v1564 = vshrl.u32 %v1563, 7
          %v1565 = vsub.s32 %v1562, %v1564
          %v1566 = vrot.slane %v1555, %v1565
          %v1568 = vunpack.c.l.s4 1966171168
          %v1569 = vunpack.c.0.s8 %v1568
          %v1570 = vlaneseq
          %v1571 = vshrl.u32 %v1570, 7
          %v1572 = vsub.s32 %v1569, %v1571
          %v1573 = vrot.slane %v1559, %v1572
          %v1574 = vcombine.high %v1566, %v1566
          %v1575 = vcombine.high %v1573, %v1573
          %v1577 = vunpack.c.l.s4 1966171168
          %v1578 = vunpack.c.0.s8 %v1577
          %v1579 = vlaneseq
          %v1580 = vshrl.u32 %v1579, 7
          %v1581 = vsub.s32 %v1578, %v1580
          %v1582 = vrot.slane %v1566, %v1581
          %v1584 = vunpack.c.l.s4 1966171168
          %v1585 = vunpack.c.0.s8 %v1584
          %v1586 = vlaneseq
          %v1587 = vshrl.u32 %v1586, 7
          %v1588 = vsub.s32 %v1585, %v1587
          %v1589 = vrot.slane %v1573, %v1588
          %v1591 = vunpack.c.l.s4 1966171168
          %v1592 = vunpack.c.0.s8 %v1591
          %v1593 = vlaneseq
          %v1594 = vshrl.u32 %v1593, 7
          %v1595 = vsub.s32 %v1592, %v1594
          %v1596 = vrot.slane %v1574, %v1595
          %v1598 = vunpack.c.l.s4 1966171168
          %v1599 = vunpack.c.0.s8 %v1598
          %v1600 = vlaneseq
          %v1601 = vshrl.u32 %v1600, 7
          %v1602 = vsub.s32 %v1599, %v1601
          %v1603 = vrot.slane %v1575, %v1602
          %v1604 = vcombine.high %v1582, %v1582
          %v1605 = vcombine.high %v1589, %v1589
          %v1606 = vcombine.high %v1596, %v1596
          %v1607 = vcombine.high %v1603, %v1603
          %v1608 = vcombine.high %v1556, %v1556
          %v1610 = vunpack.c.l.s4 1966171168
          %v1611 = vunpack.c.0.s8 %v1610
          %v1612 = vlaneseq
          %v1613 = vshrl.u32 %v1612, 7
          %v1614 = vsub.s32 %v1611, %v1613
          %v1615 = vrot.slane %v1556, %v1614
          %v1617 = vunpack.c.l.s4 1966171168
          %v1618 = vunpack.c.0.s8 %v1617
          %v1619 = vlaneseq
          %v1620 = vshrl.u32 %v1619, 7
          %v1621 = vsub.s32 %v1618, %v1620
          %v1622 = vrot.slane %v1608, %v1621
          %v1623 = vcombine.high %v1615, %v1615
          %v1624 = vcombine.high %v1622, %v1622
          %v1626 = vunpack.c.l.s4 1966171168
          %v1627 = vunpack.c.0.s8 %v1626
          %v1628 = vlaneseq
          %v1629 = vshrl.u32 %v1628, 7
          %v1630 = vsub.s32 %v1627, %v1629
          %v1631 = vrot.slane %v1615, %v1630
          %v1633 = vunpack.c.l.s4 1966171168
          %v1634 = vunpack.c.0.s8 %v1633
          %v1635 = vlaneseq
          %v1636 = vshrl.u32 %v1635, 7
          %v1637 = vsub.s32 %v1634, %v1636
          %v1638 = vrot.slane %v1622, %v1637
          %v1640 = vunpack.c.l.s4 1966171168
          %v1641 = vunpack.c.0.s8 %v1640
          %v1642 = vlaneseq
          %v1643 = vshrl.u32 %v1642, 7
          %v1644 = vsub.s32 %v1641, %v1643
          %v1645 = vrot.slane %v1623, %v1644
          %v1647 = vunpack.c.l.s4 1966171168
          %v1648 = vunpack.c.0.s8 %v1647
          %v1649 = vlaneseq
          %v1650 = vshrl.u32 %v1649, 7
          %v1651 = vsub.s32 %v1648, %v1650
          %v1652 = vrot.slane %v1624, %v1651
          %v1653 = vcombine.high %v1631, %v1631
          %v1654 = vcombine.high %v1638, %v1638
          %v1655 = vcombine.high %v1645, %v1645
          %v1656 = vcombine.high %v1652, %v1652
          %1673 = vst [vmem:[%s368 + $0x1] sm:$0x1] %v1582
          %1674 = vst [vmem:[%s368 + $0x9] sm:$0x1] %v1596
          %1675 = vst [vmem:[%s368 + $0x11] sm:$0x1] %v1604
          %1676 = vst [vmem:[%s368 + $0x19] sm:$0x1] %v1606
          %1677 = vst [vmem:[%s368 + $0x21] sm:$0x1] %v1589
          %1678 = vst [vmem:[%s368 + $0x29] sm:$0x1] %v1603
          %1679 = vst [vmem:[%s368 + $0x31] sm:$0x1] %v1605
          %1680 = vst [vmem:[%s368 + $0x39] sm:$0x1] %v1607
          %1681 = vst [vmem:[%s368 + $0x41] sm:$0x1] %v1631
          %1682 = vst [vmem:[%s368 + $0x49] sm:$0x1] %v1645
          %1683 = vst [vmem:[%s368 + $0x51] sm:$0x1] %v1653
          %1684 = vst [vmem:[%s368 + $0x59] sm:$0x1] %v1655
          %1685 = vst [vmem:[%s368 + $0x61] sm:$0x1] %v1638
          %1686 = vst [vmem:[%s368 + $0x69] sm:$0x1] %v1652
          %1687 = vst [vmem:[%s368 + $0x71] sm:$0x1] %v1654
          %1688 = vst [vmem:[%s368 + $0x79] sm:$0x1] %v1656
          %v1689 = vsel %vm1553, %v1540, %v1386
          %v1690 = vsel %vm1554, %v1541, %v1387
          %v1691 = vsel %vm1553, %v1536, %v1388
          %v1692 = vsel %vm1554, %v1537, %v1389
          %s1693 = sadd.s32 %s423, 2
          %v1694 = vld [vmem:[#allocation4 + $0x80] sm:$0xff]
          %v1695 = vld [vmem:[#allocation4 + $0x88] sm:$0xff]
          %v1696 = vld [vmem:[#allocation4 + $0x90] sm:$0xff]
          %v1697 = vld [vmem:[#allocation4 + $0x98] sm:$0xff]
          %v1698 = vld [vmem:[#allocation4 + $0xa0] sm:$0xff]
          %v1699 = vld [vmem:[#allocation4 + $0xa8] sm:$0xff]
          %v1700 = vld [vmem:[#allocation4 + $0xb0] sm:$0xff]
          %v1701 = vld [vmem:[#allocation4 + $0xb8] sm:$0xff]
          %v1702 = vpack.c.bf16 %v1690, %v1689
          %1703 = vmatprep.subr.bf16.mxu0 %v1062
          %1704 = vmatpush1.bf16.msra.mxu0 %v1061
          %1705 = vmatprep.subr.bf16.mxu0 %v1058
          %1706 = vmatpush1.bf16.msra.mxu0 %v1057
          %1707 = vmatprep.subr.bf16.mxu0 %v1054
          %1708 = vmatpush1.bf16.msra.mxu0 %v1053
          %1709 = vmatprep.subr.bf16.mxu0 %v1050
          %1710 = vmatpush1.bf16.msra.mxu0 %v1049
          %1711 = vmatprep.subr.bf16.mxu0 %v1046
          %1712 = vmatpush1.bf16.msra.mxu0 %v1045
          %1713 = vmatprep.subr.bf16.mxu0 %v1042
          %1714 = vmatpush1.bf16.msra.mxu0 %v1041
          %1715 = vmatprep.subr.bf16.mxu0 %v1038
          %1716 = vmatpush1.bf16.msra.mxu0 %v1037
          %1717 = vmatprep.subr.bf16.mxu0 %v1034
          %1718 = vmatpush1.bf16.msra.mxu0 %v1033
          %1719 = vmatprep.subr.bf16.mxu0 0
          %1720 = vmatpush2.bf16.msra.mxu0 0
          %1721 = vmatprep.subr.bf16.mxu0 0
          %1722 = vmatpush2.bf16.msra.mxu0 0
          %1723 = vmatprep.subr.bf16.mxu0 0
          %1724 = vmatpush2.bf16.msra.mxu0 0
          %1725 = vmatprep.subr.bf16.mxu0 0
          %1726 = vmatpush2.bf16.msra.mxu0 0
          %1727 = vmatprep.subr.bf16.mxu0 0
          %1728 = vmatpush2.bf16.msra.mxu0 0
          %1729 = vmatprep.subr.bf16.mxu0 0
          %1730 = vmatpush2.bf16.msra.mxu0 0
          %1731 = vmatprep.subr.bf16.mxu0 0
          %1732 = vmatpush2.bf16.msra.mxu0 0
          %1733 = vmatprep.subr.bf16.mxu0 0
          %1734 = vmatpush2.bf16.msra.mxu0 0
          %1735 = vmatprep.mubr.bf16.mxu0 0
          %1736 = vmatmul.mubr.bf16.gmra.mxu0 %v1702
          %v1737 = vpop.f32.mrf.mxu0
          %v1738 = vadd.f32 0.0, %v1737
          %v1739 = vpop.f32.mrf.mxu0
          %v1740 = vadd.f32 0.0, %v1739
          %v1741 = vpop.f32.mrf.mxu0
          %v1742 = vadd.f32 0.0, %v1741
          %v1743 = vpop.f32.mrf.mxu0
          %v1744 = vadd.f32 0.0, %v1743
          %1745 = vdwg.mxu0
          %1746 = vmatprep.subr.bf16.mxu0 %v1064
          %1747 = vmatpush1.bf16.msra.mxu0 %v1063
          %1748 = vmatprep.subr.bf16.mxu0 %v1060
          %1749 = vmatpush1.bf16.msra.mxu0 %v1059
          %1750 = vmatprep.subr.bf16.mxu0 %v1056
          %1751 = vmatpush1.bf16.msra.mxu0 %v1055
          %1752 = vmatprep.subr.bf16.mxu0 %v1052
          %1753 = vmatpush1.bf16.msra.mxu0 %v1051
          %1754 = vmatprep.subr.bf16.mxu0 %v1048
          %1755 = vmatpush1.bf16.msra.mxu0 %v1047
          %1756 = vmatprep.subr.bf16.mxu0 %v1044
          %1757 = vmatpush1.bf16.msra.mxu0 %v1043
          %1758 = vmatprep.subr.bf16.mxu0 %v1040
          %1759 = vmatpush1.bf16.msra.mxu0 %v1039
          %1760 = vmatprep.subr.bf16.mxu0 %v1036
          %1761 = vmatpush1.bf16.msra.mxu0 %v1035
          %1762 = vmatprep.subr.bf16.mxu0 0
          %1763 = vmatpush2.bf16.msra.mxu0 0
          %1764 = vmatprep.subr.bf16.mxu0 0
          %1765 = vmatpush2.bf16.msra.mxu0 0
          %1766 = vmatprep.subr.bf16.mxu0 0
          %1767 = vmatpush2.bf16.msra.mxu0 0
          %1768 = vmatprep.subr.bf16.mxu0 0
          %1769 = vmatpush2.bf16.msra.mxu0 0
          %1770 = vmatprep.subr.bf16.mxu0 0
          %1771 = vmatpush2.bf16.msra.mxu0 0
          %1772 = vmatprep.subr.bf16.mxu0 0
          %1773 = vmatpush2.bf16.msra.mxu0 0
          %1774 = vmatprep.subr.bf16.mxu0 0
          %1775 = vmatpush2.bf16.msra.mxu0 0
          %1776 = vmatprep.subr.bf16.mxu0 0
          %1777 = vmatpush2.bf16.msra.mxu0 0
          %1778 = vmatprep.mubr.bf16.mxu0 0
          %1779 = vmatmul.mubr.bf16.gmra.mxu0 %v1702
          %v1780 = vpop.f32.mrf.mxu0
          %v1781 = vadd.f32 0.0, %v1780
          %v1782 = vpop.f32.mrf.mxu0
          %v1783 = vadd.f32 0.0, %v1782
          %v1784 = vpop.f32.mrf.mxu0
          %v1785 = vadd.f32 0.0, %v1784
          %v1786 = vpop.f32.mrf.mxu0
          %v1787 = vadd.f32 0.0, %v1786
          %1788 = vdwg.mxu0
          %v1789 = vadd.f32 %v1694, %v1738
          %v1790 = vadd.f32 %v1695, %v1740
          %v1791 = vadd.f32 %v1696, %v1781
          %v1792 = vadd.f32 %v1697, %v1783
          %v1793 = vadd.f32 %v1698, %v1742
          %v1794 = vadd.f32 %v1699, %v1744
          %v1795 = vadd.f32 %v1700, %v1785
          %v1796 = vadd.f32 %v1701, %v1787
          %v1797 = vxor.u32 %v1789, 2147483648
          %v1798 = vxor.u32 %v1793, 2147483648
          %v1799 = vmul.f32 %v1797, 1.442695
          %v1800 = vpow.pop %v1799
          %v1801 = vmul.f32 %v1798, 1.442695
          %v1802 = vpow.pop %v1801
          %v1803 = vadd.f32 %v1800, 1.0
          %v1804 = vadd.f32 %v1802, 1.0
          %v1805 = vrcp.pop %v1803
          %v1806 = vmul.f32 1.0, %v1805
          %v1807 = vrcp.pop %v1804
          %v1808 = vmul.f32 1.0, %v1807
          %v1809 = vxor.u32 %v1790, 2147483648
          %v1810 = vxor.u32 %v1794, 2147483648
          %v1811 = vmul.f32 %v1809, 1.442695
          %v1812 = vpow.pop %v1811
          %v1813 = vmul.f32 %v1810, 1.442695
          %v1814 = vpow.pop %v1813
          %v1815 = vadd.f32 %v1812, 1.0
          %v1816 = vadd.f32 %v1814, 1.0
          %v1817 = vrcp.pop %v1815
          %v1818 = vmul.f32 1.0, %v1817
          %v1819 = vrcp.pop %v1816
          %v1820 = vmul.f32 1.0, %v1819
          %v1821 = vtanh.pop %v1791
          %v1822 = vtanh.pop %v1795
          %v1823 = vxor.u32 %v1792, 2147483648
          %v1824 = vxor.u32 %v1796, 2147483648
          %v1825 = vmul.f32 %v1823, 1.442695
          %v1826 = vpow.pop %v1825
          %v1827 = vmul.f32 %v1824, 1.442695
          %v1828 = vpow.pop %v1827
          %v1829 = vadd.f32 %v1826, 1.0
          %v1830 = vadd.f32 %v1828, 1.0
          %v1831 = vrcp.pop %v1829
          %v1832 = vmul.f32 1.0, %v1831
          %v1833 = vrcp.pop %v1830
          %v1834 = vmul.f32 1.0, %v1833
          %v1835 = vmul.f32 %v1818, %v1691
          %v1836 = vmul.f32 %v1820, %v1692
          %v1837 = vmul.f32 %v1806, %v1821
          %v1838 = vmul.f32 %v1808, %v1822
          %v1839 = vadd.f32 %v1835, %v1837
          %v1840 = vadd.f32 %v1836, %v1838
          %v1841 = vtanh.pop %v1839
          %v1842 = vtanh.pop %v1840
          %v1843 = vmul.f32 %v1832, %v1841
          %v1844 = vmul.f32 %v1834, %v1842
          %v1845 = vstv %s1693
          %vm1846 = vcmp.lt.s32.totalorder %v1845, %v922
          %vm1847 = vcmp.lt.s32.totalorder %v1845, %v923
          %v1848 = vsel %vm1846, 1, 0
          %v1849 = vsel %vm1847, 1, 0
          %1850 = vset.pattern.permute.xlu0 0
          %1851 = vperm.xlu0 %1850, %v1848
          %v1852 = vpop.permute.xlu0 %1851
          %1853 = vset.pattern.permute.xlu0 0
          %1854 = vperm.xlu0 %1853, %v1849
          %v1855 = vpop.permute.xlu0 %1854
          %vm1856 = vcmp.eq.s32.totalorder %v1852, 1
          %vm1857 = vcmp.eq.s32.totalorder %v1855, 1
          %v1858 = vsel %vm1856, %v1843, 0.0
          %v1859 = vsel %vm1857, %v1844, 0.0
          %v1862 = vcombine.high %v1858, %v1858
          %v1864 = vunpack.c.l.s4 1966171168
          %v1865 = vunpack.c.0.s8 %v1864
          %v1866 = vlaneseq
          %v1867 = vshrl.u32 %v1866, 7
          %v1868 = vsub.s32 %v1865, %v1867
          %v1869 = vrot.slane %v1858, %v1868
          %v1871 = vunpack.c.l.s4 1966171168
          %v1872 = vunpack.c.0.s8 %v1871
          %v1873 = vlaneseq
          %v1874 = vshrl.u32 %v1873, 7
          %v1875 = vsub.s32 %v1872, %v1874
          %v1876 = vrot.slane %v1862, %v1875
          %v1877 = vcombine.high %v1869, %v1869
          %v1878 = vcombine.high %v1876, %v1876
          %v1880 = vunpack.c.l.s4 1966171168
          %v1881 = vunpack.c.0.s8 %v1880
          %v1882 = vlaneseq
          %v1883 = vshrl.u32 %v1882, 7
          %v1884 = vsub.s32 %v1881, %v1883
          %v1885 = vrot.slane %v1869, %v1884
          %v1887 = vunpack.c.l.s4 1966171168
          %v1888 = vunpack.c.0.s8 %v1887
          %v1889 = vlaneseq
          %v1890 = vshrl.u32 %v1889, 7
          %v1891 = vsub.s32 %v1888, %v1890
          %v1892 = vrot.slane %v1876, %v1891
          %v1894 = vunpack.c.l.s4 1966171168
          %v1895 = vunpack.c.0.s8 %v1894
          %v1896 = vlaneseq
          %v1897 = vshrl.u32 %v1896, 7
          %v1898 = vsub.s32 %v1895, %v1897
          %v1899 = vrot.slane %v1877, %v1898
          %v1901 = vunpack.c.l.s4 1966171168
          %v1902 = vunpack.c.0.s8 %v1901
          %v1903 = vlaneseq
          %v1904 = vshrl.u32 %v1903, 7
          %v1905 = vsub.s32 %v1902, %v1904
          %v1906 = vrot.slane %v1878, %v1905
          %v1907 = vcombine.high %v1885, %v1885
          %v1908 = vcombine.high %v1892, %v1892
          %v1909 = vcombine.high %v1899, %v1899
          %v1910 = vcombine.high %v1906, %v1906
          %v1911 = vcombine.high %v1859, %v1859
          %v1913 = vunpack.c.l.s4 1966171168
          %v1914 = vunpack.c.0.s8 %v1913
          %v1915 = vlaneseq
          %v1916 = vshrl.u32 %v1915, 7
          %v1917 = vsub.s32 %v1914, %v1916
          %v1918 = vrot.slane %v1859, %v1917
          %v1920 = vunpack.c.l.s4 1966171168
          %v1921 = vunpack.c.0.s8 %v1920
          %v1922 = vlaneseq
          %v1923 = vshrl.u32 %v1922, 7
          %v1924 = vsub.s32 %v1921, %v1923
          %v1925 = vrot.slane %v1911, %v1924
          %v1926 = vcombine.high %v1918, %v1918
          %v1927 = vcombine.high %v1925, %v1925
          %v1929 = vunpack.c.l.s4 1966171168
          %v1930 = vunpack.c.0.s8 %v1929
          %v1931 = vlaneseq
          %v1932 = vshrl.u32 %v1931, 7
          %v1933 = vsub.s32 %v1930, %v1932
          %v1934 = vrot.slane %v1918, %v1933
          %v1936 = vunpack.c.l.s4 1966171168
          %v1937 = vunpack.c.0.s8 %v1936
          %v1938 = vlaneseq
          %v1939 = vshrl.u32 %v1938, 7
          %v1940 = vsub.s32 %v1937, %v1939
          %v1941 = vrot.slane %v1925, %v1940
          %v1943 = vunpack.c.l.s4 1966171168
          %v1944 = vunpack.c.0.s8 %v1943
          %v1945 = vlaneseq
          %v1946 = vshrl.u32 %v1945, 7
          %v1947 = vsub.s32 %v1944, %v1946
          %v1948 = vrot.slane %v1926, %v1947
          %v1950 = vunpack.c.l.s4 1966171168
          %v1951 = vunpack.c.0.s8 %v1950
          %v1952 = vlaneseq
          %v1953 = vshrl.u32 %v1952, 7
          %v1954 = vsub.s32 %v1951, %v1953
          %v1955 = vrot.slane %v1927, %v1954
          %v1956 = vcombine.high %v1934, %v1934
          %v1957 = vcombine.high %v1941, %v1941
          %v1958 = vcombine.high %v1948, %v1948
          %v1959 = vcombine.high %v1955, %v1955
          %1976 = vst [vmem:[%s368 + $0x2] sm:$0x1] %v1885
          %1977 = vst [vmem:[%s368 + $0xa] sm:$0x1] %v1899
          %1978 = vst [vmem:[%s368 + $0x12] sm:$0x1] %v1907
          %1979 = vst [vmem:[%s368 + $0x1a] sm:$0x1] %v1909
          %1980 = vst [vmem:[%s368 + $0x22] sm:$0x1] %v1892
          %1981 = vst [vmem:[%s368 + $0x2a] sm:$0x1] %v1906
          %1982 = vst [vmem:[%s368 + $0x32] sm:$0x1] %v1908
          %1983 = vst [vmem:[%s368 + $0x3a] sm:$0x1] %v1910
          %1984 = vst [vmem:[%s368 + $0x42] sm:$0x1] %v1934
          %1985 = vst [vmem:[%s368 + $0x4a] sm:$0x1] %v1948
          %1986 = vst [vmem:[%s368 + $0x52] sm:$0x1] %v1956
          %1987 = vst [vmem:[%s368 + $0x5a] sm:$0x1] %v1958
          %1988 = vst [vmem:[%s368 + $0x62] sm:$0x1] %v1941
          %1989 = vst [vmem:[%s368 + $0x6a] sm:$0x1] %v1955
          %1990 = vst [vmem:[%s368 + $0x72] sm:$0x1] %v1957
          %1991 = vst [vmem:[%s368 + $0x7a] sm:$0x1] %v1959
          %v1992 = vsel %vm1856, %v1843, %v1689
          %v1993 = vsel %vm1857, %v1844, %v1690
          %v1994 = vsel %vm1856, %v1839, %v1691
          %v1995 = vsel %vm1857, %v1840, %v1692
          %s1996 = sadd.s32 %s423, 3
          %v1997 = vld [vmem:[#allocation4 + $0xc0] sm:$0xff]
          %v1998 = vld [vmem:[#allocation4 + $0xc8] sm:$0xff]
          %v1999 = vld [vmem:[#allocation4 + $0xd0] sm:$0xff]
          %v2000 = vld [vmem:[#allocation4 + $0xd8] sm:$0xff]
          %v2001 = vld [vmem:[#allocation4 + $0xe0] sm:$0xff]
          %v2002 = vld [vmem:[#allocation4 + $0xe8] sm:$0xff]
          %v2003 = vld [vmem:[#allocation4 + $0xf0] sm:$0xff]
          %v2004 = vld [vmem:[#allocation4 + $0xf8] sm:$0xff]
          %v2005 = vpack.c.bf16 %v1993, %v1992
          %2006 = vmatprep.subr.bf16.mxu0 %v1062
          %2007 = vmatpush1.bf16.msra.mxu0 %v1061
          %2008 = vmatprep.subr.bf16.mxu0 %v1058
          %2009 = vmatpush1.bf16.msra.mxu0 %v1057
          %2010 = vmatprep.subr.bf16.mxu0 %v1054
          %2011 = vmatpush1.bf16.msra.mxu0 %v1053
          %2012 = vmatprep.subr.bf16.mxu0 %v1050
          %2013 = vmatpush1.bf16.msra.mxu0 %v1049
          %2014 = vmatprep.subr.bf16.mxu0 %v1046
          %2015 = vmatpush1.bf16.msra.mxu0 %v1045
          %2016 = vmatprep.subr.bf16.mxu0 %v1042
          %2017 = vmatpush1.bf16.msra.mxu0 %v1041
          %2018 = vmatprep.subr.bf16.mxu0 %v1038
          %2019 = vmatpush1.bf16.msra.mxu0 %v1037
          %2020 = vmatprep.subr.bf16.mxu0 %v1034
          %2021 = vmatpush1.bf16.msra.mxu0 %v1033
          %2022 = vmatprep.subr.bf16.mxu0 0
          %2023 = vmatpush2.bf16.msra.mxu0 0
          %2024 = vmatprep.subr.bf16.mxu0 0
          %2025 = vmatpush2.bf16.msra.mxu0 0
          %2026 = vmatprep.subr.bf16.mxu0 0
          %2027 = vmatpush2.bf16.msra.mxu0 0
          %2028 = vmatprep.subr.bf16.mxu0 0
          %2029 = vmatpush2.bf16.msra.mxu0 0
          %2030 = vmatprep.subr.bf16.mxu0 0
          %2031 = vmatpush2.bf16.msra.mxu0 0
          %2032 = vmatprep.subr.bf16.mxu0 0
          %2033 = vmatpush2.bf16.msra.mxu0 0
          %2034 = vmatprep.subr.bf16.mxu0 0
          %2035 = vmatpush2.bf16.msra.mxu0 0
          %2036 = vmatprep.subr.bf16.mxu0 0
          %2037 = vmatpush2.bf16.msra.mxu0 0
          %2038 = vmatprep.mubr.bf16.mxu0 0
          %2039 = vmatmul.mubr.bf16.gmra.mxu0 %v2005
          %v2040 = vpop.f32.mrf.mxu0
          %v2041 = vadd.f32 0.0, %v2040
          %v2042 = vpop.f32.mrf.mxu0
          %v2043 = vadd.f32 0.0, %v2042
          %v2044 = vpop.f32.mrf.mxu0
          %v2045 = vadd.f32 0.0, %v2044
          %v2046 = vpop.f32.mrf.mxu0
          %v2047 = vadd.f32 0.0, %v2046
          %2048 = vdwg.mxu0
          %2049 = vmatprep.subr.bf16.mxu0 %v1064
          %2050 = vmatpush1.bf16.msra.mxu0 %v1063
          %2051 = vmatprep.subr.bf16.mxu0 %v1060
          %2052 = vmatpush1.bf16.msra.mxu0 %v1059
          %2053 = vmatprep.subr.bf16.mxu0 %v1056
          %2054 = vmatpush1.bf16.msra.mxu0 %v1055
          %2055 = vmatprep.subr.bf16.mxu0 %v1052
          %2056 = vmatpush1.bf16.msra.mxu0 %v1051
          %2057 = vmatprep.subr.bf16.mxu0 %v1048
          %2058 = vmatpush1.bf16.msra.mxu0 %v1047
          %2059 = vmatprep.subr.bf16.mxu0 %v1044
          %2060 = vmatpush1.bf16.msra.mxu0 %v1043
          %2061 = vmatprep.subr.bf16.mxu0 %v1040
          %2062 = vmatpush1.bf16.msra.mxu0 %v1039
          %2063 = vmatprep.subr.bf16.mxu0 %v1036
          %2064 = vmatpush1.bf16.msra.mxu0 %v1035
          %2065 = vmatprep.subr.bf16.mxu0 0
          %2066 = vmatpush2.bf16.msra.mxu0 0
          %2067 = vmatprep.subr.bf16.mxu0 0
          %2068 = vmatpush2.bf16.msra.mxu0 0
          %2069 = vmatprep.subr.bf16.mxu0 0
          %2070 = vmatpush2.bf16.msra.mxu0 0
          %2071 = vmatprep.subr.bf16.mxu0 0
          %2072 = vmatpush2.bf16.msra.mxu0 0
          %2073 = vmatprep.subr.bf16.mxu0 0
          %2074 = vmatpush2.bf16.msra.mxu0 0
          %2075 = vmatprep.subr.bf16.mxu0 0
          %2076 = vmatpush2.bf16.msra.mxu0 0
          %2077 = vmatprep.subr.bf16.mxu0 0
          %2078 = vmatpush2.bf16.msra.mxu0 0
          %2079 = vmatprep.subr.bf16.mxu0 0
          %2080 = vmatpush2.bf16.msra.mxu0 0
          %2081 = vmatprep.mubr.bf16.mxu0 0
          %2082 = vmatmul.mubr.bf16.gmra.mxu0 %v2005
          %v2083 = vpop.f32.mrf.mxu0
          %v2084 = vadd.f32 0.0, %v2083
          %v2085 = vpop.f32.mrf.mxu0
          %v2086 = vadd.f32 0.0, %v2085
          %v2087 = vpop.f32.mrf.mxu0
          %v2088 = vadd.f32 0.0, %v2087
          %v2089 = vpop.f32.mrf.mxu0
          %v2090 = vadd.f32 0.0, %v2089
          %2091 = vdwg.mxu0
          %v2092 = vadd.f32 %v1997, %v2041
          %v2093 = vadd.f32 %v1998, %v2043
          %v2094 = vadd.f32 %v1999, %v2084
          %v2095 = vadd.f32 %v2000, %v2086
          %v2096 = vadd.f32 %v2001, %v2045
          %v2097 = vadd.f32 %v2002, %v2047
          %v2098 = vadd.f32 %v2003, %v2088
          %v2099 = vadd.f32 %v2004, %v2090
          %v2100 = vxor.u32 %v2092, 2147483648
          %v2101 = vxor.u32 %v2096, 2147483648
          %v2102 = vmul.f32 %v2100, 1.442695
          %v2103 = vpow.pop %v2102
          %v2104 = vmul.f32 %v2101, 1.442695
          %v2105 = vpow.pop %v2104
          %v2106 = vadd.f32 %v2103, 1.0
          %v2107 = vadd.f32 %v2105, 1.0
          %v2108 = vrcp.pop %v2106
          %v2109 = vmul.f32 1.0, %v2108
          %v2110 = vrcp.pop %v2107
          %v2111 = vmul.f32 1.0, %v2110
          %v2112 = vxor.u32 %v2093, 2147483648
          %v2113 = vxor.u32 %v2097, 2147483648
          %v2114 = vmul.f32 %v2112, 1.442695
          %v2115 = vpow.pop %v2114
          %v2116 = vmul.f32 %v2113, 1.442695
          %v2117 = vpow.pop %v2116
          %v2118 = vadd.f32 %v2115, 1.0
          %v2119 = vadd.f32 %v2117, 1.0
          %v2120 = vrcp.pop %v2118
          %v2121 = vmul.f32 1.0, %v2120
          %v2122 = vrcp.pop %v2119
          %v2123 = vmul.f32 1.0, %v2122
          %v2124 = vtanh.pop %v2094
          %v2125 = vtanh.pop %v2098
          %v2126 = vxor.u32 %v2095, 2147483648
          %v2127 = vxor.u32 %v2099, 2147483648
          %v2128 = vmul.f32 %v2126, 1.442695
          %v2129 = vpow.pop %v2128
          %v2130 = vmul.f32 %v2127, 1.442695
          %v2131 = vpow.pop %v2130
          %v2132 = vadd.f32 %v2129, 1.0
          %v2133 = vadd.f32 %v2131, 1.0
          %v2134 = vrcp.pop %v2132
          %v2135 = vmul.f32 1.0, %v2134
          %v2136 = vrcp.pop %v2133
          %v2137 = vmul.f32 1.0, %v2136
          %v2138 = vmul.f32 %v2121, %v1994
          %v2139 = vmul.f32 %v2123, %v1995
          %v2140 = vmul.f32 %v2109, %v2124
          %v2141 = vmul.f32 %v2111, %v2125
          %v2142 = vadd.f32 %v2138, %v2140
          %v2143 = vadd.f32 %v2139, %v2141
          %v2144 = vtanh.pop %v2142
          %v2145 = vtanh.pop %v2143
          %v2146 = vmul.f32 %v2135, %v2144
          %v2147 = vmul.f32 %v2137, %v2145
          %v2148 = vstv %s1996
          %vm2149 = vcmp.lt.s32.totalorder %v2148, %v922
          %vm2150 = vcmp.lt.s32.totalorder %v2148, %v923
          %v2151 = vsel %vm2149, 1, 0
          %v2152 = vsel %vm2150, 1, 0
          %2153 = vset.pattern.permute.xlu0 0
          %2154 = vperm.xlu0 %2153, %v2151
          %v2155 = vpop.permute.xlu0 %2154
          %2156 = vset.pattern.permute.xlu0 0
          %2157 = vperm.xlu0 %2156, %v2152
          %v2158 = vpop.permute.xlu0 %2157
          %vm2159 = vcmp.eq.s32.totalorder %v2155, 1
          %vm2160 = vcmp.eq.s32.totalorder %v2158, 1
          %v2161 = vsel %vm2159, %v2146, 0.0
          %v2162 = vsel %vm2160, %v2147, 0.0
          %v2165 = vcombine.high %v2161, %v2161
          %v2167 = vunpack.c.l.s4 1966171168
          %v2168 = vunpack.c.0.s8 %v2167
          %v2169 = vlaneseq
          %v2170 = vshrl.u32 %v2169, 7
          %v2171 = vsub.s32 %v2168, %v2170
          %v2172 = vrot.slane %v2161, %v2171
          %v2174 = vunpack.c.l.s4 1966171168
          %v2175 = vunpack.c.0.s8 %v2174
          %v2176 = vlaneseq
          %v2177 = vshrl.u32 %v2176, 7
          %v2178 = vsub.s32 %v2175, %v2177
          %v2179 = vrot.slane %v2165, %v2178
          %v2180 = vcombine.high %v2172, %v2172
          %v2181 = vcombine.high %v2179, %v2179
          %v2183 = vunpack.c.l.s4 1966171168
          %v2184 = vunpack.c.0.s8 %v2183
          %v2185 = vlaneseq
          %v2186 = vshrl.u32 %v2185, 7
          %v2187 = vsub.s32 %v2184, %v2186
          %v2188 = vrot.slane %v2172, %v2187
          %v2190 = vunpack.c.l.s4 1966171168
          %v2191 = vunpack.c.0.s8 %v2190
          %v2192 = vlaneseq
          %v2193 = vshrl.u32 %v2192, 7
          %v2194 = vsub.s32 %v2191, %v2193
          %v2195 = vrot.slane %v2179, %v2194
          %v2197 = vunpack.c.l.s4 1966171168
          %v2198 = vunpack.c.0.s8 %v2197
          %v2199 = vlaneseq
          %v2200 = vshrl.u32 %v2199, 7
          %v2201 = vsub.s32 %v2198, %v2200
          %v2202 = vrot.slane %v2180, %v2201
          %v2204 = vunpack.c.l.s4 1966171168
          %v2205 = vunpack.c.0.s8 %v2204
          %v2206 = vlaneseq
          %v2207 = vshrl.u32 %v2206, 7
          %v2208 = vsub.s32 %v2205, %v2207
          %v2209 = vrot.slane %v2181, %v2208
          %v2210 = vcombine.high %v2188, %v2188
          %v2211 = vcombine.high %v2195, %v2195
          %v2212 = vcombine.high %v2202, %v2202
          %v2213 = vcombine.high %v2209, %v2209
          %v2214 = vcombine.high %v2162, %v2162
          %v2216 = vunpack.c.l.s4 1966171168
          %v2217 = vunpack.c.0.s8 %v2216
          %v2218 = vlaneseq
          %v2219 = vshrl.u32 %v2218, 7
          %v2220 = vsub.s32 %v2217, %v2219
          %v2221 = vrot.slane %v2162, %v2220
          %v2223 = vunpack.c.l.s4 1966171168
          %v2224 = vunpack.c.0.s8 %v2223
          %v2225 = vlaneseq
          %v2226 = vshrl.u32 %v2225, 7
          %v2227 = vsub.s32 %v2224, %v2226
          %v2228 = vrot.slane %v2214, %v2227
          %v2229 = vcombine.high %v2221, %v2221
          %v2230 = vcombine.high %v2228, %v2228
          %v2232 = vunpack.c.l.s4 1966171168
          %v2233 = vunpack.c.0.s8 %v2232
          %v2234 = vlaneseq
          %v2235 = vshrl.u32 %v2234, 7
          %v2236 = vsub.s32 %v2233, %v2235
          %v2237 = vrot.slane %v2221, %v2236
          %v2239 = vunpack.c.l.s4 1966171168
          %v2240 = vunpack.c.0.s8 %v2239
          %v2241 = vlaneseq
          %v2242 = vshrl.u32 %v2241, 7
          %v2243 = vsub.s32 %v2240, %v2242
          %v2244 = vrot.slane %v2228, %v2243
          %v2246 = vunpack.c.l.s4 1966171168
          %v2247 = vunpack.c.0.s8 %v2246
          %v2248 = vlaneseq
          %v2249 = vshrl.u32 %v2248, 7
          %v2250 = vsub.s32 %v2247, %v2249
          %v2251 = vrot.slane %v2229, %v2250
          %v2253 = vunpack.c.l.s4 1966171168
          %v2254 = vunpack.c.0.s8 %v2253
          %v2255 = vlaneseq
          %v2256 = vshrl.u32 %v2255, 7
          %v2257 = vsub.s32 %v2254, %v2256
          %v2258 = vrot.slane %v2230, %v2257
          %v2259 = vcombine.high %v2237, %v2237
          %v2260 = vcombine.high %v2244, %v2244
          %v2261 = vcombine.high %v2251, %v2251
          %v2262 = vcombine.high %v2258, %v2258
          %2279 = vst [vmem:[%s368 + $0x3] sm:$0x1] %v2188
          %2280 = vst [vmem:[%s368 + $0xb] sm:$0x1] %v2202
          %2281 = vst [vmem:[%s368 + $0x13] sm:$0x1] %v2210
          %2282 = vst [vmem:[%s368 + $0x1b] sm:$0x1] %v2212
          %2283 = vst [vmem:[%s368 + $0x23] sm:$0x1] %v2195
          %2284 = vst [vmem:[%s368 + $0x2b] sm:$0x1] %v2209
          %2285 = vst [vmem:[%s368 + $0x33] sm:$0x1] %v2211
          %2286 = vst [vmem:[%s368 + $0x3b] sm:$0x1] %v2213
          %2287 = vst [vmem:[%s368 + $0x43] sm:$0x1] %v2237
          %2288 = vst [vmem:[%s368 + $0x4b] sm:$0x1] %v2251
          %2289 = vst [vmem:[%s368 + $0x53] sm:$0x1] %v2259
          %2290 = vst [vmem:[%s368 + $0x5b] sm:$0x1] %v2261
          %2291 = vst [vmem:[%s368 + $0x63] sm:$0x1] %v2244
          %2292 = vst [vmem:[%s368 + $0x6b] sm:$0x1] %v2258
          %2293 = vst [vmem:[%s368 + $0x73] sm:$0x1] %v2260
          %2294 = vst [vmem:[%s368 + $0x7b] sm:$0x1] %v2262
          %v2295 = vsel %vm2159, %v2146, %v1992
          %v2296 = vsel %vm2160, %v2147, %v1993
          %v2297 = vsel %vm2159, %v2142, %v1994
          %v2298 = vsel %vm2160, %v2143, %v1995
          %s2299 = sadd.s32 %s423, 4
          %v2300 = vld [vmem:[#allocation4 + $0x100] sm:$0xff]
          %v2301 = vld [vmem:[#allocation4 + $0x108] sm:$0xff]
          %v2302 = vld [vmem:[#allocation4 + $0x110] sm:$0xff]
          %v2303 = vld [vmem:[#allocation4 + $0x118] sm:$0xff]
          %v2304 = vld [vmem:[#allocation4 + $0x120] sm:$0xff]
          %v2305 = vld [vmem:[#allocation4 + $0x128] sm:$0xff]
          %v2306 = vld [vmem:[#allocation4 + $0x130] sm:$0xff]
          %v2307 = vld [vmem:[#allocation4 + $0x138] sm:$0xff]
          %v2308 = vpack.c.bf16 %v2296, %v2295
          %2309 = vmatprep.subr.bf16.mxu0 %v1062
          %2310 = vmatpush1.bf16.msra.mxu0 %v1061
          %2311 = vmatprep.subr.bf16.mxu0 %v1058
          %2312 = vmatpush1.bf16.msra.mxu0 %v1057
          %2313 = vmatprep.subr.bf16.mxu0 %v1054
          %2314 = vmatpush1.bf16.msra.mxu0 %v1053
          %2315 = vmatprep.subr.bf16.mxu0 %v1050
          %2316 = vmatpush1.bf16.msra.mxu0 %v1049
          %2317 = vmatprep.subr.bf16.mxu0 %v1046
          %2318 = vmatpush1.bf16.msra.mxu0 %v1045
          %2319 = vmatprep.subr.bf16.mxu0 %v1042
          %2320 = vmatpush1.bf16.msra.mxu0 %v1041
          %2321 = vmatprep.subr.bf16.mxu0 %v1038
          %2322 = vmatpush1.bf16.msra.mxu0 %v1037
          %2323 = vmatprep.subr.bf16.mxu0 %v1034
          %2324 = vmatpush1.bf16.msra.mxu0 %v1033
          %2325 = vmatprep.subr.bf16.mxu0 0
          %2326 = vmatpush2.bf16.msra.mxu0 0
          %2327 = vmatprep.subr.bf16.mxu0 0
          %2328 = vmatpush2.bf16.msra.mxu0 0
          %2329 = vmatprep.subr.bf16.mxu0 0
          %2330 = vmatpush2.bf16.msra.mxu0 0
          %2331 = vmatprep.subr.bf16.mxu0 0
          %2332 = vmatpush2.bf16.msra.mxu0 0
          %2333 = vmatprep.subr.bf16.mxu0 0
          %2334 = vmatpush2.bf16.msra.mxu0 0
          %2335 = vmatprep.subr.bf16.mxu0 0
          %2336 = vmatpush2.bf16.msra.mxu0 0
          %2337 = vmatprep.subr.bf16.mxu0 0
          %2338 = vmatpush2.bf16.msra.mxu0 0
          %2339 = vmatprep.subr.bf16.mxu0 0
          %2340 = vmatpush2.bf16.msra.mxu0 0
          %2341 = vmatprep.mubr.bf16.mxu0 0
          %2342 = vmatmul.mubr.bf16.gmra.mxu0 %v2308
          %v2343 = vpop.f32.mrf.mxu0
          %v2344 = vadd.f32 0.0, %v2343
          %v2345 = vpop.f32.mrf.mxu0
          %v2346 = vadd.f32 0.0, %v2345
          %v2347 = vpop.f32.mrf.mxu0
          %v2348 = vadd.f32 0.0, %v2347
          %v2349 = vpop.f32.mrf.mxu0
          %v2350 = vadd.f32 0.0, %v2349
          %2351 = vdwg.mxu0
          %2352 = vmatprep.subr.bf16.mxu0 %v1064
          %2353 = vmatpush1.bf16.msra.mxu0 %v1063
          %2354 = vmatprep.subr.bf16.mxu0 %v1060
          %2355 = vmatpush1.bf16.msra.mxu0 %v1059
          %2356 = vmatprep.subr.bf16.mxu0 %v1056
          %2357 = vmatpush1.bf16.msra.mxu0 %v1055
          %2358 = vmatprep.subr.bf16.mxu0 %v1052
          %2359 = vmatpush1.bf16.msra.mxu0 %v1051
          %2360 = vmatprep.subr.bf16.mxu0 %v1048
          %2361 = vmatpush1.bf16.msra.mxu0 %v1047
          %2362 = vmatprep.subr.bf16.mxu0 %v1044
          %2363 = vmatpush1.bf16.msra.mxu0 %v1043
          %2364 = vmatprep.subr.bf16.mxu0 %v1040
          %2365 = vmatpush1.bf16.msra.mxu0 %v1039
          %2366 = vmatprep.subr.bf16.mxu0 %v1036
          %2367 = vmatpush1.bf16.msra.mxu0 %v1035
          %2368 = vmatprep.subr.bf16.mxu0 0
          %2369 = vmatpush2.bf16.msra.mxu0 0
          %2370 = vmatprep.subr.bf16.mxu0 0
          %2371 = vmatpush2.bf16.msra.mxu0 0
          %2372 = vmatprep.subr.bf16.mxu0 0
          %2373 = vmatpush2.bf16.msra.mxu0 0
          %2374 = vmatprep.subr.bf16.mxu0 0
          %2375 = vmatpush2.bf16.msra.mxu0 0
          %2376 = vmatprep.subr.bf16.mxu0 0
          %2377 = vmatpush2.bf16.msra.mxu0 0
          %2378 = vmatprep.subr.bf16.mxu0 0
          %2379 = vmatpush2.bf16.msra.mxu0 0
          %2380 = vmatprep.subr.bf16.mxu0 0
          %2381 = vmatpush2.bf16.msra.mxu0 0
          %2382 = vmatprep.subr.bf16.mxu0 0
          %2383 = vmatpush2.bf16.msra.mxu0 0
          %2384 = vmatprep.mubr.bf16.mxu0 0
          %2385 = vmatmul.mubr.bf16.gmra.mxu0 %v2308
          %v2386 = vpop.f32.mrf.mxu0
          %v2387 = vadd.f32 0.0, %v2386
          %v2388 = vpop.f32.mrf.mxu0
          %v2389 = vadd.f32 0.0, %v2388
          %v2390 = vpop.f32.mrf.mxu0
          %v2391 = vadd.f32 0.0, %v2390
          %v2392 = vpop.f32.mrf.mxu0
          %v2393 = vadd.f32 0.0, %v2392
          %2394 = vdwg.mxu0
          %v2395 = vadd.f32 %v2300, %v2344
          %v2396 = vadd.f32 %v2301, %v2346
          %v2397 = vadd.f32 %v2302, %v2387
          %v2398 = vadd.f32 %v2303, %v2389
          %v2399 = vadd.f32 %v2304, %v2348
          %v2400 = vadd.f32 %v2305, %v2350
          %v2401 = vadd.f32 %v2306, %v2391
          %v2402 = vadd.f32 %v2307, %v2393
          %v2403 = vxor.u32 %v2395, 2147483648
          %v2404 = vxor.u32 %v2399, 2147483648
          %v2405 = vmul.f32 %v2403, 1.442695
          %v2406 = vpow.pop %v2405
          %v2407 = vmul.f32 %v2404, 1.442695
          %v2408 = vpow.pop %v2407
          %v2409 = vadd.f32 %v2406, 1.0
          %v2410 = vadd.f32 %v2408, 1.0
          %v2411 = vrcp.pop %v2409
          %v2412 = vmul.f32 1.0, %v2411
          %v2413 = vrcp.pop %v2410
          %v2414 = vmul.f32 1.0, %v2413
          %v2415 = vxor.u32 %v2396, 2147483648
          %v2416 = vxor.u32 %v2400, 2147483648
          %v2417 = vmul.f32 %v2415, 1.442695
          %v2418 = vpow.pop %v2417
          %v2419 = vmul.f32 %v2416, 1.442695
          %v2420 = vpow.pop %v2419
          %v2421 = vadd.f32 %v2418, 1.0
          %v2422 = vadd.f32 %v2420, 1.0
          %v2423 = vrcp.pop %v2421
          %v2424 = vmul.f32 1.0, %v2423
          %v2425 = vrcp.pop %v2422
          %v2426 = vmul.f32 1.0, %v2425
          %v2427 = vtanh.pop %v2397
          %v2428 = vtanh.pop %v2401
          %v2429 = vxor.u32 %v2398, 2147483648
          %v2430 = vxor.u32 %v2402, 2147483648
          %v2431 = vmul.f32 %v2429, 1.442695
          %v2432 = vpow.pop %v2431
          %v2433 = vmul.f32 %v2430, 1.442695
          %v2434 = vpow.pop %v2433
          %v2435 = vadd.f32 %v2432, 1.0
          %v2436 = vadd.f32 %v2434, 1.0
          %v2437 = vrcp.pop %v2435
          %v2438 = vmul.f32 1.0, %v2437
          %v2439 = vrcp.pop %v2436
          %v2440 = vmul.f32 1.0, %v2439
          %v2441 = vmul.f32 %v2424, %v2297
          %v2442 = vmul.f32 %v2426, %v2298
          %v2443 = vmul.f32 %v2412, %v2427
          %v2444 = vmul.f32 %v2414, %v2428
          %v2445 = vadd.f32 %v2441, %v2443
          %v2446 = vadd.f32 %v2442, %v2444
          %v2447 = vtanh.pop %v2445
          %v2448 = vtanh.pop %v2446
          %v2449 = vmul.f32 %v2438, %v2447
          %v2450 = vmul.f32 %v2440, %v2448
          %v2451 = vstv %s2299
          %vm2452 = vcmp.lt.s32.totalorder %v2451, %v922
          %vm2453 = vcmp.lt.s32.totalorder %v2451, %v923
          %v2454 = vsel %vm2452, 1, 0
          %v2455 = vsel %vm2453, 1, 0
          %2456 = vset.pattern.permute.xlu0 0
          %2457 = vperm.xlu0 %2456, %v2454
          %v2458 = vpop.permute.xlu0 %2457
          %2459 = vset.pattern.permute.xlu0 0
          %2460 = vperm.xlu0 %2459, %v2455
          %v2461 = vpop.permute.xlu0 %2460
          %vm2462 = vcmp.eq.s32.totalorder %v2458, 1
          %vm2463 = vcmp.eq.s32.totalorder %v2461, 1
          %v2464 = vsel %vm2462, %v2449, 0.0
          %v2465 = vsel %vm2463, %v2450, 0.0
          %v2468 = vcombine.high %v2464, %v2464
          %v2470 = vunpack.c.l.s4 1966171168
          %v2471 = vunpack.c.0.s8 %v2470
          %v2472 = vlaneseq
          %v2473 = vshrl.u32 %v2472, 7
          %v2474 = vsub.s32 %v2471, %v2473
          %v2475 = vrot.slane %v2464, %v2474
          %v2477 = vunpack.c.l.s4 1966171168
          %v2478 = vunpack.c.0.s8 %v2477
          %v2479 = vlaneseq
          %v2480 = vshrl.u32 %v2479, 7
          %v2481 = vsub.s32 %v2478, %v2480
          %v2482 = vrot.slane %v2468, %v2481
          %v2483 = vcombine.high %v2475, %v2475
          %v2484 = vcombine.high %v2482, %v2482
          %v2486 = vunpack.c.l.s4 1966171168
          %v2487 = vunpack.c.0.s8 %v2486
          %v2488 = vlaneseq
          %v2489 = vshrl.u32 %v2488, 7
          %v2490 = vsub.s32 %v2487, %v2489
          %v2491 = vrot.slane %v2475, %v2490
          %v2493 = vunpack.c.l.s4 1966171168
          %v2494 = vunpack.c.0.s8 %v2493
          %v2495 = vlaneseq
          %v2496 = vshrl.u32 %v2495, 7
          %v2497 = vsub.s32 %v2494, %v2496
          %v2498 = vrot.slane %v2482, %v2497
          %v2500 = vunpack.c.l.s4 1966171168
          %v2501 = vunpack.c.0.s8 %v2500
          %v2502 = vlaneseq
          %v2503 = vshrl.u32 %v2502, 7
          %v2504 = vsub.s32 %v2501, %v2503
          %v2505 = vrot.slane %v2483, %v2504
          %v2507 = vunpack.c.l.s4 1966171168
          %v2508 = vunpack.c.0.s8 %v2507
          %v2509 = vlaneseq
          %v2510 = vshrl.u32 %v2509, 7
          %v2511 = vsub.s32 %v2508, %v2510
          %v2512 = vrot.slane %v2484, %v2511
          %v2513 = vcombine.high %v2491, %v2491
          %v2514 = vcombine.high %v2498, %v2498
          %v2515 = vcombine.high %v2505, %v2505
          %v2516 = vcombine.high %v2512, %v2512
          %v2517 = vcombine.high %v2465, %v2465
          %v2519 = vunpack.c.l.s4 1966171168
          %v2520 = vunpack.c.0.s8 %v2519
          %v2521 = vlaneseq
          %v2522 = vshrl.u32 %v2521, 7
          %v2523 = vsub.s32 %v2520, %v2522
          %v2524 = vrot.slane %v2465, %v2523
          %v2526 = vunpack.c.l.s4 1966171168
          %v2527 = vunpack.c.0.s8 %v2526
          %v2528 = vlaneseq
          %v2529 = vshrl.u32 %v2528, 7
          %v2530 = vsub.s32 %v2527, %v2529
          %v2531 = vrot.slane %v2517, %v2530
          %v2532 = vcombine.high %v2524, %v2524
          %v2533 = vcombine.high %v2531, %v2531
          %v2535 = vunpack.c.l.s4 1966171168
          %v2536 = vunpack.c.0.s8 %v2535
          %v2537 = vlaneseq
          %v2538 = vshrl.u32 %v2537, 7
          %v2539 = vsub.s32 %v2536, %v2538
          %v2540 = vrot.slane %v2524, %v2539
          %v2542 = vunpack.c.l.s4 1966171168
          %v2543 = vunpack.c.0.s8 %v2542
          %v2544 = vlaneseq
          %v2545 = vshrl.u32 %v2544, 7
          %v2546 = vsub.s32 %v2543, %v2545
          %v2547 = vrot.slane %v2531, %v2546
          %v2549 = vunpack.c.l.s4 1966171168
          %v2550 = vunpack.c.0.s8 %v2549
          %v2551 = vlaneseq
          %v2552 = vshrl.u32 %v2551, 7
          %v2553 = vsub.s32 %v2550, %v2552
          %v2554 = vrot.slane %v2532, %v2553
          %v2556 = vunpack.c.l.s4 1966171168
          %v2557 = vunpack.c.0.s8 %v2556
          %v2558 = vlaneseq
          %v2559 = vshrl.u32 %v2558, 7
          %v2560 = vsub.s32 %v2557, %v2559
          %v2561 = vrot.slane %v2533, %v2560
          %v2562 = vcombine.high %v2540, %v2540
          %v2563 = vcombine.high %v2547, %v2547
          %v2564 = vcombine.high %v2554, %v2554
          %v2565 = vcombine.high %v2561, %v2561
          %2582 = vst [vmem:[%s368 + $0x4] sm:$0x1] %v2491
          %2583 = vst [vmem:[%s368 + $0xc] sm:$0x1] %v2505
          %2584 = vst [vmem:[%s368 + $0x14] sm:$0x1] %v2513
          %2585 = vst [vmem:[%s368 + $0x1c] sm:$0x1] %v2515
          %2586 = vst [vmem:[%s368 + $0x24] sm:$0x1] %v2498
          %2587 = vst [vmem:[%s368 + $0x2c] sm:$0x1] %v2512
          %2588 = vst [vmem:[%s368 + $0x34] sm:$0x1] %v2514
          %2589 = vst [vmem:[%s368 + $0x3c] sm:$0x1] %v2516
          %2590 = vst [vmem:[%s368 + $0x44] sm:$0x1] %v2540
          %2591 = vst [vmem:[%s368 + $0x4c] sm:$0x1] %v2554
          %2592 = vst [vmem:[%s368 + $0x54] sm:$0x1] %v2562
          %2593 = vst [vmem:[%s368 + $0x5c] sm:$0x1] %v2564
          %2594 = vst [vmem:[%s368 + $0x64] sm:$0x1] %v2547
          %2595 = vst [vmem:[%s368 + $0x6c] sm:$0x1] %v2561
          %2596 = vst [vmem:[%s368 + $0x74] sm:$0x1] %v2563
          %2597 = vst [vmem:[%s368 + $0x7c] sm:$0x1] %v2565
          %v2598 = vsel %vm2462, %v2449, %v2295
          %v2599 = vsel %vm2463, %v2450, %v2296
          %v2600 = vsel %vm2462, %v2445, %v2297
          %v2601 = vsel %vm2463, %v2446, %v2298
          %s2602 = sadd.s32 %s423, 5
          %v2603 = vld [vmem:[#allocation4 + $0x140] sm:$0xff]
          %v2604 = vld [vmem:[#allocation4 + $0x148] sm:$0xff]
          %v2605 = vld [vmem:[#allocation4 + $0x150] sm:$0xff]
          %v2606 = vld [vmem:[#allocation4 + $0x158] sm:$0xff]
          %v2607 = vld [vmem:[#allocation4 + $0x160] sm:$0xff]
          %v2608 = vld [vmem:[#allocation4 + $0x168] sm:$0xff]
          %v2609 = vld [vmem:[#allocation4 + $0x170] sm:$0xff]
          %v2610 = vld [vmem:[#allocation4 + $0x178] sm:$0xff]
          %v2611 = vpack.c.bf16 %v2599, %v2598
          %2612 = vmatprep.subr.bf16.mxu0 %v1062
          %2613 = vmatpush1.bf16.msra.mxu0 %v1061
          %2614 = vmatprep.subr.bf16.mxu0 %v1058
          %2615 = vmatpush1.bf16.msra.mxu0 %v1057
          %2616 = vmatprep.subr.bf16.mxu0 %v1054
          %2617 = vmatpush1.bf16.msra.mxu0 %v1053
          %2618 = vmatprep.subr.bf16.mxu0 %v1050
          %2619 = vmatpush1.bf16.msra.mxu0 %v1049
          %2620 = vmatprep.subr.bf16.mxu0 %v1046
          %2621 = vmatpush1.bf16.msra.mxu0 %v1045
          %2622 = vmatprep.subr.bf16.mxu0 %v1042
          %2623 = vmatpush1.bf16.msra.mxu0 %v1041
          %2624 = vmatprep.subr.bf16.mxu0 %v1038
          %2625 = vmatpush1.bf16.msra.mxu0 %v1037
          %2626 = vmatprep.subr.bf16.mxu0 %v1034
          %2627 = vmatpush1.bf16.msra.mxu0 %v1033
          %2628 = vmatprep.subr.bf16.mxu0 0
          %2629 = vmatpush2.bf16.msra.mxu0 0
          %2630 = vmatprep.subr.bf16.mxu0 0
          %2631 = vmatpush2.bf16.msra.mxu0 0
          %2632 = vmatprep.subr.bf16.mxu0 0
          %2633 = vmatpush2.bf16.msra.mxu0 0
          %2634 = vmatprep.subr.bf16.mxu0 0
          %2635 = vmatpush2.bf16.msra.mxu0 0
          %2636 = vmatprep.subr.bf16.mxu0 0
          %2637 = vmatpush2.bf16.msra.mxu0 0
          %2638 = vmatprep.subr.bf16.mxu0 0
          %2639 = vmatpush2.bf16.msra.mxu0 0
          %2640 = vmatprep.subr.bf16.mxu0 0
          %2641 = vmatpush2.bf16.msra.mxu0 0
          %2642 = vmatprep.subr.bf16.mxu0 0
          %2643 = vmatpush2.bf16.msra.mxu0 0
          %2644 = vmatprep.mubr.bf16.mxu0 0
          %2645 = vmatmul.mubr.bf16.gmra.mxu0 %v2611
          %v2646 = vpop.f32.mrf.mxu0
          %v2647 = vadd.f32 0.0, %v2646
          %v2648 = vpop.f32.mrf.mxu0
          %v2649 = vadd.f32 0.0, %v2648
          %v2650 = vpop.f32.mrf.mxu0
          %v2651 = vadd.f32 0.0, %v2650
          %v2652 = vpop.f32.mrf.mxu0
          %v2653 = vadd.f32 0.0, %v2652
          %2654 = vdwg.mxu0
          %2655 = vmatprep.subr.bf16.mxu0 %v1064
          %2656 = vmatpush1.bf16.msra.mxu0 %v1063
          %2657 = vmatprep.subr.bf16.mxu0 %v1060
          %2658 = vmatpush1.bf16.msra.mxu0 %v1059
          %2659 = vmatprep.subr.bf16.mxu0 %v1056
          %2660 = vmatpush1.bf16.msra.mxu0 %v1055
          %2661 = vmatprep.subr.bf16.mxu0 %v1052
          %2662 = vmatpush1.bf16.msra.mxu0 %v1051
          %2663 = vmatprep.subr.bf16.mxu0 %v1048
          %2664 = vmatpush1.bf16.msra.mxu0 %v1047
          %2665 = vmatprep.subr.bf16.mxu0 %v1044
          %2666 = vmatpush1.bf16.msra.mxu0 %v1043
          %2667 = vmatprep.subr.bf16.mxu0 %v1040
          %2668 = vmatpush1.bf16.msra.mxu0 %v1039
          %2669 = vmatprep.subr.bf16.mxu0 %v1036
          %2670 = vmatpush1.bf16.msra.mxu0 %v1035
          %2671 = vmatprep.subr.bf16.mxu0 0
          %2672 = vmatpush2.bf16.msra.mxu0 0
          %2673 = vmatprep.subr.bf16.mxu0 0
          %2674 = vmatpush2.bf16.msra.mxu0 0
          %2675 = vmatprep.subr.bf16.mxu0 0
          %2676 = vmatpush2.bf16.msra.mxu0 0
          %2677 = vmatprep.subr.bf16.mxu0 0
          %2678 = vmatpush2.bf16.msra.mxu0 0
          %2679 = vmatprep.subr.bf16.mxu0 0
          %2680 = vmatpush2.bf16.msra.mxu0 0
          %2681 = vmatprep.subr.bf16.mxu0 0
          %2682 = vmatpush2.bf16.msra.mxu0 0
          %2683 = vmatprep.subr.bf16.mxu0 0
          %2684 = vmatpush2.bf16.msra.mxu0 0
          %2685 = vmatprep.subr.bf16.mxu0 0
          %2686 = vmatpush2.bf16.msra.mxu0 0
          %2687 = vmatprep.mubr.bf16.mxu0 0
          %2688 = vmatmul.mubr.bf16.gmra.mxu0 %v2611
          %v2689 = vpop.f32.mrf.mxu0
          %v2690 = vadd.f32 0.0, %v2689
          %v2691 = vpop.f32.mrf.mxu0
          %v2692 = vadd.f32 0.0, %v2691
          %v2693 = vpop.f32.mrf.mxu0
          %v2694 = vadd.f32 0.0, %v2693
          %v2695 = vpop.f32.mrf.mxu0
          %v2696 = vadd.f32 0.0, %v2695
          %2697 = vdwg.mxu0
          %v2698 = vadd.f32 %v2603, %v2647
          %v2699 = vadd.f32 %v2604, %v2649
          %v2700 = vadd.f32 %v2605, %v2690
          %v2701 = vadd.f32 %v2606, %v2692
          %v2702 = vadd.f32 %v2607, %v2651
          %v2703 = vadd.f32 %v2608, %v2653
          %v2704 = vadd.f32 %v2609, %v2694
          %v2705 = vadd.f32 %v2610, %v2696
          %v2706 = vxor.u32 %v2698, 2147483648
          %v2707 = vxor.u32 %v2702, 2147483648
          %v2708 = vmul.f32 %v2706, 1.442695
          %v2709 = vpow.pop %v2708
          %v2710 = vmul.f32 %v2707, 1.442695
          %v2711 = vpow.pop %v2710
          %v2712 = vadd.f32 %v2709, 1.0
          %v2713 = vadd.f32 %v2711, 1.0
          %v2714 = vrcp.pop %v2712
          %v2715 = vmul.f32 1.0, %v2714
          %v2716 = vrcp.pop %v2713
          %v2717 = vmul.f32 1.0, %v2716
          %v2718 = vxor.u32 %v2699, 2147483648
          %v2719 = vxor.u32 %v2703, 2147483648
          %v2720 = vmul.f32 %v2718, 1.442695
          %v2721 = vpow.pop %v2720
          %v2722 = vmul.f32 %v2719, 1.442695
          %v2723 = vpow.pop %v2722
          %v2724 = vadd.f32 %v2721, 1.0
          %v2725 = vadd.f32 %v2723, 1.0
          %v2726 = vrcp.pop %v2724
          %v2727 = vmul.f32 1.0, %v2726
          %v2728 = vrcp.pop %v2725
          %v2729 = vmul.f32 1.0, %v2728
          %v2730 = vtanh.pop %v2700
          %v2731 = vtanh.pop %v2704
          %v2732 = vxor.u32 %v2701, 2147483648
          %v2733 = vxor.u32 %v2705, 2147483648
          %v2734 = vmul.f32 %v2732, 1.442695
          %v2735 = vpow.pop %v2734
          %v2736 = vmul.f32 %v2733, 1.442695
          %v2737 = vpow.pop %v2736
          %v2738 = vadd.f32 %v2735, 1.0
          %v2739 = vadd.f32 %v2737, 1.0
          %v2740 = vrcp.pop %v2738
          %v2741 = vmul.f32 1.0, %v2740
          %v2742 = vrcp.pop %v2739
          %v2743 = vmul.f32 1.0, %v2742
          %v2744 = vmul.f32 %v2727, %v2600
          %v2745 = vmul.f32 %v2729, %v2601
          %v2746 = vmul.f32 %v2715, %v2730
          %v2747 = vmul.f32 %v2717, %v2731
          %v2748 = vadd.f32 %v2744, %v2746
          %v2749 = vadd.f32 %v2745, %v2747
          %v2750 = vtanh.pop %v2748
          %v2751 = vtanh.pop %v2749
          %v2752 = vmul.f32 %v2741, %v2750
          %v2753 = vmul.f32 %v2743, %v2751
          %v2754 = vstv %s2602
          %vm2755 = vcmp.lt.s32.totalorder %v2754, %v922
          %vm2756 = vcmp.lt.s32.totalorder %v2754, %v923
          %v2757 = vsel %vm2755, 1, 0
          %v2758 = vsel %vm2756, 1, 0
          %2759 = vset.pattern.permute.xlu0 0
          %2760 = vperm.xlu0 %2759, %v2757
          %v2761 = vpop.permute.xlu0 %2760
          %2762 = vset.pattern.permute.xlu0 0
          %2763 = vperm.xlu0 %2762, %v2758
          %v2764 = vpop.permute.xlu0 %2763
          %vm2765 = vcmp.eq.s32.totalorder %v2761, 1
          %vm2766 = vcmp.eq.s32.totalorder %v2764, 1
          %v2767 = vsel %vm2765, %v2752, 0.0
          %v2768 = vsel %vm2766, %v2753, 0.0
          %v2771 = vcombine.high %v2767, %v2767
          %v2773 = vunpack.c.l.s4 1966171168
          %v2774 = vunpack.c.0.s8 %v2773
          %v2775 = vlaneseq
          %v2776 = vshrl.u32 %v2775, 7
          %v2777 = vsub.s32 %v2774, %v2776
          %v2778 = vrot.slane %v2767, %v2777
          %v2780 = vunpack.c.l.s4 1966171168
          %v2781 = vunpack.c.0.s8 %v2780
          %v2782 = vlaneseq
          %v2783 = vshrl.u32 %v2782, 7
          %v2784 = vsub.s32 %v2781, %v2783
          %v2785 = vrot.slane %v2771, %v2784
          %v2786 = vcombine.high %v2778, %v2778
          %v2787 = vcombine.high %v2785, %v2785
          %v2789 = vunpack.c.l.s4 1966171168
          %v2790 = vunpack.c.0.s8 %v2789
          %v2791 = vlaneseq
          %v2792 = vshrl.u32 %v2791, 7
          %v2793 = vsub.s32 %v2790, %v2792
          %v2794 = vrot.slane %v2778, %v2793
          %v2796 = vunpack.c.l.s4 1966171168
          %v2797 = vunpack.c.0.s8 %v2796
          %v2798 = vlaneseq
          %v2799 = vshrl.u32 %v2798, 7
          %v2800 = vsub.s32 %v2797, %v2799
          %v2801 = vrot.slane %v2785, %v2800
          %v2803 = vunpack.c.l.s4 1966171168
          %v2804 = vunpack.c.0.s8 %v2803
          %v2805 = vlaneseq
          %v2806 = vshrl.u32 %v2805, 7
          %v2807 = vsub.s32 %v2804, %v2806
          %v2808 = vrot.slane %v2786, %v2807
          %v2810 = vunpack.c.l.s4 1966171168
          %v2811 = vunpack.c.0.s8 %v2810
          %v2812 = vlaneseq
          %v2813 = vshrl.u32 %v2812, 7
          %v2814 = vsub.s32 %v2811, %v2813
          %v2815 = vrot.slane %v2787, %v2814
          %v2816 = vcombine.high %v2794, %v2794
          %v2817 = vcombine.high %v2801, %v2801
          %v2818 = vcombine.high %v2808, %v2808
          %v2819 = vcombine.high %v2815, %v2815
          %v2820 = vcombine.high %v2768, %v2768
          %v2822 = vunpack.c.l.s4 1966171168
          %v2823 = vunpack.c.0.s8 %v2822
          %v2824 = vlaneseq
          %v2825 = vshrl.u32 %v2824, 7
          %v2826 = vsub.s32 %v2823, %v2825
          %v2827 = vrot.slane %v2768, %v2826
          %v2829 = vunpack.c.l.s4 1966171168
          %v2830 = vunpack.c.0.s8 %v2829
          %v2831 = vlaneseq
          %v2832 = vshrl.u32 %v2831, 7
          %v2833 = vsub.s32 %v2830, %v2832
          %v2834 = vrot.slane %v2820, %v2833
          %v2835 = vcombine.high %v2827, %v2827
          %v2836 = vcombine.high %v2834, %v2834
          %v2838 = vunpack.c.l.s4 1966171168
          %v2839 = vunpack.c.0.s8 %v2838
          %v2840 = vlaneseq
          %v2841 = vshrl.u32 %v2840, 7
          %v2842 = vsub.s32 %v2839, %v2841
          %v2843 = vrot.slane %v2827, %v2842
          %v2845 = vunpack.c.l.s4 1966171168
          %v2846 = vunpack.c.0.s8 %v2845
          %v2847 = vlaneseq
          %v2848 = vshrl.u32 %v2847, 7
          %v2849 = vsub.s32 %v2846, %v2848
          %v2850 = vrot.slane %v2834, %v2849
          %v2852 = vunpack.c.l.s4 1966171168
          %v2853 = vunpack.c.0.s8 %v2852
          %v2854 = vlaneseq
          %v2855 = vshrl.u32 %v2854, 7
          %v2856 = vsub.s32 %v2853, %v2855
          %v2857 = vrot.slane %v2835, %v2856
          %v2859 = vunpack.c.l.s4 1966171168
          %v2860 = vunpack.c.0.s8 %v2859
          %v2861 = vlaneseq
          %v2862 = vshrl.u32 %v2861, 7
          %v2863 = vsub.s32 %v2860, %v2862
          %v2864 = vrot.slane %v2836, %v2863
          %v2865 = vcombine.high %v2843, %v2843
          %v2866 = vcombine.high %v2850, %v2850
          %v2867 = vcombine.high %v2857, %v2857
          %v2868 = vcombine.high %v2864, %v2864
          %2885 = vst [vmem:[%s368 + $0x5] sm:$0x1] %v2794
          %2886 = vst [vmem:[%s368 + $0xd] sm:$0x1] %v2808
          %2887 = vst [vmem:[%s368 + $0x15] sm:$0x1] %v2816
          %2888 = vst [vmem:[%s368 + $0x1d] sm:$0x1] %v2818
          %2889 = vst [vmem:[%s368 + $0x25] sm:$0x1] %v2801
          %2890 = vst [vmem:[%s368 + $0x2d] sm:$0x1] %v2815
          %2891 = vst [vmem:[%s368 + $0x35] sm:$0x1] %v2817
          %2892 = vst [vmem:[%s368 + $0x3d] sm:$0x1] %v2819
          %2893 = vst [vmem:[%s368 + $0x45] sm:$0x1] %v2843
          %2894 = vst [vmem:[%s368 + $0x4d] sm:$0x1] %v2857
          %2895 = vst [vmem:[%s368 + $0x55] sm:$0x1] %v2865
          %2896 = vst [vmem:[%s368 + $0x5d] sm:$0x1] %v2867
          %2897 = vst [vmem:[%s368 + $0x65] sm:$0x1] %v2850
          %2898 = vst [vmem:[%s368 + $0x6d] sm:$0x1] %v2864
          %2899 = vst [vmem:[%s368 + $0x75] sm:$0x1] %v2866
          %2900 = vst [vmem:[%s368 + $0x7d] sm:$0x1] %v2868
          %v2901 = vsel %vm2765, %v2752, %v2598
          %v2902 = vsel %vm2766, %v2753, %v2599
          %v2903 = vsel %vm2765, %v2748, %v2600
          %v2904 = vsel %vm2766, %v2749, %v2601
          %s2905 = sadd.s32 %s423, 6
          %v2906 = vld [vmem:[#allocation4 + $0x180] sm:$0xff]
          %v2907 = vld [vmem:[#allocation4 + $0x188] sm:$0xff]
          %v2908 = vld [vmem:[#allocation4 + $0x190] sm:$0xff]
          %v2909 = vld [vmem:[#allocation4 + $0x198] sm:$0xff]
          %v2910 = vld [vmem:[#allocation4 + $0x1a0] sm:$0xff]
          %v2911 = vld [vmem:[#allocation4 + $0x1a8] sm:$0xff]
          %v2912 = vld [vmem:[#allocation4 + $0x1b0] sm:$0xff]
          %v2913 = vld [vmem:[#allocation4 + $0x1b8] sm:$0xff]
          %v2914 = vpack.c.bf16 %v2902, %v2901
          %2915 = vmatprep.subr.bf16.mxu0 %v1062
          %2916 = vmatpush1.bf16.msra.mxu0 %v1061
          %2917 = vmatprep.subr.bf16.mxu0 %v1058
          %2918 = vmatpush1.bf16.msra.mxu0 %v1057
          %2919 = vmatprep.subr.bf16.mxu0 %v1054
          %2920 = vmatpush1.bf16.msra.mxu0 %v1053
          %2921 = vmatprep.subr.bf16.mxu0 %v1050
          %2922 = vmatpush1.bf16.msra.mxu0 %v1049
          %2923 = vmatprep.subr.bf16.mxu0 %v1046
          %2924 = vmatpush1.bf16.msra.mxu0 %v1045
          %2925 = vmatprep.subr.bf16.mxu0 %v1042
          %2926 = vmatpush1.bf16.msra.mxu0 %v1041
          %2927 = vmatprep.subr.bf16.mxu0 %v1038
          %2928 = vmatpush1.bf16.msra.mxu0 %v1037
          %2929 = vmatprep.subr.bf16.mxu0 %v1034
          %2930 = vmatpush1.bf16.msra.mxu0 %v1033
          %2931 = vmatprep.subr.bf16.mxu0 0
          %2932 = vmatpush2.bf16.msra.mxu0 0
          %2933 = vmatprep.subr.bf16.mxu0 0
          %2934 = vmatpush2.bf16.msra.mxu0 0
          %2935 = vmatprep.subr.bf16.mxu0 0
          %2936 = vmatpush2.bf16.msra.mxu0 0
          %2937 = vmatprep.subr.bf16.mxu0 0
          %2938 = vmatpush2.bf16.msra.mxu0 0
          %2939 = vmatprep.subr.bf16.mxu0 0
          %2940 = vmatpush2.bf16.msra.mxu0 0
          %2941 = vmatprep.subr.bf16.mxu0 0
          %2942 = vmatpush2.bf16.msra.mxu0 0
          %2943 = vmatprep.subr.bf16.mxu0 0
          %2944 = vmatpush2.bf16.msra.mxu0 0
          %2945 = vmatprep.subr.bf16.mxu0 0
          %2946 = vmatpush2.bf16.msra.mxu0 0
          %2947 = vmatprep.mubr.bf16.mxu0 0
          %2948 = vmatmul.mubr.bf16.gmra.mxu0 %v2914
          %v2949 = vpop.f32.mrf.mxu0
          %v2950 = vadd.f32 0.0, %v2949
          %v2951 = vpop.f32.mrf.mxu0
          %v2952 = vadd.f32 0.0, %v2951
          %v2953 = vpop.f32.mrf.mxu0
          %v2954 = vadd.f32 0.0, %v2953
          %v2955 = vpop.f32.mrf.mxu0
          %v2956 = vadd.f32 0.0, %v2955
          %2957 = vdwg.mxu0
          %2958 = vmatprep.subr.bf16.mxu0 %v1064
          %2959 = vmatpush1.bf16.msra.mxu0 %v1063
          %2960 = vmatprep.subr.bf16.mxu0 %v1060
          %2961 = vmatpush1.bf16.msra.mxu0 %v1059
          %2962 = vmatprep.subr.bf16.mxu0 %v1056
          %2963 = vmatpush1.bf16.msra.mxu0 %v1055
          %2964 = vmatprep.subr.bf16.mxu0 %v1052
          %2965 = vmatpush1.bf16.msra.mxu0 %v1051
          %2966 = vmatprep.subr.bf16.mxu0 %v1048
          %2967 = vmatpush1.bf16.msra.mxu0 %v1047
          %2968 = vmatprep.subr.bf16.mxu0 %v1044
          %2969 = vmatpush1.bf16.msra.mxu0 %v1043
          %2970 = vmatprep.subr.bf16.mxu0 %v1040
          %2971 = vmatpush1.bf16.msra.mxu0 %v1039
          %2972 = vmatprep.subr.bf16.mxu0 %v1036
          %2973 = vmatpush1.bf16.msra.mxu0 %v1035
          %2974 = vmatprep.subr.bf16.mxu0 0
          %2975 = vmatpush2.bf16.msra.mxu0 0
          %2976 = vmatprep.subr.bf16.mxu0 0
          %2977 = vmatpush2.bf16.msra.mxu0 0
          %2978 = vmatprep.subr.bf16.mxu0 0
          %2979 = vmatpush2.bf16.msra.mxu0 0
          %2980 = vmatprep.subr.bf16.mxu0 0
          %2981 = vmatpush2.bf16.msra.mxu0 0
          %2982 = vmatprep.subr.bf16.mxu0 0
          %2983 = vmatpush2.bf16.msra.mxu0 0
          %2984 = vmatprep.subr.bf16.mxu0 0
          %2985 = vmatpush2.bf16.msra.mxu0 0
          %2986 = vmatprep.subr.bf16.mxu0 0
          %2987 = vmatpush2.bf16.msra.mxu0 0
          %2988 = vmatprep.subr.bf16.mxu0 0
          %2989 = vmatpush2.bf16.msra.mxu0 0
          %2990 = vmatprep.mubr.bf16.mxu0 0
          %2991 = vmatmul.mubr.bf16.gmra.mxu0 %v2914
          %v2992 = vpop.f32.mrf.mxu0
          %v2993 = vadd.f32 0.0, %v2992
          %v2994 = vpop.f32.mrf.mxu0
          %v2995 = vadd.f32 0.0, %v2994
          %v2996 = vpop.f32.mrf.mxu0
          %v2997 = vadd.f32 0.0, %v2996
          %v2998 = vpop.f32.mrf.mxu0
          %v2999 = vadd.f32 0.0, %v2998
          %3000 = vdwg.mxu0
          %v3001 = vadd.f32 %v2906, %v2950
          %v3002 = vadd.f32 %v2907, %v2952
          %v3003 = vadd.f32 %v2908, %v2993
          %v3004 = vadd.f32 %v2909, %v2995
          %v3005 = vadd.f32 %v2910, %v2954
          %v3006 = vadd.f32 %v2911, %v2956
          %v3007 = vadd.f32 %v2912, %v2997
          %v3008 = vadd.f32 %v2913, %v2999
          %v3009 = vxor.u32 %v3001, 2147483648
          %v3010 = vxor.u32 %v3005, 2147483648
          %v3011 = vmul.f32 %v3009, 1.442695
          %v3012 = vpow.pop %v3011
          %v3013 = vmul.f32 %v3010, 1.442695
          %v3014 = vpow.pop %v3013
          %v3015 = vadd.f32 %v3012, 1.0
          %v3016 = vadd.f32 %v3014, 1.0
          %v3017 = vrcp.pop %v3015
          %v3018 = vmul.f32 1.0, %v3017
          %v3019 = vrcp.pop %v3016
          %v3020 = vmul.f32 1.0, %v3019
          %v3021 = vxor.u32 %v3002, 2147483648
          %v3022 = vxor.u32 %v3006, 2147483648
          %v3023 = vmul.f32 %v3021, 1.442695
          %v3024 = vpow.pop %v3023
          %v3025 = vmul.f32 %v3022, 1.442695
          %v3026 = vpow.pop %v3025
          %v3027 = vadd.f32 %v3024, 1.0
          %v3028 = vadd.f32 %v3026, 1.0
          %v3029 = vrcp.pop %v3027
          %v3030 = vmul.f32 1.0, %v3029
          %v3031 = vrcp.pop %v3028
          %v3032 = vmul.f32 1.0, %v3031
          %v3033 = vtanh.pop %v3003
          %v3034 = vtanh.pop %v3007
          %v3035 = vxor.u32 %v3004, 2147483648
          %v3036 = vxor.u32 %v3008, 2147483648
          %v3037 = vmul.f32 %v3035, 1.442695
          %v3038 = vpow.pop %v3037
          %v3039 = vmul.f32 %v3036, 1.442695
          %v3040 = vpow.pop %v3039
          %v3041 = vadd.f32 %v3038, 1.0
          %v3042 = vadd.f32 %v3040, 1.0
          %v3043 = vrcp.pop %v3041
          %v3044 = vmul.f32 1.0, %v3043
          %v3045 = vrcp.pop %v3042
          %v3046 = vmul.f32 1.0, %v3045
          %v3047 = vmul.f32 %v3030, %v2903
          %v3048 = vmul.f32 %v3032, %v2904
          %v3049 = vmul.f32 %v3018, %v3033
          %v3050 = vmul.f32 %v3020, %v3034
          %v3051 = vadd.f32 %v3047, %v3049
          %v3052 = vadd.f32 %v3048, %v3050
          %v3053 = vtanh.pop %v3051
          %v3054 = vtanh.pop %v3052
          %v3055 = vmul.f32 %v3044, %v3053
          %v3056 = vmul.f32 %v3046, %v3054
          %v3057 = vstv %s2905
          %vm3058 = vcmp.lt.s32.totalorder %v3057, %v922
          %vm3059 = vcmp.lt.s32.totalorder %v3057, %v923
          %v3060 = vsel %vm3058, 1, 0
          %v3061 = vsel %vm3059, 1, 0
          %3062 = vset.pattern.permute.xlu0 0
          %3063 = vperm.xlu0 %3062, %v3060
          %v3064 = vpop.permute.xlu0 %3063
          %3065 = vset.pattern.permute.xlu0 0
          %3066 = vperm.xlu0 %3065, %v3061
          %v3067 = vpop.permute.xlu0 %3066
          %vm3068 = vcmp.eq.s32.totalorder %v3064, 1
          %vm3069 = vcmp.eq.s32.totalorder %v3067, 1
          %v3070 = vsel %vm3068, %v3055, 0.0
          %v3071 = vsel %vm3069, %v3056, 0.0
          %v3074 = vcombine.high %v3070, %v3070
          %v3076 = vunpack.c.l.s4 1966171168
          %v3077 = vunpack.c.0.s8 %v3076
          %v3078 = vlaneseq
          %v3079 = vshrl.u32 %v3078, 7
          %v3080 = vsub.s32 %v3077, %v3079
          %v3081 = vrot.slane %v3070, %v3080
          %v3083 = vunpack.c.l.s4 1966171168
          %v3084 = vunpack.c.0.s8 %v3083
          %v3085 = vlaneseq
          %v3086 = vshrl.u32 %v3085, 7
          %v3087 = vsub.s32 %v3084, %v3086
          %v3088 = vrot.slane %v3074, %v3087
          %v3089 = vcombine.high %v3081, %v3081
          %v3090 = vcombine.high %v3088, %v3088
          %v3092 = vunpack.c.l.s4 1966171168
          %v3093 = vunpack.c.0.s8 %v3092
          %v3094 = vlaneseq
          %v3095 = vshrl.u32 %v3094, 7
          %v3096 = vsub.s32 %v3093, %v3095
          %v3097 = vrot.slane %v3081, %v3096
          %v3099 = vunpack.c.l.s4 1966171168
          %v3100 = vunpack.c.0.s8 %v3099
          %v3101 = vlaneseq
          %v3102 = vshrl.u32 %v3101, 7
          %v3103 = vsub.s32 %v3100, %v3102
          %v3104 = vrot.slane %v3088, %v3103
          %v3106 = vunpack.c.l.s4 1966171168
          %v3107 = vunpack.c.0.s8 %v3106
          %v3108 = vlaneseq
          %v3109 = vshrl.u32 %v3108, 7
          %v3110 = vsub.s32 %v3107, %v3109
          %v3111 = vrot.slane %v3089, %v3110
          %v3113 = vunpack.c.l.s4 1966171168
          %v3114 = vunpack.c.0.s8 %v3113
          %v3115 = vlaneseq
          %v3116 = vshrl.u32 %v3115, 7
          %v3117 = vsub.s32 %v3114, %v3116
          %v3118 = vrot.slane %v3090, %v3117
          %v3119 = vcombine.high %v3097, %v3097
          %v3120 = vcombine.high %v3104, %v3104
          %v3121 = vcombine.high %v3111, %v3111
          %v3122 = vcombine.high %v3118, %v3118
          %v3123 = vcombine.high %v3071, %v3071
          %v3125 = vunpack.c.l.s4 1966171168
          %v3126 = vunpack.c.0.s8 %v3125
          %v3127 = vlaneseq
          %v3128 = vshrl.u32 %v3127, 7
          %v3129 = vsub.s32 %v3126, %v3128
          %v3130 = vrot.slane %v3071, %v3129
          %v3132 = vunpack.c.l.s4 1966171168
          %v3133 = vunpack.c.0.s8 %v3132
          %v3134 = vlaneseq
          %v3135 = vshrl.u32 %v3134, 7
          %v3136 = vsub.s32 %v3133, %v3135
          %v3137 = vrot.slane %v3123, %v3136
          %v3138 = vcombine.high %v3130, %v3130
          %v3139 = vcombine.high %v3137, %v3137
          %v3141 = vunpack.c.l.s4 1966171168
          %v3142 = vunpack.c.0.s8 %v3141
          %v3143 = vlaneseq
          %v3144 = vshrl.u32 %v3143, 7
          %v3145 = vsub.s32 %v3142, %v3144
          %v3146 = vrot.slane %v3130, %v3145
          %v3148 = vunpack.c.l.s4 1966171168
          %v3149 = vunpack.c.0.s8 %v3148
          %v3150 = vlaneseq
          %v3151 = vshrl.u32 %v3150, 7
          %v3152 = vsub.s32 %v3149, %v3151
          %v3153 = vrot.slane %v3137, %v3152
          %v3155 = vunpack.c.l.s4 1966171168
          %v3156 = vunpack.c.0.s8 %v3155
          %v3157 = vlaneseq
          %v3158 = vshrl.u32 %v3157, 7
          %v3159 = vsub.s32 %v3156, %v3158
          %v3160 = vrot.slane %v3138, %v3159
          %v3162 = vunpack.c.l.s4 1966171168
          %v3163 = vunpack.c.0.s8 %v3162
          %v3164 = vlaneseq
          %v3165 = vshrl.u32 %v3164, 7
          %v3166 = vsub.s32 %v3163, %v3165
          %v3167 = vrot.slane %v3139, %v3166
          %v3168 = vcombine.high %v3146, %v3146
          %v3169 = vcombine.high %v3153, %v3153
          %v3170 = vcombine.high %v3160, %v3160
          %v3171 = vcombine.high %v3167, %v3167
          %3188 = vst [vmem:[%s368 + $0x6] sm:$0x1] %v3097
          %3189 = vst [vmem:[%s368 + $0xe] sm:$0x1] %v3111
          %3190 = vst [vmem:[%s368 + $0x16] sm:$0x1] %v3119
          %3191 = vst [vmem:[%s368 + $0x1e] sm:$0x1] %v3121
          %3192 = vst [vmem:[%s368 + $0x26] sm:$0x1] %v3104
          %3193 = vst [vmem:[%s368 + $0x2e] sm:$0x1] %v3118
          %3194 = vst [vmem:[%s368 + $0x36] sm:$0x1] %v3120
          %3195 = vst [vmem:[%s368 + $0x3e] sm:$0x1] %v3122
          %3196 = vst [vmem:[%s368 + $0x46] sm:$0x1] %v3146
          %3197 = vst [vmem:[%s368 + $0x4e] sm:$0x1] %v3160
          %3198 = vst [vmem:[%s368 + $0x56] sm:$0x1] %v3168
          %3199 = vst [vmem:[%s368 + $0x5e] sm:$0x1] %v3170
          %3200 = vst [vmem:[%s368 + $0x66] sm:$0x1] %v3153
          %3201 = vst [vmem:[%s368 + $0x6e] sm:$0x1] %v3167
          %3202 = vst [vmem:[%s368 + $0x76] sm:$0x1] %v3169
          %3203 = vst [vmem:[%s368 + $0x7e] sm:$0x1] %v3171
          %v3204 = vsel %vm3068, %v3055, %v2901
          %v3205 = vsel %vm3069, %v3056, %v2902
          %v3206 = vsel %vm3068, %v3051, %v2903
          %v3207 = vsel %vm3069, %v3052, %v2904
          %s3208 = sadd.s32 %s423, 7
          %v3209 = vld [vmem:[#allocation4 + $0x1c0] sm:$0xff]
          %v3210 = vld [vmem:[#allocation4 + $0x1c8] sm:$0xff]
          %v3211 = vld [vmem:[#allocation4 + $0x1d0] sm:$0xff]
          %v3212 = vld [vmem:[#allocation4 + $0x1d8] sm:$0xff]
          %v3213 = vld [vmem:[#allocation4 + $0x1e0] sm:$0xff]
          %v3214 = vld [vmem:[#allocation4 + $0x1e8] sm:$0xff]
          %v3215 = vld [vmem:[#allocation4 + $0x1f0] sm:$0xff]
          %v3216 = vld [vmem:[#allocation4 + $0x1f8] sm:$0xff]
          %v3217 = vpack.c.bf16 %v3205, %v3204
          %3218 = vmatprep.subr.bf16.mxu0 %v1062
          %3219 = vmatpush1.bf16.msra.mxu0 %v1061
          %3220 = vmatprep.subr.bf16.mxu0 %v1058
          %3221 = vmatpush1.bf16.msra.mxu0 %v1057
          %3222 = vmatprep.subr.bf16.mxu0 %v1054
          %3223 = vmatpush1.bf16.msra.mxu0 %v1053
          %3224 = vmatprep.subr.bf16.mxu0 %v1050
          %3225 = vmatpush1.bf16.msra.mxu0 %v1049
          %3226 = vmatprep.subr.bf16.mxu0 %v1046
          %3227 = vmatpush1.bf16.msra.mxu0 %v1045
          %3228 = vmatprep.subr.bf16.mxu0 %v1042
          %3229 = vmatpush1.bf16.msra.mxu0 %v1041
          %3230 = vmatprep.subr.bf16.mxu0 %v1038
          %3231 = vmatpush1.bf16.msra.mxu0 %v1037
          %3232 = vmatprep.subr.bf16.mxu0 %v1034
          %3233 = vmatpush1.bf16.msra.mxu0 %v1033
          %3234 = vmatprep.subr.bf16.mxu0 0
          %3235 = vmatpush2.bf16.msra.mxu0 0
          %3236 = vmatprep.subr.bf16.mxu0 0
          %3237 = vmatpush2.bf16.msra.mxu0 0
          %3238 = vmatprep.subr.bf16.mxu0 0
          %3239 = vmatpush2.bf16.msra.mxu0 0
          %3240 = vmatprep.subr.bf16.mxu0 0
          %3241 = vmatpush2.bf16.msra.mxu0 0
          %3242 = vmatprep.subr.bf16.mxu0 0
          %3243 = vmatpush2.bf16.msra.mxu0 0
          %3244 = vmatprep.subr.bf16.mxu0 0
          %3245 = vmatpush2.bf16.msra.mxu0 0
          %3246 = vmatprep.subr.bf16.mxu0 0
          %3247 = vmatpush2.bf16.msra.mxu0 0
          %3248 = vmatprep.subr.bf16.mxu0 0
          %3249 = vmatpush2.bf16.msra.mxu0 0
          %3250 = vmatprep.mubr.bf16.mxu0 0
          %3251 = vmatmul.mubr.bf16.gmra.mxu0 %v3217
          %v3252 = vpop.f32.mrf.mxu0
          %v3253 = vadd.f32 0.0, %v3252
          %v3254 = vpop.f32.mrf.mxu0
          %v3255 = vadd.f32 0.0, %v3254
          %v3256 = vpop.f32.mrf.mxu0
          %v3257 = vadd.f32 0.0, %v3256
          %v3258 = vpop.f32.mrf.mxu0
          %v3259 = vadd.f32 0.0, %v3258
          %3260 = vdwg.mxu0
          %3261 = vmatprep.subr.bf16.mxu0 %v1064
          %3262 = vmatpush1.bf16.msra.mxu0 %v1063
          %3263 = vmatprep.subr.bf16.mxu0 %v1060
          %3264 = vmatpush1.bf16.msra.mxu0 %v1059
          %3265 = vmatprep.subr.bf16.mxu0 %v1056
          %3266 = vmatpush1.bf16.msra.mxu0 %v1055
          %3267 = vmatprep.subr.bf16.mxu0 %v1052
          %3268 = vmatpush1.bf16.msra.mxu0 %v1051
          %3269 = vmatprep.subr.bf16.mxu0 %v1048
          %3270 = vmatpush1.bf16.msra.mxu0 %v1047
          %3271 = vmatprep.subr.bf16.mxu0 %v1044
          %3272 = vmatpush1.bf16.msra.mxu0 %v1043
          %3273 = vmatprep.subr.bf16.mxu0 %v1040
          %3274 = vmatpush1.bf16.msra.mxu0 %v1039
          %3275 = vmatprep.subr.bf16.mxu0 %v1036
          %3276 = vmatpush1.bf16.msra.mxu0 %v1035
          %3277 = vmatprep.subr.bf16.mxu0 0
          %3278 = vmatpush2.bf16.msra.mxu0 0
          %3279 = vmatprep.subr.bf16.mxu0 0
          %3280 = vmatpush2.bf16.msra.mxu0 0
          %3281 = vmatprep.subr.bf16.mxu0 0
          %3282 = vmatpush2.bf16.msra.mxu0 0
          %3283 = vmatprep.subr.bf16.mxu0 0
          %3284 = vmatpush2.bf16.msra.mxu0 0
          %3285 = vmatprep.subr.bf16.mxu0 0
          %3286 = vmatpush2.bf16.msra.mxu0 0
          %3287 = vmatprep.subr.bf16.mxu0 0
          %3288 = vmatpush2.bf16.msra.mxu0 0
          %3289 = vmatprep.subr.bf16.mxu0 0
          %3290 = vmatpush2.bf16.msra.mxu0 0
          %3291 = vmatprep.subr.bf16.mxu0 0
          %3292 = vmatpush2.bf16.msra.mxu0 0
          %3293 = vmatprep.mubr.bf16.mxu0 0
          %3294 = vmatmul.mubr.bf16.gmra.mxu0 %v3217
          %v3295 = vpop.f32.mrf.mxu0
          %v3296 = vadd.f32 0.0, %v3295
          %v3297 = vpop.f32.mrf.mxu0
          %v3298 = vadd.f32 0.0, %v3297
          %v3299 = vpop.f32.mrf.mxu0
          %v3300 = vadd.f32 0.0, %v3299
          %v3301 = vpop.f32.mrf.mxu0
          %v3302 = vadd.f32 0.0, %v3301
          %3303 = vdwg.mxu0
          %v3304 = vadd.f32 %v3209, %v3253
          %v3305 = vadd.f32 %v3210, %v3255
          %v3306 = vadd.f32 %v3211, %v3296
          %v3307 = vadd.f32 %v3212, %v3298
          %v3308 = vadd.f32 %v3213, %v3257
          %v3309 = vadd.f32 %v3214, %v3259
          %v3310 = vadd.f32 %v3215, %v3300
          %v3311 = vadd.f32 %v3216, %v3302
          %v3312 = vxor.u32 %v3304, 2147483648
          %v3313 = vxor.u32 %v3308, 2147483648
          %v3314 = vmul.f32 %v3312, 1.442695
          %v3315 = vpow.pop %v3314
          %v3316 = vmul.f32 %v3313, 1.442695
          %v3317 = vpow.pop %v3316
          %v3318 = vadd.f32 %v3315, 1.0
          %v3319 = vadd.f32 %v3317, 1.0
          %v3320 = vrcp.pop %v3318
          %v3321 = vmul.f32 1.0, %v3320
          %v3322 = vrcp.pop %v3319
          %v3323 = vmul.f32 1.0, %v3322
          %v3324 = vxor.u32 %v3305, 2147483648
          %v3325 = vxor.u32 %v3309, 2147483648
          %v3326 = vmul.f32 %v3324, 1.442695
          %v3327 = vpow.pop %v3326
          %v3328 = vmul.f32 %v3325, 1.442695
          %v3329 = vpow.pop %v3328
          %v3330 = vadd.f32 %v3327, 1.0
          %v3331 = vadd.f32 %v3329, 1.0
          %v3332 = vrcp.pop %v3330
          %v3333 = vmul.f32 1.0, %v3332
          %v3334 = vrcp.pop %v3331
          %v3335 = vmul.f32 1.0, %v3334
          %v3336 = vtanh.pop %v3306
          %v3337 = vtanh.pop %v3310
          %v3338 = vxor.u32 %v3307, 2147483648
          %v3339 = vxor.u32 %v3311, 2147483648
          %v3340 = vmul.f32 %v3338, 1.442695
          %v3341 = vpow.pop %v3340
          %v3342 = vmul.f32 %v3339, 1.442695
          %v3343 = vpow.pop %v3342
          %v3344 = vadd.f32 %v3341, 1.0
          %v3345 = vadd.f32 %v3343, 1.0
          %v3346 = vrcp.pop %v3344
          %v3347 = vmul.f32 1.0, %v3346
          %v3348 = vrcp.pop %v3345
          %v3349 = vmul.f32 1.0, %v3348
          %v3350 = vmul.f32 %v3333, %v3206
          %v3351 = vmul.f32 %v3335, %v3207
          %v3352 = vmul.f32 %v3321, %v3336
          %v3353 = vmul.f32 %v3323, %v3337
          %v3354 = vadd.f32 %v3350, %v3352
          %v3355 = vadd.f32 %v3351, %v3353
          %v3356 = vtanh.pop %v3354
          %v3357 = vtanh.pop %v3355
          %v3358 = vmul.f32 %v3347, %v3356
          %v3359 = vmul.f32 %v3349, %v3357
          %v3360 = vstv %s3208
          %vm3361 = vcmp.lt.s32.totalorder %v3360, %v922
          %vm3362 = vcmp.lt.s32.totalorder %v3360, %v923
          %v3363 = vsel %vm3361, 1, 0
          %v3364 = vsel %vm3362, 1, 0
          %3365 = vset.pattern.permute.xlu0 0
          %3366 = vperm.xlu0 %3365, %v3363
          %v3367 = vpop.permute.xlu0 %3366
          %3368 = vset.pattern.permute.xlu0 0
          %3369 = vperm.xlu0 %3368, %v3364
          %v3370 = vpop.permute.xlu0 %3369
          %vm3371 = vcmp.eq.s32.totalorder %v3367, 1
          %vm3372 = vcmp.eq.s32.totalorder %v3370, 1
          %v3373 = vsel %vm3371, %v3358, 0.0
          %v3374 = vsel %vm3372, %v3359, 0.0
          %v3377 = vcombine.high %v3373, %v3373
          %v3379 = vunpack.c.l.s4 1966171168
          %v3380 = vunpack.c.0.s8 %v3379
          %v3381 = vlaneseq
          %v3382 = vshrl.u32 %v3381, 7
          %v3383 = vsub.s32 %v3380, %v3382
          %v3384 = vrot.slane %v3373, %v3383
          %v3386 = vunpack.c.l.s4 1966171168
          %v3387 = vunpack.c.0.s8 %v3386
          %v3388 = vlaneseq
          %v3389 = vshrl.u32 %v3388, 7
          %v3390 = vsub.s32 %v3387, %v3389
          %v3391 = vrot.slane %v3377, %v3390
          %v3392 = vcombine.high %v3384, %v3384
          %v3393 = vcombine.high %v3391, %v3391
          %v3395 = vunpack.c.l.s4 1966171168
          %v3396 = vunpack.c.0.s8 %v3395
          %v3397 = vlaneseq
          %v3398 = vshrl.u32 %v3397, 7
          %v3399 = vsub.s32 %v3396, %v3398
          %v3400 = vrot.slane %v3384, %v3399
          %v3402 = vunpack.c.l.s4 1966171168
          %v3403 = vunpack.c.0.s8 %v3402
          %v3404 = vlaneseq
          %v3405 = vshrl.u32 %v3404, 7
          %v3406 = vsub.s32 %v3403, %v3405
          %v3407 = vrot.slane %v3391, %v3406
          %v3409 = vunpack.c.l.s4 1966171168
          %v3410 = vunpack.c.0.s8 %v3409
          %v3411 = vlaneseq
          %v3412 = vshrl.u32 %v3411, 7
          %v3413 = vsub.s32 %v3410, %v3412
          %v3414 = vrot.slane %v3392, %v3413
          %v3416 = vunpack.c.l.s4 1966171168
          %v3417 = vunpack.c.0.s8 %v3416
          %v3418 = vlaneseq
          %v3419 = vshrl.u32 %v3418, 7
          %v3420 = vsub.s32 %v3417, %v3419
          %v3421 = vrot.slane %v3393, %v3420
          %v3422 = vcombine.high %v3400, %v3400
          %v3423 = vcombine.high %v3407, %v3407
          %v3424 = vcombine.high %v3414, %v3414
          %v3425 = vcombine.high %v3421, %v3421
          %v3426 = vcombine.high %v3374, %v3374
          %v3428 = vunpack.c.l.s4 1966171168
          %v3429 = vunpack.c.0.s8 %v3428
          %v3430 = vlaneseq
          %v3431 = vshrl.u32 %v3430, 7
          %v3432 = vsub.s32 %v3429, %v3431
          %v3433 = vrot.slane %v3374, %v3432
          %v3435 = vunpack.c.l.s4 1966171168
          %v3436 = vunpack.c.0.s8 %v3435
          %v3437 = vlaneseq
          %v3438 = vshrl.u32 %v3437, 7
          %v3439 = vsub.s32 %v3436, %v3438
          %v3440 = vrot.slane %v3426, %v3439
          %v3441 = vcombine.high %v3433, %v3433
          %v3442 = vcombine.high %v3440, %v3440
          %v3444 = vunpack.c.l.s4 1966171168
          %v3445 = vunpack.c.0.s8 %v3444
          %v3446 = vlaneseq
          %v3447 = vshrl.u32 %v3446, 7
          %v3448 = vsub.s32 %v3445, %v3447
          %v3449 = vrot.slane %v3433, %v3448
          %v3451 = vunpack.c.l.s4 1966171168
          %v3452 = vunpack.c.0.s8 %v3451
          %v3453 = vlaneseq
          %v3454 = vshrl.u32 %v3453, 7
          %v3455 = vsub.s32 %v3452, %v3454
          %v3456 = vrot.slane %v3440, %v3455
          %v3458 = vunpack.c.l.s4 1966171168
          %v3459 = vunpack.c.0.s8 %v3458
          %v3460 = vlaneseq
          %v3461 = vshrl.u32 %v3460, 7
          %v3462 = vsub.s32 %v3459, %v3461
          %v3463 = vrot.slane %v3441, %v3462
          %v3465 = vunpack.c.l.s4 1966171168
          %v3466 = vunpack.c.0.s8 %v3465
          %v3467 = vlaneseq
          %v3468 = vshrl.u32 %v3467, 7
          %v3469 = vsub.s32 %v3466, %v3468
          %v3470 = vrot.slane %v3442, %v3469
          %v3471 = vcombine.high %v3449, %v3449
          %v3472 = vcombine.high %v3456, %v3456
          %v3473 = vcombine.high %v3463, %v3463
          %v3474 = vcombine.high %v3470, %v3470
          %3491 = vst [vmem:[%s368 + $0x7] sm:$0x1] %v3400
          %3492 = vst [vmem:[%s368 + $0xf] sm:$0x1] %v3414
          %3493 = vst [vmem:[%s368 + $0x17] sm:$0x1] %v3422
          %3494 = vst [vmem:[%s368 + $0x1f] sm:$0x1] %v3424
          %3495 = vst [vmem:[%s368 + $0x27] sm:$0x1] %v3407
          %3496 = vst [vmem:[%s368 + $0x2f] sm:$0x1] %v3421
          %3497 = vst [vmem:[%s368 + $0x37] sm:$0x1] %v3423
          %3498 = vst [vmem:[%s368 + $0x3f] sm:$0x1] %v3425
          %3499 = vst [vmem:[%s368 + $0x47] sm:$0x1] %v3449
          %3500 = vst [vmem:[%s368 + $0x4f] sm:$0x1] %v3463
          %3501 = vst [vmem:[%s368 + $0x57] sm:$0x1] %v3471
          %3502 = vst [vmem:[%s368 + $0x5f] sm:$0x1] %v3473
          %3503 = vst [vmem:[%s368 + $0x67] sm:$0x1] %v3456
          %3504 = vst [vmem:[%s368 + $0x6f] sm:$0x1] %v3470
          %3505 = vst [vmem:[%s368 + $0x77] sm:$0x1] %v3472
          %3506 = vst [vmem:[%s368 + $0x7f] sm:$0x1] %v3474
          %v3507 = vsel %vm3371, %v3358, %v3204
          %v3508 = vsel %vm3372, %v3359, %v3205
          %v3509 = vsel %vm3371, %v3354, %v3206
          %v3510 = vsel %vm3372, %v3355, %v3207
          %3511 = vst [vmem:[#allocation2] sm:$0xff] %v3507
          %3512 = vst [vmem:[#allocation2 + $0x8] sm:$0xff] %v3508
          %3513 = vst [vmem:[#allocation3] sm:$0xff] %v3509
          %3514 = vst [vmem:[#allocation3 + $0x8] sm:$0xff] %v3510
        $region60: #{encoder_lstm_forward.1} parent=47 // pred_fallthru
          _
        %p3515 = scmp.eq.s32.totalorder %s28, 2
        // Predicated region
        $region61: #{encoder_lstm_forward.1} parent=47 // pred_check
          %p3516 = pneg %p3515
        $region62: #{encoder_lstm_forward.1} parent=47 // pred_check_branch
          %3518 = sbr.rel (%p3516) target = $region64
        $region63: #{encoder_lstm_forward.1} parent=47 // pred_region
          %v3519 = vld [vmem:[#allocation2] sm:$0xff]
          %v3520 = vld [vmem:[#allocation2 + $0x8] sm:$0xff]
          %v3521 = vpack.c.bf16 %v3520, %v3519
          %v3522 = vld [vmem:[%s6] sm:$0xf]
          %v3523 = vld [vmem:[%s6 + $0x4] sm:$0xf]
          %v3524 = vld [vmem:[%s6 + $0x8] sm:$0xf]
          %v3525 = vld [vmem:[%s6 + $0xc] sm:$0xf]
          %v3526 = vld [vmem:[%s6 + $0x10] sm:$0xf]
          %v3527 = vld [vmem:[%s6 + $0x14] sm:$0xf]
          %v3528 = vld [vmem:[%s6 + $0x18] sm:$0xf]
          %v3529 = vld [vmem:[%s6 + $0x1c] sm:$0xf]
          %v3530 = vld [vmem:[%s6 + $0x20] sm:$0xf]
          %v3531 = vld [vmem:[%s6 + $0x24] sm:$0xf]
          %v3532 = vld [vmem:[%s6 + $0x28] sm:$0xf]
          %v3533 = vld [vmem:[%s6 + $0x2c] sm:$0xf]
          %v3534 = vld [vmem:[%s6 + $0x30] sm:$0xf]
          %v3535 = vld [vmem:[%s6 + $0x34] sm:$0xf]
          %v3536 = vld [vmem:[%s6 + $0x38] sm:$0xf]
          %v3537 = vld [vmem:[%s6 + $0x3c] sm:$0xf]
          %v3538 = vld [vmem:[%s7] sm:$0x1]
          %v3540 = vlaneseq
          %v3541 = vshrl.u32 %v3540, 7
          %v3542 = vsub.s32 0, %v3541
          %v3543 = vrot.slane %v3538, %v3542
          %v3561 = vunpack.c.l.b16 %v3522
          %v3562 = vunpack.c.l.b16 %v3523
          %v3563 = vunpack.c.l.b16 %v3524
          %v3564 = vunpack.c.l.b16 %v3525
          %v3565 = vunpack.c.l.b16 %v3526
          %v3566 = vunpack.c.l.b16 %v3527
          %v3567 = vunpack.c.l.b16 %v3528
          %v3568 = vunpack.c.l.b16 %v3529
          %v3569 = vunpack.c.l.b16 %v3530
          %v3570 = vunpack.c.l.b16 %v3531
          %v3571 = vunpack.c.l.b16 %v3532
          %v3572 = vunpack.c.l.b16 %v3533
          %v3573 = vunpack.c.l.b16 %v3534
          %v3574 = vunpack.c.l.b16 %v3535
          %v3575 = vunpack.c.l.b16 %v3536
          %v3576 = vunpack.c.l.b16 %v3537
          %v3577 = vpack.c.b16 %v3562, %v3561
          %v3578 = vpack.c.b16 %v3564, %v3563
          %v3579 = vpack.c.b16 %v3566, %v3565
          %v3580 = vpack.c.b16 %v3568, %v3567
          %v3581 = vpack.c.b16 %v3570, %v3569
          %v3582 = vpack.c.b16 %v3572, %v3571
          %v3583 = vpack.c.b16 %v3574, %v3573
          %v3584 = vpack.c.b16 %v3576, %v3575
          %3593 = vmatprep.subr.bf16.mxu0 0
          %3594 = vmatpush1.bf16.msra.mxu0 %v3584
          %3595 = vmatprep.subr.bf16.mxu0 0
          %3596 = vmatpush1.bf16.msra.mxu0 %v3583
          %3597 = vmatprep.subr.bf16.mxu0 0
          %3598 = vmatpush1.bf16.msra.mxu0 %v3582
          %3599 = vmatprep.subr.bf16.mxu0 0
          %3600 = vmatpush1.bf16.msra.mxu0 %v3581
          %3601 = vmatprep.subr.bf16.mxu0 0
          %3602 = vmatpush1.bf16.msra.mxu0 %v3580
          %3603 = vmatprep.subr.bf16.mxu0 0
          %3604 = vmatpush1.bf16.msra.mxu0 %v3579
          %3605 = vmatprep.subr.bf16.mxu0 0
          %3606 = vmatpush1.bf16.msra.mxu0 %v3578
          %3607 = vmatprep.subr.bf16.mxu0 0
          %3608 = vmatpush1.bf16.msra.mxu0 %v3577
          %3609 = vmatprep.subr.bf16.mxu0 0
          %3610 = vmatpush2.bf16.msra.mxu0 0
          %3611 = vmatprep.subr.bf16.mxu0 0
          %3612 = vmatpush2.bf16.msra.mxu0 0
          %3613 = vmatprep.subr.bf16.mxu0 0
          %3614 = vmatpush2.bf16.msra.mxu0 0
          %3615 = vmatprep.subr.bf16.mxu0 0
          %3616 = vmatpush2.bf16.msra.mxu0 0
          %3617 = vmatprep.subr.bf16.mxu0 0
          %3618 = vmatpush2.bf16.msra.mxu0 0
          %3619 = vmatprep.subr.bf16.mxu0 0
          %3620 = vmatpush2.bf16.msra.mxu0 0
          %3621 = vmatprep.subr.bf16.mxu0 0
          %3622 = vmatpush2.bf16.msra.mxu0 0
          %3623 = vmatprep.subr.bf16.mxu0 0
          %3624 = vmatpush2.bf16.msra.mxu0 0
          %3625 = vmatprep.mubr.bf16.mxu0 0
          %3626 = vmatmul.mubr.bf16.gmra.mxu0 %v3521
          %v3627 = vpop.f32.mrf.mxu0
          %v3628 = vadd.f32 %v3543, %v3627
          %v3629 = vpop.f32.mrf.mxu0
          %v3630 = vpop.f32.mrf.mxu0
          %v3631 = vadd.f32 %v3543, %v3630
          %v3632 = vpop.f32.mrf.mxu0
          %3633 = vdwg.mxu0
          %v3634 = vtanh.pop %v3628
          %v3635 = vtanh.pop %v3631
          %3636 = vst [vmem:[%s406] sm:$0xff] %v3634
          %3637 = vst [vmem:[%s406 + $0x8] sm:$0xff] %v3635
          %v3638 = vld [vmem:[#allocation3] sm:$0xff]
          %v3639 = vld [vmem:[#allocation3 + $0x8] sm:$0xff]
          %3640 = vst [vmem:[%s412] sm:$0xff] %v3638
          %3641 = vst [vmem:[%s412 + $0x8] sm:$0xff] %v3639
        $region64: #{encoder_lstm_forward.1} parent=47 // pred_fallthru
          _
        %s3642 = sand.u32 %s204, 1
        %s3643 = sand.u32 %s204, 1
        %s3644 = smul.addr %s3643, 128
        %s3645 = scalar_lea.vmem [#allocation7], %s3644
        %s3646 = smul.u32 2, %s27
        %p3647 = scmp.lt.s32.totalorder %s3646, 1
        %s3648 = scalar_select %p3647, %s3646, 1
        %s3649 = smul.addr %s3648, 8
        %s3650 = scalar_lea.vmem %s9, %s3649
        %s3651 = smul.u32 2, %s27
        %p3652 = scmp.lt.s32.totalorder %s3651, 1
        %s3653 = scalar_select %p3652, %s3651, 1
        %s3654 = smul.addr %s3653, 8
        %s3655 = scalar_lea.vmem %s10, %s3654
        // Predicated region
        $region65: #{encoder_lstm_forward.1} parent=47 // pred_check
          %p3656 = pneg %p214
        $region66: #{encoder_lstm_forward.1} parent=47 // pred_check_branch
          %3658 = sbr.rel (%p3656) target = $region68
        $region67: #{encoder_lstm_forward.1} parent=47 // pred_region
          %s3659 = smul.u32 16, %s27
          %s3660 = smul.addr %s3659, 3
          %s3661 = sadd.s32 %s28, %s3660
          %s3662 = smul.addr %s3661, 8
          %s3663 = scalar_lea.vmem %s8, %s3662
          // Predicated region
          $region69: #{encoder_lstm_forward.1} parent=67 // pred_check
            _
          $region70: #{encoder_lstm_forward.1} parent=67 // pred_check_branch
            %3665 = sbr.rel (0) target = $region72
          $region71: #{encoder_lstm_forward.1} parent=67 // pred_region
            // Predicated region
            $region73: #{encoder_lstm_forward.1} parent=71 // pred_check
              _
            $region74: #{encoder_lstm_forward.1} parent=71 // pred_check_branch
              %3667 = sbr.rel (0) target = $region76
            $region75: #{encoder_lstm_forward.1} parent=71 // pred_region
              // Predicated region
              $region88: #{encoder_lstm_forward.1} parent=75 // pred_check
                _
              $region89: #{encoder_lstm_forward.1} parent=75 // pred_check_branch
                %3713 = sbr.rel (0) target = $region91
              $region90: #{encoder_lstm_forward.1} parent=75 // pred_region
                loop: start=0, step=1, limit=1
                $region92: #{encoder_lstm_forward.1} parent=90 // loop_pre_header
                  _
                $region93: #{encoder_lstm_forward.1} parent=90 // loop_header
                  %s3715 = sphi 0, %s3719
                  %p3716 = scmp.ge.s32.totalorder %s3715, 1
                  %s3720 = sphi %s3645, %s3645
                  %s3721 = sphi %s3663, %s3663
                $region94: #{encoder_lstm_forward.1} parent=90 // loop_header_branch
                  %3718 = sbr.rel (%p3716) target = $region98
                $region95: #{encoder_lstm_forward.1} parent=90 // loop_body
                  %v3722 = vld [vmem:[%s3720] sm:$0xff]
                  %3723 = vst [vmem:[%s3721] sm:$0xff] %v3722
                  %v3724 = vld [vmem:[%s3720 + $0x8] sm:$0xff]
                  %3725 = vst [vmem:[%s3721 + $0x18] sm:$0xff] %v3724
                  %v3726 = vld [vmem:[%s3720 + $0x10] sm:$0xff]
                  %3727 = vst [vmem:[%s3721 + $0x30] sm:$0xff] %v3726
                  %v3728 = vld [vmem:[%s3720 + $0x18] sm:$0xff]
                  %3729 = vst [vmem:[%s3721 + $0x48] sm:$0xff] %v3728
                  %v3730 = vld [vmem:[%s3720 + $0x20] sm:$0xff]
                  %3731 = vst [vmem:[%s3721 + $0x60] sm:$0xff] %v3730
                  %v3732 = vld [vmem:[%s3720 + $0x28] sm:$0xff]
                  %3733 = vst [vmem:[%s3721 + $0x78] sm:$0xff] %v3732
                  %v3734 = vld [vmem:[%s3720 + $0x30] sm:$0xff]
                  %3735 = vst [vmem:[%s3721 + $0x90] sm:$0xff] %v3734
                  %v3736 = vld [vmem:[%s3720 + $0x38] sm:$0xff]
                  %3737 = vst [vmem:[%s3721 + $0xa8] sm:$0xff] %v3736
                  %v3738 = vld [vmem:[%s3720 + $0x40] sm:$0xff]
                  %3739 = vst [vmem:[%s3721 + $0xc0] sm:$0xff] %v3738
                  %v3740 = vld [vmem:[%s3720 + $0x48] sm:$0xff]
                  %3741 = vst [vmem:[%s3721 + $0xd8] sm:$0xff] %v3740
                  %v3742 = vld [vmem:[%s3720 + $0x50] sm:$0xff]
                  %3743 = vst [vmem:[%s3721 + $0xf0] sm:$0xff] %v3742
                  %v3744 = vld [vmem:[%s3720 + $0x58] sm:$0xff]
                  %3745 = vst [vmem:[%s3721 + $0x108] sm:$0xff] %v3744
                  %v3746 = vld [vmem:[%s3720 + $0x60] sm:$0xff]
                  %3747 = vst [vmem:[%s3721 + $0x120] sm:$0xff] %v3746
                  %v3748 = vld [vmem:[%s3720 + $0x68] sm:$0xff]
                  %3749 = vst [vmem:[%s3721 + $0x138] sm:$0xff] %v3748
                  %v3750 = vld [vmem:[%s3720 + $0x70] sm:$0xff]
                  %3751 = vst [vmem:[%s3721 + $0x150] sm:$0xff] %v3750
                  %v3752 = vld [vmem:[%s3720 + $0x78] sm:$0xff]
                  %3753 = vst [vmem:[%s3721 + $0x168] sm:$0xff] %v3752
                $region96: #{encoder_lstm_forward.1} parent=90 // loop_footer
                  %s3719 = sadd.s32 1, %s3715
                $region97: #{encoder_lstm_forward.1} parent=90 // loop_footer_branch
                  %3714 = sbr.rel target = $region93
                $region98: #{encoder_lstm_forward.1} parent=90 // loop_exit
                  _
              $region91: #{encoder_lstm_forward.1} parent=75 // pred_fallthru
                _
              // Predicated region
              $region99: #{encoder_lstm_forward.1} parent=75 // pred_check
                _
              $region100: #{encoder_lstm_forward.1} parent=75 // pred_check_branch
                %3755 = sbr.rel target = $region102
              $region101: #{encoder_lstm_forward.1} parent=75 // pred_region
                _
              $region102: #{encoder_lstm_forward.1} parent=75 // pred_fallthru
                _
            $region76: #{encoder_lstm_forward.1} parent=71 // pred_fallthru
              _
            // Predicated region
            $region77: #{encoder_lstm_forward.1} parent=71 // pred_check
              _
            $region78: #{encoder_lstm_forward.1} parent=71 // pred_check_branch
              %3669 = sbr.rel target = $region80
            $region79: #{encoder_lstm_forward.1} parent=71 // pred_region
              %s3671 = ssub.s32 256, 1
              loop: start=0, step=1, limit=1
              $region81: #{encoder_lstm_forward.1} parent=79 // loop_pre_header
                _
              $region82: #{encoder_lstm_forward.1} parent=79 // loop_header
                %s3673 = sphi 0, %s3677
                %p3674 = scmp.ge.s32.totalorder %s3673, 1
                %s3678 = sphi %s3645, %s3645
                %s3679 = sphi %s3663, %s3663
              $region83: #{encoder_lstm_forward.1} parent=79 // loop_header_branch
                %3676 = sbr.rel (%p3674) target = $region87
              $region84: #{encoder_lstm_forward.1} parent=79 // loop_body
                %v3680 = vld [vmem:[%s3678] sm:%s3671]
                %3681 = vst [vmem:[%s3679] sm:%s3671] %v3680
                %v3682 = vld [vmem:[%s3678 + $0x8] sm:%s3671]
                %3683 = vst [vmem:[%s3679 + $0x18] sm:%s3671] %v3682
                %v3684 = vld [vmem:[%s3678 + $0x10] sm:%s3671]
                %3685 = vst [vmem:[%s3679 + $0x30] sm:%s3671] %v3684
                %v3686 = vld [vmem:[%s3678 + $0x18] sm:%s3671]
                %3687 = vst [vmem:[%s3679 + $0x48] sm:%s3671] %v3686
                %v3688 = vld [vmem:[%s3678 + $0x20] sm:%s3671]
                %3689 = vst [vmem:[%s3679 + $0x60] sm:%s3671] %v3688
                %v3690 = vld [vmem:[%s3678 + $0x28] sm:%s3671]
                %3691 = vst [vmem:[%s3679 + $0x78] sm:%s3671] %v3690
                %v3692 = vld [vmem:[%s3678 + $0x30] sm:%s3671]
                %3693 = vst [vmem:[%s3679 + $0x90] sm:%s3671] %v3692
                %v3694 = vld [vmem:[%s3678 + $0x38] sm:%s3671]
                %3695 = vst [vmem:[%s3679 + $0xa8] sm:%s3671] %v3694
                %v3696 = vld [vmem:[%s3678 + $0x40] sm:%s3671]
                %3697 = vst [vmem:[%s3679 + $0xc0] sm:%s3671] %v3696
                %v3698 = vld [vmem:[%s3678 + $0x48] sm:%s3671]
                %3699 = vst [vmem:[%s3679 + $0xd8] sm:%s3671] %v3698
                %v3700 = vld [vmem:[%s3678 + $0x50] sm:%s3671]
                %3701 = vst [vmem:[%s3679 + $0xf0] sm:%s3671] %v3700
                %v3702 = vld [vmem:[%s3678 + $0x58] sm:%s3671]
                %3703 = vst [vmem:[%s3679 + $0x108] sm:%s3671] %v3702
                %v3704 = vld [vmem:[%s3678 + $0x60] sm:%s3671]
                %3705 = vst [vmem:[%s3679 + $0x120] sm:%s3671] %v3704
                %v3706 = vld [vmem:[%s3678 + $0x68] sm:%s3671]
                %3707 = vst [vmem:[%s3679 + $0x138] sm:%s3671] %v3706
                %v3708 = vld [vmem:[%s3678 + $0x70] sm:%s3671]
                %3709 = vst [vmem:[%s3679 + $0x150] sm:%s3671] %v3708
                %v3710 = vld [vmem:[%s3678 + $0x78] sm:%s3671]
                %3711 = vst [vmem:[%s3679 + $0x168] sm:%s3671] %v3710
              $region85: #{encoder_lstm_forward.1} parent=79 // loop_footer
                %s3677 = sadd.s32 1, %s3673
              $region86: #{encoder_lstm_forward.1} parent=79 // loop_footer_branch
                %3672 = sbr.rel target = $region82
              $region87: #{encoder_lstm_forward.1} parent=79 // loop_exit
                _
            $region80: #{encoder_lstm_forward.1} parent=71 // pred_fallthru
              _
          $region72: #{encoder_lstm_forward.1} parent=67 // pred_fallthru
            _
          %3756 = vnop
        $region68: #{encoder_lstm_forward.1} parent=47 // pred_fallthru
          _
        // Predicated region
        $region103: #{encoder_lstm_forward.1} parent=47 // pred_check
          %p3757 = pneg %p240
        $region104: #{encoder_lstm_forward.1} parent=47 // pred_check_branch
          %3759 = sbr.rel (%p3757) target = $region106
        $region105: #{encoder_lstm_forward.1} parent=47 // pred_region
          %s3760 = smul.u32 2, %s27
        $region106: #{encoder_lstm_forward.1} parent=47 // pred_fallthru
          _
        // Predicated region
        $region107: #{encoder_lstm_forward.1} parent=47 // pred_check
          %p3761 = pneg %p266
        $region108: #{encoder_lstm_forward.1} parent=47 // pred_check_branch
          %3763 = sbr.rel (%p3761) target = $region110
        $region109: #{encoder_lstm_forward.1} parent=47 // pred_region
          %s3764 = smul.u32 2, %s27
        $region110: #{encoder_lstm_forward.1} parent=47 // pred_fallthru
          _
        // Predicated region
        $region111: #{encoder_lstm_forward.1} parent=47 // pred_check
          %p3765 = pneg %p240
        $region112: #{encoder_lstm_forward.1} parent=47 // pred_check_branch
          %3767 = sbr.rel (%p3765) target = $region114
        $region113: #{encoder_lstm_forward.1} parent=47 // pred_region
          %s3768 = smul.u32 2, %s27
          %p3769 = scmp.lt.s32.totalorder %s3768, 1
          %s3770 = scalar_select %p3769, %s3768, 1
          %s3771 = smul.addr %s3770, 8
          %s3772 = scalar_lea.vmem %s9, %s3771
        $region114: #{encoder_lstm_forward.1} parent=47 // pred_fallthru
          _
        // Predicated region
        $region115: #{encoder_lstm_forward.1} parent=47 // pred_check
          %p3773 = pneg %p266
        $region116: #{encoder_lstm_forward.1} parent=47 // pred_check_branch
          %3775 = sbr.rel (%p3773) target = $region118
        $region117: #{encoder_lstm_forward.1} parent=47 // pred_region
          %s3776 = smul.u32 2, %s27
          %p3777 = scmp.lt.s32.totalorder %s3776, 1
          %s3778 = scalar_select %p3777, %s3776, 1
          %s3779 = smul.addr %s3778, 8
          %s3780 = scalar_lea.vmem %s10, %s3779
        $region118: #{encoder_lstm_forward.1} parent=47 // pred_fallthru
          _
      $region48: #{encoder_lstm_forward.1} parent=5 // pred_fallthru
        _
      %p3781 = scmp.le.s32.totalorder 2, %s18
      // Predicated region
      $region119: #{encoder_lstm_forward.1} parent=5 // pred_check
        %p3782 = pneg %p3781
      $region120: #{encoder_lstm_forward.1} parent=5 // pred_check_branch
        %3784 = sbr.rel (%p3782) target = $region122
      $region121: #{encoder_lstm_forward.1} parent=5 // pred_region
        %s3785 = ssub.s32 %s18, 2
        // Predicated region
        $region123: #{encoder_lstm_forward.1} parent=121 // pred_check
          %p3786 = pneg %p220
        $region124: #{encoder_lstm_forward.1} parent=121 // pred_check_branch
          %3788 = sbr.rel (%p3786) target = $region126
        $region125: #{encoder_lstm_forward.1} parent=121 // pred_region
          %s3789 = sand.u32 %s205, 1
          %s3790 = sand.u32 %s205, 1
          %s3791 = smul.addr %s3790, 128
          %s3792 = scalar_lea.vmem [#allocation7], %s3791
        $region126: #{encoder_lstm_forward.1} parent=121 // pred_fallthru
          _
      $region122: #{encoder_lstm_forward.1} parent=5 // pred_fallthru
        _
    $region6: #{encoder_lstm_forward.1} parent=1 // loop_footer
      %s22 = sadd.s32 1, %s18
    $region7: #{encoder_lstm_forward.1} parent=1 // loop_footer_branch
      %17 = sbr.rel target = $region3
    $region8: #{encoder_lstm_forward.1} parent=1 // loop_exit
      _

</llo_original>
